<compile_context>
chip_gen: v5e
topology: v5e:2x2
jax: 0.10.0
libtpu: 0.0.40
codegen_flags: <defaults>
</compile_context>

<pallas_src>
import numpy as np

import jax
import jax.numpy as jnp
from jax import lax
from jax.experimental import pallas as pl
from jax.experimental.pallas import tpu as pltpu

VMEM = pltpu.MemorySpace.VMEM


# ------------------------------ Pallas kernel -------------------------------

def _cnn2d_kernel(x_ref, wb1_ref, bc1_ref, wb2_ref, bc2_ref, cap_ref,
                  w1e_hbm, w1c_ref, b1_ref, w2_ref, b2_ref, w3_ref, b3_ref,
                  o_ref,
                  pad1, pad2, h2_scr, w1e_vmem, w1_sem):
    """Fused conv1+ReLU+conv2+ReLU+(avgpool+flatten+fc1)+ReLU+fc2+ReLU+fc3."""
    B, H, _ = x_ref.shape          # x is lane-packed: (B, H, W*Cin)
    wc1 = wb1_ref.shape[2]         # W * C1
    wc2 = wb2_ref.shape[2]         # W * C2

    # (1) Kick off the fc1-weight DMA (HBM -> VMEM); overlaps the conv stage.
    w1_copy = pltpu.make_async_copy(w1e_hbm, w1e_vmem, w1_sem)
    w1_copy.start()

    # (2) Zero only the row halos (column halo is folded into the banded
    #     weights, so no lane padding exists at all).
    z1 = jnp.zeros((B, 1, pad1.shape[2]), jnp.float32)
    z2 = jnp.zeros((B, 1, pad2.shape[2]), jnp.float32)
    pad1[:, 0:1, :] = z1
    pad1[:, H + 1:H + 2, :] = z1
    pad2[:, 0:1, :] = z2
    pad2[:, H + 1:H + 2, :] = z2

    pad1[:, 1:H + 1, :] = x_ref[...]

    def conv3x3_relu(src_pad, wb_ref, bias_ref):
        # One dot per kernel row dy; dx taps live in the banded weight's K dim.
        k = src_pad.shape[2]
        n = wb_ref.shape[2]
        acc = jnp.zeros((B * H, n), jnp.float32)
        for dy in range(3):
            patch = src_pad[:, dy:dy + H, :].reshape(B * H, k)
            acc = acc + jnp.dot(patch.astype(jnp.bfloat16), wb_ref[dy],
                                preferred_element_type=jnp.float32)
        return jnp.maximum(acc + bias_ref[...], 0.0)          # f32 epilogue

    h1 = conv3x3_relu(pad1, wb1_ref, bc1_ref)                 # (B*H, W*C1)
    pad2[:, 1:H + 1, :] = h1.reshape(B, H, wc1)
    h2 = conv3x3_relu(pad2, wb2_ref, bc2_ref)                 # (B*H, W*C2)
    h2_scr[...] = h2.reshape(B, H, wc2)

    # (3) fc1: AvgPool2d(2, s=1, p=1, count_include_pad=True) + flatten +
    #     Linear are folded into w1e at prepare time, so fc1 is H accumulated
    #     (B, W*C2) x (W*C2, 256) bf16 dots with an f32 accumulator.
    w1_copy.wait()                                            # DMA done by now
    acc = cap_ref[...] * w1c_ref[...] + b1_ref[...]           # (B, 256)
    for r in range(H):
        row = h2_scr[:, pl.ds(r, 1), :].reshape(B, wc2)
        acc = acc + jnp.dot(row.astype(jnp.bfloat16), w1e_vmem[r],
                            preferred_element_type=jnp.float32)
    h = jnp.maximum(acc, 0.0)
    # TODO(synk): nn.Dropout is identity at inference; training-mode dropout
    # (stateful RNG masking) is not implemented here.
    h = jnp.dot(h.astype(jnp.bfloat16), w2_ref[...],
                preferred_element_type=jnp.float32)
    h = jnp.maximum(h + b2_ref[...], 0.0)
    # fc3 (out_features=1): lane reduce instead of a one-column matmul.
    o_ref[...] = jnp.sum(h * w3_ref[...], axis=-1, keepdims=True) + b3_ref[...]


# -------------------------------- wrapper ------------------------------------

def cnn2d_forward(params, x_nchw, capacity):
    B, Cin, H, W = x_nchw.shape
    # NCHW -> lane-packed (B, H, W*Cin); free row-major view after NHWC.
    x_packed = jnp.transpose(x_nchw, (0, 2, 3, 1)).reshape(B, H, W * Cin)
    x_packed = x_packed.astype(jnp.float32)
    cap = capacity.astype(jnp.float32).reshape(B, 1)

    wc1 = params["wb1"].shape[2]          # W * C1
    wc2 = params["wb2"].shape[2]          # W * C2

    return pl.pallas_call(
        _cnn2d_kernel,
        out_shape=jax.ShapeDtypeStruct((B, 1), jnp.float32),
        in_specs=[
            pl.BlockSpec(memory_space=VMEM),      # x (lane-packed)
            pl.BlockSpec(memory_space=VMEM),      # wb1 (banded conv1, bf16)
            pl.BlockSpec(memory_space=VMEM),      # conv1 bias (lane-packed)
            pl.BlockSpec(memory_space=VMEM),      # wb2 (banded conv2, bf16)
            pl.BlockSpec(memory_space=VMEM),      # conv2 bias (lane-packed)
            pl.BlockSpec(memory_space=VMEM),      # capacity (B, 1)
            pl.BlockSpec(memory_space=pl.ANY),    # w1e: stays in HBM, manual DMA
            pl.BlockSpec(memory_space=VMEM),      # w1_cap
            pl.BlockSpec(memory_space=VMEM),      # b1
            pl.BlockSpec(memory_space=VMEM),      # w2 (bf16)
            pl.BlockSpec(memory_space=VMEM),      # b2
            pl.BlockSpec(memory_space=VMEM),      # w3
            pl.BlockSpec(memory_space=VMEM),      # b3
        ],
        out_specs=pl.BlockSpec(memory_space=VMEM),
        scratch_shapes=[
            pltpu.VMEM((B, H + 2, W * Cin), jnp.float32),     # pad1 (row halo)
            pltpu.VMEM((B, H + 2, wc1), jnp.float32),         # pad2 (row halo)
            pltpu.VMEM((B, H, wc2), jnp.float32),             # conv2 output
            pltpu.VMEM(params["w1e"].shape, jnp.bfloat16),    # fc1 weight landing
            pltpu.SemaphoreType.DMA,                          # fc1 weight DMA sem
        ],
    )(x_packed, params["wb1"], params["bc1p"], params["wb2"], params["bc2p"],
      cap, params["w1e"], params["w1_cap"], params["b1"],
      params["w2"], params["b2"], params["w3"], params["b3"])


# ------------------------------ parameters -----------------------------------

def init_pytorch_params(key, dim, n_layers, n_filters):
    """Random parameters in the PyTorch state_dict layouts."""
    h3 = w3 = dim + 1
    feat_dim = 1 + 2 * n_filters * h3 * w3
    ks = jax.random.split(key, 10)

    def rnd(k, shape, scale=0.1):
        return (scale * jax.random.normal(k, shape)).astype(jnp.float32)

    return {
        "conv1_w": rnd(ks[0], (n_filters, n_layers, 3, 3)),   # (Cout,Cin,kh,kw)
        "conv1_b": rnd(ks[1], (n_filters,)),
        "conv2_w": rnd(ks[2], (2 * n_filters, n_filters, 3, 3)),
        "conv2_b": rnd(ks[3], (2 * n_filters,)),
        "fc1_w": rnd(ks[4], (256, feat_dim)),                 # (out, in)
        "fc1_b": rnd(ks[5], (256,)),
        "fc2_w": rnd(ks[6], (128, 256)),
        "fc2_b": rnd(ks[7], (128,)),
        "fc3_w": rnd(ks[8], (1, 128)),
        "fc3_b": rnd(ks[9], (1,)),
    }


def prepare_params(pt, dim, n_filters):
    """PyTorch layouts -> fused-kernel layouts (done once at load time).

    * conv weights (Cout,Cin,3,3) -> per-dy banded matmul weights
      (3, W*Cin, W*Cout), lane layout k = w_in*Cin + c, n = w_out*Cout + o;
      out-of-range horizontal taps (the conv zero-padding) are simply zero rows.
    * fc1: the pooled-feature columns are permuted from PyTorch's NCHW flatten
      to the kernel's (row, w*C2+c) order, and AvgPool2d(2, stride 1, pad 1,
      count_include_pad=True) incl. its 0.25 scale is folded into the weight
      (each conv pixel feeds exactly four pool windows at these offsets).
      The capacity column becomes its own f32 weight row.
    * conv/fc1/fc2 weights are stored in bf16; biases stay f32.
    """
    C1, C2 = n_filters, 2 * n_filters
    H = W = dim
    Ho = Wo = dim + 1

    def banded_conv_weight(w_oihw):
        w = np.asarray(w_oihw, np.float32)
        cout, cin = w.shape[0], w.shape[1]
        wb = np.zeros((3, W * cin, W * cout), np.float32)
        for dy in range(3):
            for dx in range(3):
                blk = w[:, :, dy, dx].T                       # (Cin, Cout)
                for wo in range(W):
                    wi = wo + dx - 1
                    if 0 <= wi < W:                           # conv zero-pad cols
                        wb[dy, wi * cin:(wi + 1) * cin,
                               wo * cout:(wo + 1) * cout] = blk
        return jnp.asarray(wb, dtype=jnp.bfloat16)

    W1 = np.asarray(pt["fc1_w"], np.float32)                  # (256, 1+C2*Ho*Wo)
    nflat = C2 * Ho * Wo
    W1p = W1[:, :nflat].reshape(256, C2, Ho, Wo)              # (n, c, i, j)
    w1e = 0.25 * (W1p[:, :, 0:H, 0:W] + W1p[:, :, 0:H, 1:W + 1]
                  + W1p[:, :, 1:H + 1, 0:W] + W1p[:, :, 1:H + 1, 1:W + 1])
    w1e = np.transpose(w1e, (2, 3, 1, 0)).reshape(H, W * C2, 256)  # (r, s*C2+c, n)

    return {
        "wb1": banded_conv_weight(pt["conv1_w"]),             # (3, W*Cin, W*C1)
        "bc1p": jnp.asarray(np.tile(np.asarray(pt["conv1_b"], np.float32),
                                    W).reshape(1, W * C1)),
        "wb2": banded_conv_weight(pt["conv2_w"]),             # (3, W*C1, W*C2)
        "bc2p": jnp.asarray(np.tile(np.asarray(pt["conv2_b"], np.float32),
                                    W).reshape(1, W * C2)),
        "w1e": jnp.asarray(w1e, dtype=jnp.bfloat16),          # (H, W*C2, 256)
        "w1_cap": jnp.asarray(W1[:, nflat:].T),               # (1, 256) f32
        "b1": jnp.asarray(np.asarray(pt["fc1_b"], np.float32).reshape(1, 256)),
        "w2": jnp.asarray(np.asarray(pt["fc2_w"], np.float32).T,
                          dtype=jnp.bfloat16),                # (256, 128)
        "b2": jnp.asarray(np.asarray(pt["fc2_b"], np.float32).reshape(1, 128)),
        "w3": jnp.asarray(np.asarray(pt["fc3_w"], np.float32)),      # (1, 128)
        "b3": jnp.asarray(np.asarray(pt["fc3_b"], np.float32).reshape(1, 1)),
    }


# --------------------------- pure-f32 JAX reference --------------------------

def reference_forward(pt, x_nchw, capacity):
    """Full-precision mirror of the PyTorch module (f32 everywhere)."""
    hp = lax.Precision.HIGHEST
    y = lax.conv_general_dilated(
        x_nchw, pt["conv1_w"], (1, 1), ((1, 1), (1, 1)),
        dimension_numbers=("NCHW", "OIHW", "NCHW"), precision=hp)
    y = jax.nn.relu(y + pt["conv1_b"][None, :, None, None])
    y = lax.conv_general_dilated(
        y, pt["conv2_w"], (1, 1), ((1, 1), (1, 1)),
        dimension_numbers=("NCHW", "OIHW", "NCHW"), precision=hp)
    y = jax.nn.relu(y + pt["conv2_b"][None, :, None, None])
    H = y.shape[2]
    yp = jnp.pad(y, ((0, 0), (0, 0), (1, 1), (1, 1)))
    y = 0.25 * (yp[:, :, 0:H + 1, 0:H + 1] + yp[:, :, 0:H + 1, 1:H + 2]
                + yp[:, :, 1:H + 2, 0:H + 1] + yp[:, :, 1:H + 2, 1:H + 2])
    flat = y.reshape(y.shape[0], -1)                          # NCHW flatten
    feat = jnp.concatenate([flat, capacity[:, None]], axis=1)
    h = jax.nn.relu(jnp.dot(feat, pt["fc1_w"].T, precision=hp)
                    + pt["fc1_b"][None])
    h = jax.nn.relu(jnp.dot(h, pt["fc2_w"].T, precision=hp) + pt["fc2_b"][None])
    return jnp.dot(h, pt["fc3_w"].T, precision=hp) + pt["fc3_b"][None]


# ----------------------------------- main ------------------------------------

if __name__ == "__main__":
    B, dim, n_layers, n_filters = 2, 16, 4, 8
    key = jax.random.PRNGKey(0)
    kp, kx, kc = jax.random.split(key, 3)

    pt_params = init_pytorch_params(kp, dim, n_layers, n_filters)
    params = prepare_params(pt_params, dim, n_filters)

    x = jax.random.normal(kx, (B, n_layers, dim, dim), dtype=jnp.float32)
    capacity = jax.random.normal(kc, (B,), dtype=jnp.float32)

    out = jax.block_until_ready(jax.jit(cnn2d_forward)(params, x, capacity))
    ref = jax.block_until_ready(reference_forward(pt_params, x, capacity))

    assert out.shape == (B, 1)
    assert bool(jnp.all(jnp.isfinite(out)))
    max_err = float(jnp.max(jnp.abs(out - ref)))
    scale = max(1.0, float(jnp.max(jnp.abs(ref))))
    assert max_err < 5e-2 * scale, (
        f"mismatch vs f32 reference: max abs err = {max_err}, ref scale = {scale}")
    print("KERNEL_OK")
</pallas_src>

<mosaic_0001>
module attributes {stable_mosaic.version = 11 : i64} {
  func.func @_cnn2d_kernel(%arg0: memref<2x16x64xf32, #tpu.memory_space<vmem>>, %arg1: memref<3x64x128xbf16, #tpu.memory_space<vmem>>, %arg2: memref<1x128xf32, #tpu.memory_space<vmem>>, %arg3: memref<3x128x256xbf16, #tpu.memory_space<vmem>>, %arg4: memref<1x256xf32, #tpu.memory_space<vmem>>, %arg5: memref<2x1xf32, #tpu.memory_space<vmem>>, %arg6: memref<16x256x256xbf16, #tpu.memory_space<any>>, %arg7: memref<1x256xf32, #tpu.memory_space<vmem>>, %arg8: memref<1x256xf32, #tpu.memory_space<vmem>>, %arg9: memref<256x128xbf16, #tpu.memory_space<vmem>>, %arg10: memref<1x128xf32, #tpu.memory_space<vmem>>, %arg11: memref<1x128xf32, #tpu.memory_space<vmem>>, %arg12: memref<1x1xf32, #tpu.memory_space<vmem>>, %arg13: memref<2x1xf32, #tpu.memory_space<vmem>>, %arg14: memref<2x18x64xf32, #tpu.memory_space<vmem>>, %arg15: memref<2x18x128xf32, #tpu.memory_space<vmem>>, %arg16: memref<2x16x256xf32, #tpu.memory_space<vmem>>, %arg17: memref<16x256x256xbf16, #tpu.memory_space<vmem>>, %arg18: memref<!tpu.dma_semaphore, #tpu.memory_space<semaphore_mem>>) attributes {dimension_semantics = [], scalar_prefetch = 0 : i64, scratch_operands = 5 : i64, tpu.core_type = #tpu.core_type<tc>} {
    tpu.enqueue_dma source(%arg6 : memref<16x256x256xbf16, #tpu.memory_space<any>>) target(%arg17 : memref<16x256x256xbf16, #tpu.memory_space<vmem>>) target_semaphore(%arg18 : memref<!tpu.dma_semaphore, #tpu.memory_space<semaphore_mem>>)
    %cst = arith.constant 0.000000e+00 : f32
    %0 = vector.broadcast %cst : f32 to vector<2x1x64xf32>
    %cst_0 = arith.constant 0.000000e+00 : f32
    %1 = vector.broadcast %cst_0 : f32 to vector<2x1x128xf32>
    %c0 = arith.constant 0 : index
    %c0_1 = arith.constant 0 : index
    %c0_2 = arith.constant 0 : index
    %2 = vector.load %arg14[%c0, %c0_1, %c0_2] : memref<2x18x64xf32, #tpu.memory_space<vmem>>, vector<2x1x64xf32>
    tpu.vector_store %arg14[%c0, %c0_1, %c0_2], %0 {strides = array<i32>} : memref<2x18x64xf32, #tpu.memory_space<vmem>>, vector<2x1x64xf32>,
    %c0_3 = arith.constant 0 : index
    %c17 = arith.constant 17 : index
    %c0_4 = arith.constant 0 : index
    %3 = vector.load %arg14[%c0_3, %c17, %c0_4] : memref<2x18x64xf32, #tpu.memory_space<vmem>>, vector<2x1x64xf32>
    tpu.vector_store %arg14[%c0_3, %c17, %c0_4], %0 {strides = array<i32>} : memref<2x18x64xf32, #tpu.memory_space<vmem>>, vector<2x1x64xf32>,
    %c0_5 = arith.constant 0 : index
    %c0_6 = arith.constant 0 : index
    %c0_7 = arith.constant 0 : index
    %4 = vector.load %arg15[%c0_5, %c0_6, %c0_7] : memref<2x18x128xf32, #tpu.memory_space<vmem>>, vector<2x1x128xf32>
    tpu.vector_store %arg15[%c0_5, %c0_6, %c0_7], %1 {strides = array<i32>} : memref<2x18x128xf32, #tpu.memory_space<vmem>>, vector<2x1x128xf32>,
    %c0_8 = arith.constant 0 : index
    %c17_9 = arith.constant 17 : index
    %c0_10 = arith.constant 0 : index
    %5 = vector.load %arg15[%c0_8, %c17_9, %c0_10] : memref<2x18x128xf32, #tpu.memory_space<vmem>>, vector<2x1x128xf32>
    tpu.vector_store %arg15[%c0_8, %c17_9, %c0_10], %1 {strides = array<i32>} : memref<2x18x128xf32, #tpu.memory_space<vmem>>, vector<2x1x128xf32>,
    %c0_11 = arith.constant 0 : index
    %c0_12 = arith.constant 0 : index
    %c0_13 = arith.constant 0 : index
    %6 = vector.load %arg0[%c0_11, %c0_12, %c0_13] : memref<2x16x64xf32, #tpu.memory_space<vmem>>, vector<2x16x64xf32>
    %c0_14 = arith.constant 0 : index
    %c1 = arith.constant 1 : index
    %c0_15 = arith.constant 0 : index
    %7 = vector.load %arg14[%c0_14, %c1, %c0_15] : memref<2x18x64xf32, #tpu.memory_space<vmem>>, vector<2x16x64xf32>
    tpu.vector_store %arg14[%c0_14, %c1, %c0_15], %6 {strides = array<i32>} : memref<2x18x64xf32, #tpu.memory_space<vmem>>, vector<2x16x64xf32>,
    %cst_16 = arith.constant 0.000000e+00 : f32
    %8 = vector.broadcast %cst_16 : f32 to vector<32x128xf32>
    %c0_17 = arith.constant 0 : index
    %c0_18 = arith.constant 0 : index
    %c0_19 = arith.constant 0 : index
    %9 = vector.load %arg14[%c0_17, %c0_18, %c0_19] : memref<2x18x64xf32, #tpu.memory_space<vmem>>, vector<2x16x64xf32>
    %10 = vector.shape_cast %9 : vector<2x16x64xf32> to vector<32x64xf32>
    %11 = arith.truncf %10 : vector<32x64xf32> to vector<32x64xbf16>
    %c0_20 = arith.constant 0 : index
    %c0_21 = arith.constant 0 : index
    %c0_22 = arith.constant 0 : index
    %12 = vector.load %arg1[%c0_20, %c0_21, %c0_22] : memref<3x64x128xbf16, #tpu.memory_space<vmem>>, vector<1x64x128xbf16>
    %13 = vector.shape_cast %12 : vector<1x64x128xbf16> to vector<64x128xbf16>
    %cst_23 = arith.constant dense<0.000000e+00> : vector<32x128xf32>
    %14 = tpu.matmul %11, %13, %cst_23 {dimension_numbers = #tpu.dot_dimension_numbers<[1], [0], [0], [1], [0, 0, 1, 1], [], []>} : vector<32x64xbf16>, vector<64x128xbf16>, vector<32x128xf32> -> vector<32x128xf32>
    %15 = arith.addf %8, %14 : vector<32x128xf32>
    %c0_24 = arith.constant 0 : index
    %c1_25 = arith.constant 1 : index
    %c0_26 = arith.constant 0 : index
    %16 = vector.load %arg14[%c0_24, %c1_25, %c0_26] : memref<2x18x64xf32, #tpu.memory_space<vmem>>, vector<2x16x64xf32>
    %17 = vector.shape_cast %16 : vector<2x16x64xf32> to vector<32x64xf32>
    %18 = arith.truncf %17 : vector<32x64xf32> to vector<32x64xbf16>
    %c1_27 = arith.constant 1 : index
    %c0_28 = arith.constant 0 : index
    %c0_29 = arith.constant 0 : index
    %19 = vector.load %arg1[%c1_27, %c0_28, %c0_29] : memref<3x64x128xbf16, #tpu.memory_space<vmem>>, vector<1x64x128xbf16>
    %20 = vector.shape_cast %19 : vector<1x64x128xbf16> to vector<64x128xbf16>
    %cst_30 = arith.constant dense<0.000000e+00> : vector<32x128xf32>
    %21 = tpu.matmul %18, %20, %cst_30 {dimension_numbers = #tpu.dot_dimension_numbers<[1], [0], [0], [1], [0, 0, 1, 1], [], []>} : vector<32x64xbf16>, vector<64x128xbf16>, vector<32x128xf32> -> vector<32x128xf32>
    %22 = arith.addf %15, %21 : vector<32x128xf32>
    %c0_31 = arith.constant 0 : index
    %c2 = arith.constant 2 : index
    %c0_32 = arith.constant 0 : index
    %23 = vector.load %arg14[%c0_31, %c2, %c0_32] : memref<2x18x64xf32, #tpu.memory_space<vmem>>, vector<2x16x64xf32>
    %24 = vector.shape_cast %23 : vector<2x16x64xf32> to vector<32x64xf32>
    %25 = arith.truncf %24 : vector<32x64xf32> to vector<32x64xbf16>
    %c2_33 = arith.constant 2 : index
    %c0_34 = arith.constant 0 : index
    %c0_35 = arith.constant 0 : index
    %26 = vector.load %arg1[%c2_33, %c0_34, %c0_35] : memref<3x64x128xbf16, #tpu.memory_space<vmem>>, vector<1x64x128xbf16>
    %27 = vector.shape_cast %26 : vector<1x64x128xbf16> to vector<64x128xbf16>
    %cst_36 = arith.constant dense<0.000000e+00> : vector<32x128xf32>
    %28 = tpu.matmul %25, %27, %cst_36 {dimension_numbers = #tpu.dot_dimension_numbers<[1], [0], [0], [1], [0, 0, 1, 1], [], []>} : vector<32x64xbf16>, vector<64x128xbf16>, vector<32x128xf32> -> vector<32x128xf32>
    %29 = arith.addf %22, %28 : vector<32x128xf32>
    %c0_37 = arith.constant 0 : index
    %c0_38 = arith.constant 0 : index
    %30 = vector.load %arg2[%c0_37, %c0_38] : memref<1x128xf32, #tpu.memory_space<vmem>>, vector<1x128xf32>
    %31 = vector.broadcast %30 : vector<1x128xf32> to vector<32x128xf32>
    %32 = arith.addf %29, %31 : vector<32x128xf32>
    %cst_39 = arith.constant 0.000000e+00 : f32
    %33 = vector.broadcast %cst_39 : f32 to vector<32x128xf32>
    %34 = arith.maximumf %32, %33 : vector<32x128xf32>
    %35 = vector.shape_cast %34 : vector<32x128xf32> to vector<2x16x128xf32>
    %c0_40 = arith.constant 0 : index
    %c1_41 = arith.constant 1 : index
    %c0_42 = arith.constant 0 : index
    %36 = vector.load %arg15[%c0_40, %c1_41, %c0_42] : memref<2x18x128xf32, #tpu.memory_space<vmem>>, vector<2x16x128xf32>
    tpu.vector_store %arg15[%c0_40, %c1_41, %c0_42], %35 {strides = array<i32>} : memref<2x18x128xf32, #tpu.memory_space<vmem>>, vector<2x16x128xf32>,
    %cst_43 = arith.constant 0.000000e+00 : f32
    %37 = vector.broadcast %cst_43 : f32 to vector<32x256xf32>
    %c0_44 = arith.constant 0 : index
    %c0_45 = arith.constant 0 : index
    %c0_46 = arith.constant 0 : index
    %38 = vector.load %arg15[%c0_44, %c0_45, %c0_46] : memref<2x18x128xf32, #tpu.memory_space<vmem>>, vector<2x16x128xf32>
    %39 = vector.shape_cast %38 : vector<2x16x128xf32> to vector<32x128xf32>
    %40 = arith.truncf %39 : vector<32x128xf32> to vector<32x128xbf16>
    %c0_47 = arith.constant 0 : index
    %c0_48 = arith.constant 0 : index
    %c0_49 = arith.constant 0 : index
    %41 = vector.load %arg3[%c0_47, %c0_48, %c0_49] : memref<3x128x256xbf16, #tpu.memory_space<vmem>>, vector<1x128x256xbf16>
    %42 = vector.shape_cast %41 : vector<1x128x256xbf16> to vector<128x256xbf16>
    %cst_50 = arith.constant dense<0.000000e+00> : vector<32x256xf32>
    %43 = tpu.matmul %40, %42, %cst_50 {dimension_numbers = #tpu.dot_dimension_numbers<[1], [0], [0], [1], [0, 0, 1, 1], [], []>} : vector<32x128xbf16>, vector<128x256xbf16>, vector<32x256xf32> -> vector<32x256xf32>
    %44 = arith.addf %37, %43 : vector<32x256xf32>
    %c0_51 = arith.constant 0 : index
    %c1_52 = arith.constant 1 : index
    %c0_53 = arith.constant 0 : index
    %45 = vector.load %arg15[%c0_51, %c1_52, %c0_53] : memref<2x18x128xf32, #tpu.memory_space<vmem>>, vector<2x16x128xf32>
    %46 = vector.shape_cast %45 : vector<2x16x128xf32> to vector<32x128xf32>
    %47 = arith.truncf %46 : vector<32x128xf32> to vector<32x128xbf16>
    %c1_54 = arith.constant 1 : index
    %c0_55 = arith.constant 0 : index
    %c0_56 = arith.constant 0 : index
    %48 = vector.load %arg3[%c1_54, %c0_55, %c0_56] : memref<3x128x256xbf16, #tpu.memory_space<vmem>>, vector<1x128x256xbf16>
    %49 = vector.shape_cast %48 : vector<1x128x256xbf16> to vector<128x256xbf16>
    %cst_57 = arith.constant dense<0.000000e+00> : vector<32x256xf32>
    %50 = tpu.matmul %47, %49, %cst_57 {dimension_numbers = #tpu.dot_dimension_numbers<[1], [0], [0], [1], [0, 0, 1, 1], [], []>} : vector<32x128xbf16>, vector<128x256xbf16>, vector<32x256xf32> -> vector<32x256xf32>
    %51 = arith.addf %44, %50 : vector<32x256xf32>
    %c0_58 = arith.constant 0 : index
    %c2_59 = arith.constant 2 : index
    %c0_60 = arith.constant 0 : index
    %52 = vector.load %arg15[%c0_58, %c2_59, %c0_60] : memref<2x18x128xf32, #tpu.memory_space<vmem>>, vector<2x16x128xf32>
    %53 = vector.shape_cast %52 : vector<2x16x128xf32> to vector<32x128xf32>
    %54 = arith.truncf %53 : vector<32x128xf32> to vector<32x128xbf16>
    %c2_61 = arith.constant 2 : index
    %c0_62 = arith.constant 0 : index
    %c0_63 = arith.constant 0 : index
    %55 = vector.load %arg3[%c2_61, %c0_62, %c0_63] : memref<3x128x256xbf16, #tpu.memory_space<vmem>>, vector<1x128x256xbf16>
    %56 = vector.shape_cast %55 : vector<1x128x256xbf16> to vector<128x256xbf16>
    %cst_64 = arith.constant dense<0.000000e+00> : vector<32x256xf32>
    %57 = tpu.matmul %54, %56, %cst_64 {dimension_numbers = #tpu.dot_dimension_numbers<[1], [0], [0], [1], [0, 0, 1, 1], [], []>} : vector<32x128xbf16>, vector<128x256xbf16>, vector<32x256xf32> -> vector<32x256xf32>
    %58 = arith.addf %51, %57 : vector<32x256xf32>
    %c0_65 = arith.constant 0 : index
    %c0_66 = arith.constant 0 : index
    %59 = vector.load %arg4[%c0_65, %c0_66] : memref<1x256xf32, #tpu.memory_space<vmem>>, vector<1x256xf32>
    %60 = vector.broadcast %59 : vector<1x256xf32> to vector<32x256xf32>
    %61 = arith.addf %58, %60 : vector<32x256xf32>
    %cst_67 = arith.constant 0.000000e+00 : f32
    %62 = vector.broadcast %cst_67 : f32 to vector<32x256xf32>
    %63 = arith.maximumf %61, %62 : vector<32x256xf32>
    %64 = vector.shape_cast %63 : vector<32x256xf32> to vector<2x16x256xf32>
    %c0_68 = arith.constant 0 : index
    %c0_69 = arith.constant 0 : index
    %c0_70 = arith.constant 0 : index
    %65 = vector.load %arg16[%c0_68, %c0_69, %c0_70] : memref<2x16x256xf32, #tpu.memory_space<vmem>>, vector<2x16x256xf32>
    tpu.vector_store %arg16[%c0_68, %c0_69, %c0_70], %64 {strides = array<i32>} : memref<2x16x256xf32, #tpu.memory_space<vmem>>, vector<2x16x256xf32>,
    tpu.wait_dma2 semaphore(%arg18 : memref<!tpu.dma_semaphore, #tpu.memory_space<semaphore_mem>>) src(%arg6 : memref<16x256x256xbf16, #tpu.memory_space<any>>) dst(%arg17 : memref<16x256x256xbf16, #tpu.memory_space<vmem>>)
    %c0_71 = arith.constant 0 : index
    %c0_72 = arith.constant 0 : index
    %66 = vector.load %arg5[%c0_71, %c0_72] : memref<2x1xf32, #tpu.memory_space<vmem>>, vector<2x1xf32>
    %c0_73 = arith.constant 0 : index
    %c0_74 = arith.constant 0 : index
    %67 = vector.load %arg7[%c0_73, %c0_74] : memref<1x256xf32, #tpu.memory_space<vmem>>, vector<1x256xf32>
    %68 = vector.broadcast %66 : vector<2x1xf32> to vector<2x256xf32>
    %69 = vector.broadcast %67 : vector<1x256xf32> to vector<2x256xf32>
    %70 = arith.mulf %68, %69 : vector<2x256xf32>
    %c0_75 = arith.constant 0 : index
    %c0_76 = arith.constant 0 : index
    %71 = vector.load %arg8[%c0_75, %c0_76] : memref<1x256xf32, #tpu.memory_space<vmem>>, vector<1x256xf32>
    %72 = vector.broadcast %71 : vector<1x256xf32> to vector<2x256xf32>
    %73 = arith.addf %70, %72 : vector<2x256xf32>
    %c0_77 = arith.constant 0 : index
    %c0_78 = arith.constant 0 : index
    %c0_79 = arith.constant 0 : index
    %74 = vector.load %arg16[%c0_77, %c0_78, %c0_79] : memref<2x16x256xf32, #tpu.memory_space<vmem>>, vector<2x1x256xf32>
    %75 = vector.shape_cast %74 : vector<2x1x256xf32> to vector<2x256xf32>
    %76 = arith.truncf %75 : vector<2x256xf32> to vector<2x256xbf16>
    %c0_80 = arith.constant 0 : index
    %c0_81 = arith.constant 0 : index
    %c0_82 = arith.constant 0 : index
    %77 = vector.load %arg17[%c0_80, %c0_81, %c0_82] : memref<16x256x256xbf16, #tpu.memory_space<vmem>>, vector<1x256x256xbf16>
    %78 = vector.shape_cast %77 : vector<1x256x256xbf16> to vector<256x256xbf16>
    %cst_83 = arith.constant dense<0.000000e+00> : vector<2x256xf32>
    %79 = tpu.matmul %76, %78, %cst_83 {dimension_numbers = #tpu.dot_dimension_numbers<[1], [0], [0], [1], [0, 0, 1, 1], [], []>} : vector<2x256xbf16>, vector<256x256xbf16>, vector<2x256xf32> -> vector<2x256xf32>
    %80 = arith.addf %73, %79 : vector<2x256xf32>
    %c0_84 = arith.constant 0 : index
    %c1_85 = arith.constant 1 : index
    %c0_86 = arith.constant 0 : index
    %81 = vector.load %arg16[%c0_84, %c1_85, %c0_86] : memref<2x16x256xf32, #tpu.memory_space<vmem>>, vector<2x1x256xf32>
    %82 = vector.shape_cast %81 : vector<2x1x256xf32> to vector<2x256xf32>
    %83 = arith.truncf %82 : vector<2x256xf32> to vector<2x256xbf16>
    %c1_87 = arith.constant 1 : index
    %c0_88 = arith.constant 0 : index
    %c0_89 = arith.constant 0 : index
    %84 = vector.load %arg17[%c1_87, %c0_88, %c0_89] : memref<16x256x256xbf16, #tpu.memory_space<vmem>>, vector<1x256x256xbf16>
    %85 = vector.shape_cast %84 : vector<1x256x256xbf16> to vector<256x256xbf16>
    %cst_90 = arith.constant dense<0.000000e+00> : vector<2x256xf32>
    %86 = tpu.matmul %83, %85, %cst_90 {dimension_numbers = #tpu.dot_dimension_numbers<[1], [0], [0], [1], [0, 0, 1, 1], [], []>} : vector<2x256xbf16>, vector<256x256xbf16>, vector<2x256xf32> -> vector<2x256xf32>
    %87 = arith.addf %80, %86 : vector<2x256xf32>
    %c0_91 = arith.constant 0 : index
    %c2_92 = arith.constant 2 : index
    %c0_93 = arith.constant 0 : index
    %88 = vector.load %arg16[%c0_91, %c2_92, %c0_93] : memref<2x16x256xf32, #tpu.memory_space<vmem>>, vector<2x1x256xf32>
    %89 = vector.shape_cast %88 : vector<2x1x256xf32> to vector<2x256xf32>
    %90 = arith.truncf %89 : vector<2x256xf32> to vector<2x256xbf16>
    %c2_94 = arith.constant 2 : index
    %c0_95 = arith.constant 0 : index
    %c0_96 = arith.constant 0 : index
    %91 = vector.load %arg17[%c2_94, %c0_95, %c0_96] : memref<16x256x256xbf16, #tpu.memory_space<vmem>>, vector<1x256x256xbf16>
    %92 = vector.shape_cast %91 : vector<1x256x256xbf16> to vector<256x256xbf16>
    %cst_97 = arith.constant dense<0.000000e+00> : vector<2x256xf32>
    %93 = tpu.matmul %90, %92, %cst_97 {dimension_numbers = #tpu.dot_dimension_numbers<[1], [0], [0], [1], [0, 0, 1, 1], [], []>} : vector<2x256xbf16>, vector<256x256xbf16>, vector<2x256xf32> -> vector<2x256xf32>
    %94 = arith.addf %87, %93 : vector<2x256xf32>
    %c0_98 = arith.constant 0 : index
    %c3 = arith.constant 3 : index
    %c0_99 = arith.constant 0 : index
    %95 = vector.load %arg16[%c0_98, %c3, %c0_99] : memref<2x16x256xf32, #tpu.memory_space<vmem>>, vector<2x1x256xf32>
    %96 = vector.shape_cast %95 : vector<2x1x256xf32> to vector<2x256xf32>
    %97 = arith.truncf %96 : vector<2x256xf32> to vector<2x256xbf16>
    %c3_100 = arith.constant 3 : index
    %c0_101 = arith.constant 0 : index
    %c0_102 = arith.constant 0 : index
    %98 = vector.load %arg17[%c3_100, %c0_101, %c0_102] : memref<16x256x256xbf16, #tpu.memory_space<vmem>>, vector<1x256x256xbf16>
    %99 = vector.shape_cast %98 : vector<1x256x256xbf16> to vector<256x256xbf16>
    %cst_103 = arith.constant dense<0.000000e+00> : vector<2x256xf32>
    %100 = tpu.matmul %97, %99, %cst_103 {dimension_numbers = #tpu.dot_dimension_numbers<[1], [0], [0], [1], [0, 0, 1, 1], [], []>} : vector<2x256xbf16>, vector<256x256xbf16>, vector<2x256xf32> -> vector<2x256xf32>
    %101 = arith.addf %94, %100 : vector<2x256xf32>
    %c0_104 = arith.constant 0 : index
    %c4 = arith.constant 4 : index
    %c0_105 = arith.constant 0 : index
    %102 = vector.load %arg16[%c0_104, %c4, %c0_105] : memref<2x16x256xf32, #tpu.memory_space<vmem>>, vector<2x1x256xf32>
    %103 = vector.shape_cast %102 : vector<2x1x256xf32> to vector<2x256xf32>
    %104 = arith.truncf %103 : vector<2x256xf32> to vector<2x256xbf16>
    %c4_106 = arith.constant 4 : index
    %c0_107 = arith.constant 0 : index
    %c0_108 = arith.constant 0 : index
    %105 = vector.load %arg17[%c4_106, %c0_107, %c0_108] : memref<16x256x256xbf16, #tpu.memory_space<vmem>>, vector<1x256x256xbf16>
    %106 = vector.shape_cast %105 : vector<1x256x256xbf16> to vector<256x256xbf16>
    %cst_109 = arith.constant dense<0.000000e+00> : vector<2x256xf32>
    %107 = tpu.matmul %104, %106, %cst_109 {dimension_numbers = #tpu.dot_dimension_numbers<[1], [0], [0], [1], [0, 0, 1, 1], [], []>} : vector<2x256xbf16>, vector<256x256xbf16>, vector<2x256xf32> -> vector<2x256xf32>
    %108 = arith.addf %101, %107 : vector<2x256xf32>
    %c0_110 = arith.constant 0 : index
    %c5 = arith.constant 5 : index
    %c0_111 = arith.constant 0 : index
    %109 = vector.load %arg16[%c0_110, %c5, %c0_111] : memref<2x16x256xf32, #tpu.memory_space<vmem>>, vector<2x1x256xf32>
    %110 = vector.shape_cast %109 : vector<2x1x256xf32> to vector<2x256xf32>
    %111 = arith.truncf %110 : vector<2x256xf32> to vector<2x256xbf16>
    %c5_112 = arith.constant 5 : index
    %c0_113 = arith.constant 0 : index
    %c0_114 = arith.constant 0 : index
    %112 = vector.load %arg17[%c5_112, %c0_113, %c0_114] : memref<16x256x256xbf16, #tpu.memory_space<vmem>>, vector<1x256x256xbf16>
    %113 = vector.shape_cast %112 : vector<1x256x256xbf16> to vector<256x256xbf16>
    %cst_115 = arith.constant dense<0.000000e+00> : vector<2x256xf32>
    %114 = tpu.matmul %111, %113, %cst_115 {dimension_numbers = #tpu.dot_dimension_numbers<[1], [0], [0], [1], [0, 0, 1, 1], [], []>} : vector<2x256xbf16>, vector<256x256xbf16>, vector<2x256xf32> -> vector<2x256xf32>
    %115 = arith.addf %108, %114 : vector<2x256xf32>
    %c0_116 = arith.constant 0 : index
    %c6 = arith.constant 6 : index
    %c0_117 = arith.constant 0 : index
    %116 = vector.load %arg16[%c0_116, %c6, %c0_117] : memref<2x16x256xf32, #tpu.memory_space<vmem>>, vector<2x1x256xf32>
    %117 = vector.shape_cast %116 : vector<2x1x256xf32> to vector<2x256xf32>
    %118 = arith.truncf %117 : vector<2x256xf32> to vector<2x256xbf16>
    %c6_118 = arith.constant 6 : index
    %c0_119 = arith.constant 0 : index
    %c0_120 = arith.constant 0 : index
    %119 = vector.load %arg17[%c6_118, %c0_119, %c0_120] : memref<16x256x256xbf16, #tpu.memory_space<vmem>>, vector<1x256x256xbf16>
    %120 = vector.shape_cast %119 : vector<1x256x256xbf16> to vector<256x256xbf16>
    %cst_121 = arith.constant dense<0.000000e+00> : vector<2x256xf32>
    %121 = tpu.matmul %118, %120, %cst_121 {dimension_numbers = #tpu.dot_dimension_numbers<[1], [0], [0], [1], [0, 0, 1, 1], [], []>} : vector<2x256xbf16>, vector<256x256xbf16>, vector<2x256xf32> -> vector<2x256xf32>
    %122 = arith.addf %115, %121 : vector<2x256xf32>
    %c0_122 = arith.constant 0 : index
    %c7 = arith.constant 7 : index
    %c0_123 = arith.constant 0 : index
    %123 = vector.load %arg16[%c0_122, %c7, %c0_123] : memref<2x16x256xf32, #tpu.memory_space<vmem>>, vector<2x1x256xf32>
    %124 = vector.shape_cast %123 : vector<2x1x256xf32> to vector<2x256xf32>
    %125 = arith.truncf %124 : vector<2x256xf32> to vector<2x256xbf16>
    %c7_124 = arith.constant 7 : index
    %c0_125 = arith.constant 0 : index
    %c0_126 = arith.constant 0 : index
    %126 = vector.load %arg17[%c7_124, %c0_125, %c0_126] : memref<16x256x256xbf16, #tpu.memory_space<vmem>>, vector<1x256x256xbf16>
    %127 = vector.shape_cast %126 : vector<1x256x256xbf16> to vector<256x256xbf16>
    %cst_127 = arith.constant dense<0.000000e+00> : vector<2x256xf32>
    %128 = tpu.matmul %125, %127, %cst_127 {dimension_numbers = #tpu.dot_dimension_numbers<[1], [0], [0], [1], [0, 0, 1, 1], [], []>} : vector<2x256xbf16>, vector<256x256xbf16>, vector<2x256xf32> -> vector<2x256xf32>
    %129 = arith.addf %122, %128 : vector<2x256xf32>
    %c0_128 = arith.constant 0 : index
    %c8 = arith.constant 8 : index
    %c0_129 = arith.constant 0 : index
    %130 = vector.load %arg16[%c0_128, %c8, %c0_129] : memref<2x16x256xf32, #tpu.memory_space<vmem>>, vector<2x1x256xf32>
    %131 = vector.shape_cast %130 : vector<2x1x256xf32> to vector<2x256xf32>
    %132 = arith.truncf %131 : vector<2x256xf32> to vector<2x256xbf16>
    %c8_130 = arith.constant 8 : index
    %c0_131 = arith.constant 0 : index
    %c0_132 = arith.constant 0 : index
    %133 = vector.load %arg17[%c8_130, %c0_131, %c0_132] : memref<16x256x256xbf16, #tpu.memory_space<vmem>>, vector<1x256x256xbf16>
    %134 = vector.shape_cast %133 : vector<1x256x256xbf16> to vector<256x256xbf16>
    %cst_133 = arith.constant dense<0.000000e+00> : vector<2x256xf32>
    %135 = tpu.matmul %132, %134, %cst_133 {dimension_numbers = #tpu.dot_dimension_numbers<[1], [0], [0], [1], [0, 0, 1, 1], [], []>} : vector<2x256xbf16>, vector<256x256xbf16>, vector<2x256xf32> -> vector<2x256xf32>
    %136 = arith.addf %129, %135 : vector<2x256xf32>
    %c0_134 = arith.constant 0 : index
    %c9 = arith.constant 9 : index
    %c0_135 = arith.constant 0 : index
    %137 = vector.load %arg16[%c0_134, %c9, %c0_135] : memref<2x16x256xf32, #tpu.memory_space<vmem>>, vector<2x1x256xf32>
    %138 = vector.shape_cast %137 : vector<2x1x256xf32> to vector<2x256xf32>
    %139 = arith.truncf %138 : vector<2x256xf32> to vector<2x256xbf16>
    %c9_136 = arith.constant 9 : index
    %c0_137 = arith.constant 0 : index
    %c0_138 = arith.constant 0 : index
    %140 = vector.load %arg17[%c9_136, %c0_137, %c0_138] : memref<16x256x256xbf16, #tpu.memory_space<vmem>>, vector<1x256x256xbf16>
    %141 = vector.shape_cast %140 : vector<1x256x256xbf16> to vector<256x256xbf16>
    %cst_139 = arith.constant dense<0.000000e+00> : vector<2x256xf32>
    %142 = tpu.matmul %139, %141, %cst_139 {dimension_numbers = #tpu.dot_dimension_numbers<[1], [0], [0], [1], [0, 0, 1, 1], [], []>} : vector<2x256xbf16>, vector<256x256xbf16>, vector<2x256xf32> -> vector<2x256xf32>
    %143 = arith.addf %136, %142 : vector<2x256xf32>
    %c0_140 = arith.constant 0 : index
    %c10 = arith.constant 10 : index
    %c0_141 = arith.constant 0 : index
    %144 = vector.load %arg16[%c0_140, %c10, %c0_141] : memref<2x16x256xf32, #tpu.memory_space<vmem>>, vector<2x1x256xf32>
    %145 = vector.shape_cast %144 : vector<2x1x256xf32> to vector<2x256xf32>
    %146 = arith.truncf %145 : vector<2x256xf32> to vector<2x256xbf16>
    %c10_142 = arith.constant 10 : index
    %c0_143 = arith.constant 0 : index
    %c0_144 = arith.constant 0 : index
    %147 = vector.load %arg17[%c10_142, %c0_143, %c0_144] : memref<16x256x256xbf16, #tpu.memory_space<vmem>>, vector<1x256x256xbf16>
    %148 = vector.shape_cast %147 : vector<1x256x256xbf16> to vector<256x256xbf16>
    %cst_145 = arith.constant dense<0.000000e+00> : vector<2x256xf32>
    %149 = tpu.matmul %146, %148, %cst_145 {dimension_numbers = #tpu.dot_dimension_numbers<[1], [0], [0], [1], [0, 0, 1, 1], [], []>} : vector<2x256xbf16>, vector<256x256xbf16>, vector<2x256xf32> -> vector<2x256xf32>
    %150 = arith.addf %143, %149 : vector<2x256xf32>
    %c0_146 = arith.constant 0 : index
    %c11 = arith.constant 11 : index
    %c0_147 = arith.constant 0 : index
    %151 = vector.load %arg16[%c0_146, %c11, %c0_147] : memref<2x16x256xf32, #tpu.memory_space<vmem>>, vector<2x1x256xf32>
    %152 = vector.shape_cast %151 : vector<2x1x256xf32> to vector<2x256xf32>
    %153 = arith.truncf %152 : vector<2x256xf32> to vector<2x256xbf16>
    %c11_148 = arith.constant 11 : index
    %c0_149 = arith.constant 0 : index
    %c0_150 = arith.constant 0 : index
    %154 = vector.load %arg17[%c11_148, %c0_149, %c0_150] : memref<16x256x256xbf16, #tpu.memory_space<vmem>>, vector<1x256x256xbf16>
    %155 = vector.shape_cast %154 : vector<1x256x256xbf16> to vector<256x256xbf16>
    %cst_151 = arith.constant dense<0.000000e+00> : vector<2x256xf32>
    %156 = tpu.matmul %153, %155, %cst_151 {dimension_numbers = #tpu.dot_dimension_numbers<[1], [0], [0], [1], [0, 0, 1, 1], [], []>} : vector<2x256xbf16>, vector<256x256xbf16>, vector<2x256xf32> -> vector<2x256xf32>
    %157 = arith.addf %150, %156 : vector<2x256xf32>
    %c0_152 = arith.constant 0 : index
    %c12 = arith.constant 12 : index
    %c0_153 = arith.constant 0 : index
    %158 = vector.load %arg16[%c0_152, %c12, %c0_153] : memref<2x16x256xf32, #tpu.memory_space<vmem>>, vector<2x1x256xf32>
    %159 = vector.shape_cast %158 : vector<2x1x256xf32> to vector<2x256xf32>
    %160 = arith.truncf %159 : vector<2x256xf32> to vector<2x256xbf16>
    %c12_154 = arith.constant 12 : index
    %c0_155 = arith.constant 0 : index
    %c0_156 = arith.constant 0 : index
    %161 = vector.load %arg17[%c12_154, %c0_155, %c0_156] : memref<16x256x256xbf16, #tpu.memory_space<vmem>>, vector<1x256x256xbf16>
    %162 = vector.shape_cast %161 : vector<1x256x256xbf16> to vector<256x256xbf16>
    %cst_157 = arith.constant dense<0.000000e+00> : vector<2x256xf32>
    %163 = tpu.matmul %160, %162, %cst_157 {dimension_numbers = #tpu.dot_dimension_numbers<[1], [0], [0], [1], [0, 0, 1, 1], [], []>} : vector<2x256xbf16>, vector<256x256xbf16>, vector<2x256xf32> -> vector<2x256xf32>
    %164 = arith.addf %157, %163 : vector<2x256xf32>
    %c0_158 = arith.constant 0 : index
    %c13 = arith.constant 13 : index
    %c0_159 = arith.constant 0 : index
    %165 = vector.load %arg16[%c0_158, %c13, %c0_159] : memref<2x16x256xf32, #tpu.memory_space<vmem>>, vector<2x1x256xf32>
    %166 = vector.shape_cast %165 : vector<2x1x256xf32> to vector<2x256xf32>
    %167 = arith.truncf %166 : vector<2x256xf32> to vector<2x256xbf16>
    %c13_160 = arith.constant 13 : index
    %c0_161 = arith.constant 0 : index
    %c0_162 = arith.constant 0 : index
    %168 = vector.load %arg17[%c13_160, %c0_161, %c0_162] : memref<16x256x256xbf16, #tpu.memory_space<vmem>>, vector<1x256x256xbf16>
    %169 = vector.shape_cast %168 : vector<1x256x256xbf16> to vector<256x256xbf16>
    %cst_163 = arith.constant dense<0.000000e+00> : vector<2x256xf32>
    %170 = tpu.matmul %167, %169, %cst_163 {dimension_numbers = #tpu.dot_dimension_numbers<[1], [0], [0], [1], [0, 0, 1, 1], [], []>} : vector<2x256xbf16>, vector<256x256xbf16>, vector<2x256xf32> -> vector<2x256xf32>
    %171 = arith.addf %164, %170 : vector<2x256xf32>
    %c0_164 = arith.constant 0 : index
    %c14 = arith.constant 14 : index
    %c0_165 = arith.constant 0 : index
    %172 = vector.load %arg16[%c0_164, %c14, %c0_165] : memref<2x16x256xf32, #tpu.memory_space<vmem>>, vector<2x1x256xf32>
    %173 = vector.shape_cast %172 : vector<2x1x256xf32> to vector<2x256xf32>
    %174 = arith.truncf %173 : vector<2x256xf32> to vector<2x256xbf16>
    %c14_166 = arith.constant 14 : index
    %c0_167 = arith.constant 0 : index
    %c0_168 = arith.constant 0 : index
    %175 = vector.load %arg17[%c14_166, %c0_167, %c0_168] : memref<16x256x256xbf16, #tpu.memory_space<vmem>>, vector<1x256x256xbf16>
    %176 = vector.shape_cast %175 : vector<1x256x256xbf16> to vector<256x256xbf16>
    %cst_169 = arith.constant dense<0.000000e+00> : vector<2x256xf32>
    %177 = tpu.matmul %174, %176, %cst_169 {dimension_numbers = #tpu.dot_dimension_numbers<[1], [0], [0], [1], [0, 0, 1, 1], [], []>} : vector<2x256xbf16>, vector<256x256xbf16>, vector<2x256xf32> -> vector<2x256xf32>
    %178 = arith.addf %171, %177 : vector<2x256xf32>
    %c0_170 = arith.constant 0 : index
    %c15 = arith.constant 15 : index
    %c0_171 = arith.constant 0 : index
    %179 = vector.load %arg16[%c0_170, %c15, %c0_171] : memref<2x16x256xf32, #tpu.memory_space<vmem>>, vector<2x1x256xf32>
    %180 = vector.shape_cast %179 : vector<2x1x256xf32> to vector<2x256xf32>
    %181 = arith.truncf %180 : vector<2x256xf32> to vector<2x256xbf16>
    %c15_172 = arith.constant 15 : index
    %c0_173 = arith.constant 0 : index
    %c0_174 = arith.constant 0 : index
    %182 = vector.load %arg17[%c15_172, %c0_173, %c0_174] : memref<16x256x256xbf16, #tpu.memory_space<vmem>>, vector<1x256x256xbf16>
    %183 = vector.shape_cast %182 : vector<1x256x256xbf16> to vector<256x256xbf16>
    %cst_175 = arith.constant dense<0.000000e+00> : vector<2x256xf32>
    %184 = tpu.matmul %181, %183, %cst_175 {dimension_numbers = #tpu.dot_dimension_numbers<[1], [0], [0], [1], [0, 0, 1, 1], [], []>} : vector<2x256xbf16>, vector<256x256xbf16>, vector<2x256xf32> -> vector<2x256xf32>
    %185 = arith.addf %178, %184 : vector<2x256xf32>
    %cst_176 = arith.constant 0.000000e+00 : f32
    %186 = vector.broadcast %cst_176 : f32 to vector<2x256xf32>
    %187 = arith.maximumf %185, %186 : vector<2x256xf32>
    %188 = arith.truncf %187 : vector<2x256xf32> to vector<2x256xbf16>
    %c0_177 = arith.constant 0 : index
    %c0_178 = arith.constant 0 : index
    %189 = vector.load %arg9[%c0_177, %c0_178] : memref<256x128xbf16, #tpu.memory_space<vmem>>, vector<256x128xbf16>
    %cst_179 = arith.constant dense<0.000000e+00> : vector<2x128xf32>
    %190 = tpu.matmul %188, %189, %cst_179 {dimension_numbers = #tpu.dot_dimension_numbers<[1], [0], [0], [1], [0, 0, 1, 1], [], []>} : vector<2x256xbf16>, vector<256x128xbf16>, vector<2x128xf32> -> vector<2x128xf32>
    %c0_180 = arith.constant 0 : index
    %c0_181 = arith.constant 0 : index
    %191 = vector.load %arg10[%c0_180, %c0_181] : memref<1x128xf32, #tpu.memory_space<vmem>>, vector<1x128xf32>
    %192 = vector.broadcast %191 : vector<1x128xf32> to vector<2x128xf32>
    %193 = arith.addf %190, %192 : vector<2x128xf32>
    %cst_182 = arith.constant 0.000000e+00 : f32
    %194 = vector.broadcast %cst_182 : f32 to vector<2x128xf32>
    %195 = arith.maximumf %193, %194 : vector<2x128xf32>
    %c0_183 = arith.constant 0 : index
    %c0_184 = arith.constant 0 : index
    %196 = vector.load %arg11[%c0_183, %c0_184] : memref<1x128xf32, #tpu.memory_space<vmem>>, vector<1x128xf32>
    %197 = vector.broadcast %196 : vector<1x128xf32> to vector<2x128xf32>
    %198 = arith.mulf %195, %197 : vector<2x128xf32>
    %cst_185 = arith.constant dense<0.000000e+00> : vector<2xf32>
    %199 = vector.multi_reduction <add>, %198, %cst_185 [1] : vector<2x128xf32> to vector<2xf32>
    %200 = vector.shape_cast %199 : vector<2xf32> to vector<2x1xf32>
    %c0_186 = arith.constant 0 : index
    %c0_187 = arith.constant 0 : index
    %201 = vector.load %arg12[%c0_186, %c0_187] : memref<1x1xf32, #tpu.memory_space<vmem>>, vector<1x1xf32>
    %202 = vector.broadcast %201 : vector<1x1xf32> to vector<2x1xf32>
    %203 = arith.addf %200, %202 : vector<2x1xf32>
    %c0_188 = arith.constant 0 : index
    %c0_189 = arith.constant 0 : index
    %204 = vector.load %arg13[%c0_188, %c0_189] : memref<2x1xf32, #tpu.memory_space<vmem>>, vector<2x1xf32>
    tpu.vector_store %arg13[%c0_188, %c0_189], %203 {strides = array<i32>} : memref<2x1xf32, #tpu.memory_space<vmem>>, vector<2x1xf32>,
    return
  }
}

</mosaic_0001>

<llo_original>
// kernel: cnn2d_forward.1
$region0: #{cnn2d_forward.1}
  #allocation0 [shape = 'u32[]', space=smem, size = 0x4, offset = 0x4, fixed_abs, tag = 'smem constant byte address 0x4 - core index']
  #allocation1 [shape = 'u32[72,128]{1,0:T(1,128)}', space=vmem, size = 0x9000, scoped, tag = 'internal scratch']
  #allocation2 [shape = 'f32[2,18,64]{2,1,0:T(8,128)}', space=vmem, size = 0x6000, scoped, tag = 'scratch operand']
  #allocation3 [shape = 'f32[2,18,128]{2,1,0:T(8,128)}', space=vmem, size = 0x6000, scoped, tag = 'scratch operand']
  #allocation4 [shape = 'f32[2,16,256]{2,1,0:T(8,128)}', space=vmem, size = 0x8000, scoped, tag = 'scratch operand']
  #allocation5 [shape = 'bf16[16,256,256]{2,1,0:T(8,128)(2,1)}', space=vmem, size = 0x200000, scoped, tag = 'scratch operand']
  #allocation6 [shape = 's32[1]{0}', space=sflag, size = 0x4, scoped, tag = 'scratch operand']
  #allocation7 [shape = 'f32[1,1]{1,0:T(1,128)S(1)}', space=vmem, size = 0x200, scoped, tag = 'scoped memory for cnn2d_forward.1']
  #allocation22 [shape = 's32[]', space=sflag, size = 0x4, offset = 0, fixed_abs, tag = 'sflag constant byte address 0x0 - dummy sync flag']
  #allocation23 [shape = 's32[]', space=sflag, size = 0x4, offset = 0, fixed_abs, tag = 'sflag constant byte address 0x0 - dummy sync flag']
  #allocation24 [shape = 'u32[]', space=smem, size = 0x4, offset = 0x44, fixed_abs, tag = 'smem constant byte address 0x44 - assertion arg 0']
  #allocation25 [shape = 'u32[]', space=smem, size = 0x4, offset = 0x48, fixed_abs, tag = 'smem constant byte address 0x48 - assertion arg 1']
  %s0 = inlined_call_operand.vmem [shape: f32[2,16,64], index: 0, kind: input, shape index: {}]
  %s1 = inlined_call_operand.hbm [shape: bf16[3,64,128], index: 1, kind: input, shape index: {}]
  %s2 = inlined_call_operand.hbm [shape: f32[1,128], index: 2, kind: input, shape index: {}]
  %s3 = inlined_call_operand.hbm [shape: bf16[3,128,256], index: 3, kind: input, shape index: {}]
  %s4 = inlined_call_operand.hbm [shape: f32[1,256], index: 4, kind: input, shape index: {}]
  %s5 = inlined_call_operand.vmem [shape: f32[2,1], index: 5, kind: input, shape index: {}]
  %s6 = inlined_call_operand.hbm [shape: bf16[16,256,256], index: 6, kind: input, shape index: {}]
  %s7 = inlined_call_operand.hbm [shape: f32[1,256], index: 7, kind: input, shape index: {}]
  %s8 = inlined_call_operand.hbm [shape: f32[1,256], index: 8, kind: input, shape index: {}]
  %s9 = inlined_call_operand.hbm [shape: bf16[256,128], index: 9, kind: input, shape index: {}]
  %s10 = inlined_call_operand.hbm [shape: f32[1,128], index: 10, kind: input, shape index: {}]
  %s11 = inlined_call_operand.hbm [shape: f32[1,128], index: 11, kind: input, shape index: {}]
  %s12 = inlined_call_operand.<no memory space> [shape: f32[1,1], index: 12, kind: input, shape index: {}]
  %s13 = inlined_call_operand.vmem [shape: f32[2,1], index: 13, kind: output, shape index: {}]
  %s14 = sld [smem:[#allocation0]]
  $region98: #{cnn2d_forward.1} parent=0
    _
  %s16 = ssub.s32 1, %s14
  %s17 = scalar_select 0, %s16, %s14
  %v18 = vstv %s12
  %19 = vst [vmem:[#allocation7] sm:$0x1] %v18
  $region1: #{cnn2d_forward.1} parent=0
    #allocation8 [shape = 'u8[49152]{0}', space=vmem, size = 0xc000, scoped, tag = 'input window, operand 1, single buffered']
    #allocation9 [shape = 's32[1]{0}', space=sflag, size = 0x4, scoped, tag = 'scoped memory for cnn2d_forward.1']
    #allocation10 [shape = 'u8[512]{0}', space=vmem, size = 0x400, scoped, tag = 'input window, operand 2, single buffered']
    #allocation11 [shape = 's32[1]{0}', space=sflag, size = 0x4, scoped, tag = 'scoped memory for cnn2d_forward.1']
    #allocation12 [shape = 'u8[196608]{0}', space=vmem, size = 0x30000, scoped, tag = 'input window, operand 3, single buffered']
    #allocation13 [shape = 'u8[1024]{0}', space=vmem, size = 0x400, scoped, tag = 'input window, operand 4, single buffered']
    #allocation14 [shape = 's32[1]{0}', space=sflag, size = 0x4, scoped, tag = 'scoped memory for cnn2d_forward.1']
    #allocation15 [shape = 'u8[1024]{0}', space=vmem, size = 0x400, scoped, tag = 'input window, operand 7, single buffered']
    #allocation16 [shape = 'u8[1024]{0}', space=vmem, size = 0x400, scoped, tag = 'input window, operand 8, single buffered']
    #allocation17 [shape = 's32[1]{0}', space=sflag, size = 0x4, scoped, tag = 'scoped memory for cnn2d_forward.1']
    #allocation18 [shape = 'u8[65536]{0}', space=vmem, size = 0x10000, scoped, tag = 'input window, operand 9, single buffered']
    #allocation19 [shape = 'u8[512]{0}', space=vmem, size = 0x400, scoped, tag = 'input window, operand 10, single buffered']
    #allocation20 [shape = 's32[1]{0}', space=sflag, size = 0x4, scoped, tag = 'scoped memory for cnn2d_forward.1']
    #allocation21 [shape = 'u8[512]{0}', space=vmem, size = 0x400, scoped, tag = 'input window, operand 11, single buffered']
    %20 = vsyncpa [#allocation9], 0
    %21 = vsyncpa [#allocation11], 0
    %22 = vsyncpa [#allocation14], 0
    %23 = vsyncpa [#allocation17], 0
    %24 = vsyncpa [#allocation20], 0
    // Predicated region
    $region2: #{cnn2d_forward.1} parent=1 // pred_check
      _
    $region3: #{cnn2d_forward.1} parent=1 // pred_check_branch
      %26 = sbr.rel (0) target = $region5
    $region4: #{cnn2d_forward.1} parent=1 // pred_region
      _
    $region5: #{cnn2d_forward.1} parent=1 // pred_fallthru
      _
    // Predicated region
    $region6: #{cnn2d_forward.1} parent=1 // pred_check
      _
    $region7: #{cnn2d_forward.1} parent=1 // pred_check_branch
      %28 = sbr.rel (0) target = $region9
    $region8: #{cnn2d_forward.1} parent=1 // pred_region
      %30 = vsyncadd [#allocation9], 0
      %s31 = sshll.u32 %s1, 4
      %s32 = int_to_ptr.hbm [resolvable:$true] %s31
      %s33 = sshll.u32 [#allocation8], 4
      %s34 = int_to_ptr.vmem [resolvable:$true] %s33
      %39 = dma.hbm_to_vmem [thread:$0]  %s32, 1536, %s34, [#allocation9], 64, 64, 4
    $region9: #{cnn2d_forward.1} parent=1 // pred_fallthru
      _
    // Predicated region
    $region10: #{cnn2d_forward.1} parent=1 // pred_check
      _
    $region11: #{cnn2d_forward.1} parent=1 // pred_check_branch
      %41 = sbr.rel (0) target = $region13
    $region12: #{cnn2d_forward.1} parent=1 // pred_region
      %43 = vsyncadd [#allocation11], 0
      %s45 = sshll.u32 %s2, 4
      %s46 = int_to_ptr.hbm [resolvable:$true] %s45
      %s47 = sshll.u32 [#allocation10], 4
      %s48 = int_to_ptr.vmem [resolvable:$true] %s47
      %50 = dma.hbm_to_vmem [thread:$0]  %s46, 16, %s48, [#allocation11]
    $region13: #{cnn2d_forward.1} parent=1 // pred_fallthru
      _
    // Predicated region
    $region14: #{cnn2d_forward.1} parent=1 // pred_check
      _
    $region15: #{cnn2d_forward.1} parent=1 // pred_check_branch
      %52 = sbr.rel (0) target = $region17
    $region16: #{cnn2d_forward.1} parent=1 // pred_region
      %54 = vsyncadd [#allocation11], 0
      %s55 = sshll.u32 %s3, 4
      %s56 = int_to_ptr.hbm [resolvable:$true] %s55
      %s57 = sshll.u32 [#allocation12], 4
      %s58 = int_to_ptr.vmem [resolvable:$true] %s57
      %63 = dma.hbm_to_vmem [thread:$0]  %s56, 6144, %s58, [#allocation11], 128, 128, 8
    $region17: #{cnn2d_forward.1} parent=1 // pred_fallthru
      _
    // Predicated region
    $region18: #{cnn2d_forward.1} parent=1 // pred_check
      _
    $region19: #{cnn2d_forward.1} parent=1 // pred_check_branch
      %65 = sbr.rel (0) target = $region21
    $region20: #{cnn2d_forward.1} parent=1 // pred_region
      %67 = vsyncadd [#allocation14], 0
      %s69 = sshll.u32 %s4, 4
      %s70 = int_to_ptr.hbm [resolvable:$true] %s69
      %s71 = sshll.u32 [#allocation13], 4
      %s72 = int_to_ptr.vmem [resolvable:$true] %s71
      %74 = dma.hbm_to_vmem [thread:$0]  %s70, 32, %s72, [#allocation14]
    $region21: #{cnn2d_forward.1} parent=1 // pred_fallthru
      _
    // Predicated region
    $region22: #{cnn2d_forward.1} parent=1 // pred_check
      _
    $region23: #{cnn2d_forward.1} parent=1 // pred_check_branch
      %76 = sbr.rel (0) target = $region25
    $region24: #{cnn2d_forward.1} parent=1 // pred_region
      _
    $region25: #{cnn2d_forward.1} parent=1 // pred_fallthru
      _
    // Predicated region
    $region26: #{cnn2d_forward.1} parent=1 // pred_check
      _
    $region27: #{cnn2d_forward.1} parent=1 // pred_check_branch
      %78 = sbr.rel (0) target = $region29
    $region28: #{cnn2d_forward.1} parent=1 // pred_region
      %80 = vsyncadd [#allocation14], 0
      %s82 = sshll.u32 %s7, 4
      %s83 = int_to_ptr.hbm [resolvable:$true] %s82
      %s84 = sshll.u32 [#allocation15], 4
      %s85 = int_to_ptr.vmem [resolvable:$true] %s84
      %87 = dma.hbm_to_vmem [thread:$0]  %s83, 32, %s85, [#allocation14]
    $region29: #{cnn2d_forward.1} parent=1 // pred_fallthru
      _
    // Predicated region
    $region30: #{cnn2d_forward.1} parent=1 // pred_check
      _
    $region31: #{cnn2d_forward.1} parent=1 // pred_check_branch
      %89 = sbr.rel (0) target = $region33
    $region32: #{cnn2d_forward.1} parent=1 // pred_region
      %91 = vsyncadd [#allocation17], 0
      %s93 = sshll.u32 %s8, 4
      %s94 = int_to_ptr.hbm [resolvable:$true] %s93
      %s95 = sshll.u32 [#allocation16], 4
      %s96 = int_to_ptr.vmem [resolvable:$true] %s95
      %98 = dma.hbm_to_vmem [thread:$0]  %s94, 32, %s96, [#allocation17]
    $region33: #{cnn2d_forward.1} parent=1 // pred_fallthru
      _
    // Predicated region
    $region34: #{cnn2d_forward.1} parent=1 // pred_check
      _
    $region35: #{cnn2d_forward.1} parent=1 // pred_check_branch
      %100 = sbr.rel (0) target = $region37
    $region36: #{cnn2d_forward.1} parent=1 // pred_region
      %102 = vsyncadd [#allocation17], 0
      %s103 = sshll.u32 %s9, 4
      %s104 = int_to_ptr.hbm [resolvable:$true] %s103
      %s105 = sshll.u32 [#allocation18], 4
      %s106 = int_to_ptr.vmem [resolvable:$true] %s105
      %111 = dma.hbm_to_vmem [thread:$0]  %s104, 2048, %s106, [#allocation17], 64, 64, 4
    $region37: #{cnn2d_forward.1} parent=1 // pred_fallthru
      _
    // Predicated region
    $region38: #{cnn2d_forward.1} parent=1 // pred_check
      _
    $region39: #{cnn2d_forward.1} parent=1 // pred_check_branch
      %113 = sbr.rel (0) target = $region41
    $region40: #{cnn2d_forward.1} parent=1 // pred_region
      %115 = vsyncadd [#allocation20], 0
      %s117 = sshll.u32 %s10, 4
      %s118 = int_to_ptr.hbm [resolvable:$true] %s117
      %s119 = sshll.u32 [#allocation19], 4
      %s120 = int_to_ptr.vmem [resolvable:$true] %s119
      %122 = dma.hbm_to_vmem [thread:$0]  %s118, 16, %s120, [#allocation20]
    $region41: #{cnn2d_forward.1} parent=1 // pred_fallthru
      _
    // Predicated region
    $region42: #{cnn2d_forward.1} parent=1 // pred_check
      _
    $region43: #{cnn2d_forward.1} parent=1 // pred_check_branch
      %124 = sbr.rel (0) target = $region45
    $region44: #{cnn2d_forward.1} parent=1 // pred_region
      %126 = vsyncadd [#allocation20], 0
      %s128 = sshll.u32 %s11, 4
      %s129 = int_to_ptr.hbm [resolvable:$true] %s128
      %s130 = sshll.u32 [#allocation21], 4
      %s131 = int_to_ptr.vmem [resolvable:$true] %s130
      %133 = dma.hbm_to_vmem [thread:$0]  %s129, 16, %s131, [#allocation20]
    $region45: #{cnn2d_forward.1} parent=1 // pred_fallthru
      _
    // Predicated region
    $region46: #{cnn2d_forward.1} parent=1 // pred_check
      _
    $region47: #{cnn2d_forward.1} parent=1 // pred_check_branch
      %135 = sbr.rel (0) target = $region49
    $region48: #{cnn2d_forward.1} parent=1 // pred_region
      _
    $region49: #{cnn2d_forward.1} parent=1 // pred_fallthru
      _
    // Predicated region
    $region50: #{cnn2d_forward.1} parent=1 // pred_check
      _
    $region51: #{cnn2d_forward.1} parent=1 // pred_check_branch
      %137 = sbr.rel (0) target = $region53
    $region52: #{cnn2d_forward.1} parent=1 // pred_region
      %139 = dma.done [#allocation9], 1536
    $region53: #{cnn2d_forward.1} parent=1 // pred_fallthru
      _
    // Predicated region
    $region54: #{cnn2d_forward.1} parent=1 // pred_check
      _
    $region55: #{cnn2d_forward.1} parent=1 // pred_check_branch
      %141 = sbr.rel (0) target = $region57
    $region56: #{cnn2d_forward.1} parent=1 // pred_region
      %143 = dma.done [#allocation11], 16
    $region57: #{cnn2d_forward.1} parent=1 // pred_fallthru
      _
    // Predicated region
    $region58: #{cnn2d_forward.1} parent=1 // pred_check
      _
    $region59: #{cnn2d_forward.1} parent=1 // pred_check_branch
      %145 = sbr.rel (0) target = $region61
    $region60: #{cnn2d_forward.1} parent=1 // pred_region
      %147 = dma.done [#allocation11], 6144
    $region61: #{cnn2d_forward.1} parent=1 // pred_fallthru
      _
    // Predicated region
    $region62: #{cnn2d_forward.1} parent=1 // pred_check
      _
    $region63: #{cnn2d_forward.1} parent=1 // pred_check_branch
      %149 = sbr.rel (0) target = $region65
    $region64: #{cnn2d_forward.1} parent=1 // pred_region
      %151 = dma.done [#allocation14], 32
    $region65: #{cnn2d_forward.1} parent=1 // pred_fallthru
      _
    // Predicated region
    $region66: #{cnn2d_forward.1} parent=1 // pred_check
      _
    $region67: #{cnn2d_forward.1} parent=1 // pred_check_branch
      %153 = sbr.rel (0) target = $region69
    $region68: #{cnn2d_forward.1} parent=1 // pred_region
      %155 = dma.done [#allocation14], 32
    $region69: #{cnn2d_forward.1} parent=1 // pred_fallthru
      _
    // Predicated region
    $region70: #{cnn2d_forward.1} parent=1 // pred_check
      _
    $region71: #{cnn2d_forward.1} parent=1 // pred_check_branch
      %157 = sbr.rel (0) target = $region73
    $region72: #{cnn2d_forward.1} parent=1 // pred_region
      %159 = dma.done [#allocation17], 32
    $region73: #{cnn2d_forward.1} parent=1 // pred_fallthru
      _
    // Predicated region
    $region74: #{cnn2d_forward.1} parent=1 // pred_check
      _
    $region75: #{cnn2d_forward.1} parent=1 // pred_check_branch
      %161 = sbr.rel (0) target = $region77
    $region76: #{cnn2d_forward.1} parent=1 // pred_region
      %163 = dma.done [#allocation17], 2048
    $region77: #{cnn2d_forward.1} parent=1 // pred_fallthru
      _
    // Predicated region
    $region78: #{cnn2d_forward.1} parent=1 // pred_check
      _
    $region79: #{cnn2d_forward.1} parent=1 // pred_check_branch
      %165 = sbr.rel (0) target = $region81
    $region80: #{cnn2d_forward.1} parent=1 // pred_region
      %167 = dma.done [#allocation20], 16
    $region81: #{cnn2d_forward.1} parent=1 // pred_fallthru
      _
    // Predicated region
    $region82: #{cnn2d_forward.1} parent=1 // pred_check
      _
    $region83: #{cnn2d_forward.1} parent=1 // pred_check_branch
      %169 = sbr.rel (0) target = $region85
    $region84: #{cnn2d_forward.1} parent=1 // pred_region
      %171 = dma.done [#allocation20], 16
    $region85: #{cnn2d_forward.1} parent=1 // pred_fallthru
      _
    // Predicated region
    $region86: #{cnn2d_forward.1} parent=1 // pred_check
      _
    $region87: #{cnn2d_forward.1} parent=1 // pred_check_branch
      %174 = sbr.rel target = $region89
    $region88: #{cnn2d_forward.1} parent=1 // pred_region
      %175 = sst [smem:[#allocation24]] [#allocation23]
      %176 = sst [smem:[#allocation25]] [#allocation22]
    $region89: #{cnn2d_forward.1} parent=1 // pred_fallthru
      _
    %178 = shalt.err (0)
    %s180 = sshll.u32 %s6, 4
    %s181 = int_to_ptr.hbm [resolvable:$true] %s180
    %s182 = sshll.u32 [#allocation5], 4
    %s183 = int_to_ptr.vmem [resolvable:$true] %s182
    %185 = dma.hbm_to_vmem [thread:$0]  %s181, 65536, %s183, [#allocation6]
    %vm186 = vcmask 516096
    %187 = vst.msk [vmem:[#allocation2] sm:$0x1] %vm186, 0.0
    %188 = vst.msk [vmem:[#allocation2 + $0x18] sm:$0x1] %vm186, 0.0
    %189 = vst.msk [vmem:[#allocation2 + $0x11] sm:$0x1] %vm186, 0.0
    %190 = vst.msk [vmem:[#allocation2 + $0x29] sm:$0x1] %vm186, 0.0
    %191 = vst [vmem:[#allocation3] sm:$0x1] 0.0
    %192 = vst [vmem:[#allocation3 + $0x18] sm:$0x1] 0.0
    %193 = vst [vmem:[#allocation3 + $0x11] sm:$0x1] 0.0
    %194 = vst [vmem:[#allocation3 + $0x29] sm:$0x1] 0.0
    %v195 = vld [vmem:[%s0] sm:$0xff]
    %v196 = vld [vmem:[%s0 + $0x8] sm:$0xff]
    %v197 = vld [vmem:[%s0 + $0x10] sm:$0xff]
    %v198 = vld [vmem:[%s0 + $0x18] sm:$0xff]
    %vm199 = vcmask 523264
    %200 = vst.msk [vmem:[#allocation2 + $0x1] sm:$0xff] %vm199, %v195
    %201 = vst.msk [vmem:[#allocation2 + $0x9] sm:$0xff] %vm199, %v196
    %202 = vst.msk [vmem:[#allocation2 + $0x19] sm:$0xff] %vm199, %v197
    %203 = vst.msk [vmem:[#allocation2 + $0x21] sm:$0xff] %vm199, %v198
    %v204 = vld [vmem:[#allocation2] sm:$0xff]
    %v205 = vld [vmem:[#allocation2 + $0x8] sm:$0xff]
    %v206 = vld [vmem:[#allocation2 + $0x18] sm:$0xff]
    %v207 = vld [vmem:[#allocation2 + $0x20] sm:$0xff]
    %v208 = vpack.c.bf16 %v205, %v204
    %v209 = vpack.c.bf16 %v207, %v206
    %v210 = vld [vmem:[#allocation8] sm:$0xf]
    %v211 = vld [vmem:[#allocation8 + $0x4] sm:$0xf]
    %v212 = vld [vmem:[#allocation8 + $0x8] sm:$0xf]
    %v213 = vld [vmem:[#allocation8 + $0xc] sm:$0xf]
    %v214 = vld [vmem:[#allocation8 + $0x10] sm:$0xf]
    %v215 = vld [vmem:[#allocation8 + $0x14] sm:$0xf]
    %v216 = vld [vmem:[#allocation8 + $0x18] sm:$0xf]
    %v217 = vld [vmem:[#allocation8 + $0x1c] sm:$0xf]
    %v218 = vld [vmem:[#allocation2 + $0x1] sm:$0xff]
    %v219 = vld [vmem:[#allocation2 + $0x9] sm:$0xff]
    %v220 = vld [vmem:[#allocation2 + $0x19] sm:$0xff]
    %v221 = vld [vmem:[#allocation2 + $0x21] sm:$0xff]
    %v222 = vpack.c.bf16 %v219, %v218
    %v223 = vpack.c.bf16 %v221, %v220
    %s224 = scalar_lea.vmem [#allocation8], 32
    %v225 = vld [vmem:[%s224] sm:$0xf]
    %v226 = vld [vmem:[%s224 + $0x4] sm:$0xf]
    %v227 = vld [vmem:[%s224 + $0x8] sm:$0xf]
    %v228 = vld [vmem:[%s224 + $0xc] sm:$0xf]
    %v229 = vld [vmem:[%s224 + $0x10] sm:$0xf]
    %v230 = vld [vmem:[%s224 + $0x14] sm:$0xf]
    %v231 = vld [vmem:[%s224 + $0x18] sm:$0xf]
    %v232 = vld [vmem:[%s224 + $0x1c] sm:$0xf]
    %v241 = vunpack.c.l.b16 %v225
    %v242 = vunpack.c.l.b16 %v226
    %v243 = vunpack.c.l.b16 %v227
    %v244 = vunpack.c.l.b16 %v228
    %v245 = vunpack.c.l.b16 %v229
    %v246 = vunpack.c.l.b16 %v230
    %v247 = vunpack.c.l.b16 %v231
    %v248 = vunpack.c.l.b16 %v232
    %v249 = vpack.c.b16 %v242, %v241
    %v250 = vpack.c.b16 %v244, %v243
    %v251 = vpack.c.b16 %v246, %v245
    %v252 = vpack.c.b16 %v248, %v247
    %v258 = vsel %vm199, %v222, 0
    %v261 = vsel %vm199, %v223, 0
    %263 = vmatpush.bf16.msra.mxu0 0
    %264 = vmatpush.bf16.msra.mxu0 0
    %265 = vmatpush.bf16.msra.mxu0 0
    %266 = vmatpush.bf16.msra.mxu0 0
    %267 = vmatpush.bf16.msra.mxu0 %v252
    %268 = vmatpush.bf16.msra.mxu0 %v251
    %269 = vmatpush.bf16.msra.mxu0 %v250
    %270 = vmatpush.bf16.msra.mxu0 %v249
    %271 = vmatmul.bf16.gmra.mxu0 %v258
    %v272 = vpop.f32.mrf.mxu0
    %v273 = vadd.f32 0.0, %v272
    %v274 = vpop.f32.mrf.mxu0
    %v275 = vadd.f32 0.0, %v274
    %276 = vmatmul.bf16.gmra.mxu0 %v261
    %v277 = vpop.f32.mrf.mxu0
    %v278 = vadd.f32 0.0, %v277
    %v279 = vpop.f32.mrf.mxu0
    %v280 = vadd.f32 0.0, %v279
    %281 = vdwg.mxu0
    %v290 = vunpack.c.l.b16 %v210
    %v291 = vunpack.c.l.b16 %v211
    %v292 = vunpack.c.l.b16 %v212
    %v293 = vunpack.c.l.b16 %v213
    %v294 = vunpack.c.l.b16 %v214
    %v295 = vunpack.c.l.b16 %v215
    %v296 = vunpack.c.l.b16 %v216
    %v297 = vunpack.c.l.b16 %v217
    %v298 = vpack.c.b16 %v291, %v290
    %v299 = vpack.c.b16 %v293, %v292
    %v300 = vpack.c.b16 %v295, %v294
    %v301 = vpack.c.b16 %v297, %v296
    %v307 = vsel %vm199, %v208, 0
    %v310 = vsel %vm199, %v209, 0
    %312 = vmatpush.bf16.msra.mxu0 0
    %313 = vmatpush.bf16.msra.mxu0 0
    %314 = vmatpush.bf16.msra.mxu0 0
    %315 = vmatpush.bf16.msra.mxu0 0
    %316 = vmatpush.bf16.msra.mxu0 %v301
    %317 = vmatpush.bf16.msra.mxu0 %v300
    %318 = vmatpush.bf16.msra.mxu0 %v299
    %319 = vmatpush.bf16.msra.mxu0 %v298
    %320 = vmatmul.bf16.gmra.mxu0 %v307
    %v321 = vpop.f32.mrf.mxu0
    %v322 = vadd.f32 %v273, %v321
    %v323 = vpop.f32.mrf.mxu0
    %v324 = vadd.f32 %v275, %v323
    %325 = vmatmul.bf16.gmra.mxu0 %v310
    %v326 = vpop.f32.mrf.mxu0
    %v327 = vadd.f32 %v278, %v326
    %v328 = vpop.f32.mrf.mxu0
    %v329 = vadd.f32 %v280, %v328
    %330 = vdwg.mxu0
    %v331 = vld [vmem:[#allocation2 + $0x2] sm:$0xff]
    %v332 = vld [vmem:[#allocation2 + $0xa] sm:$0xff]
    %v333 = vld [vmem:[#allocation2 + $0x1a] sm:$0xff]
    %v334 = vld [vmem:[#allocation2 + $0x22] sm:$0xff]
    %v335 = vpack.c.bf16 %v332, %v331
    %v336 = vpack.c.bf16 %v334, %v333
    %s337 = scalar_lea.vmem [#allocation8], 64
    %v338 = vld [vmem:[%s337] sm:$0xf]
    %v339 = vld [vmem:[%s337 + $0x4] sm:$0xf]
    %v340 = vld [vmem:[%s337 + $0x8] sm:$0xf]
    %v341 = vld [vmem:[%s337 + $0xc] sm:$0xf]
    %v342 = vld [vmem:[%s337 + $0x10] sm:$0xf]
    %v343 = vld [vmem:[%s337 + $0x14] sm:$0xf]
    %v344 = vld [vmem:[%s337 + $0x18] sm:$0xf]
    %v345 = vld [vmem:[%s337 + $0x1c] sm:$0xf]
    %v354 = vunpack.c.l.b16 %v338
    %v355 = vunpack.c.l.b16 %v339
    %v356 = vunpack.c.l.b16 %v340
    %v357 = vunpack.c.l.b16 %v341
    %v358 = vunpack.c.l.b16 %v342
    %v359 = vunpack.c.l.b16 %v343
    %v360 = vunpack.c.l.b16 %v344
    %v361 = vunpack.c.l.b16 %v345
    %v362 = vpack.c.b16 %v355, %v354
    %v363 = vpack.c.b16 %v357, %v356
    %v364 = vpack.c.b16 %v359, %v358
    %v365 = vpack.c.b16 %v361, %v360
    %v371 = vsel %vm199, %v335, 0
    %v374 = vsel %vm199, %v336, 0
    %376 = vmatpush.bf16.msra.mxu0 0
    %377 = vmatpush.bf16.msra.mxu0 0
    %378 = vmatpush.bf16.msra.mxu0 0
    %379 = vmatpush.bf16.msra.mxu0 0
    %380 = vmatpush.bf16.msra.mxu0 %v365
    %381 = vmatpush.bf16.msra.mxu0 %v364
    %382 = vmatpush.bf16.msra.mxu0 %v363
    %383 = vmatpush.bf16.msra.mxu0 %v362
    %384 = vmatmul.bf16.gmra.mxu0 %v371
    %v385 = vpop.f32.mrf.mxu0
    %v386 = vadd.f32 0.0, %v385
    %v387 = vpop.f32.mrf.mxu0
    %v388 = vadd.f32 0.0, %v387
    %389 = vmatmul.bf16.gmra.mxu0 %v374
    %v390 = vpop.f32.mrf.mxu0
    %v391 = vadd.f32 0.0, %v390
    %v392 = vpop.f32.mrf.mxu0
    %v393 = vadd.f32 0.0, %v392
    %394 = vdwg.mxu0
    %v395 = vadd.f32 %v322, %v386
    %v396 = vadd.f32 %v324, %v388
    %v397 = vadd.f32 %v327, %v391
    %v398 = vadd.f32 %v329, %v393
    %v399 = vld [vmem:[#allocation10] sm:$0x1]
    %v401 = vperm.slane %v399, 0
    %v403 = vadd.f32 %v395, %v401
    %v404 = vadd.f32 %v396, %v401
    %v405 = vadd.f32 %v397, %v401
    %v406 = vadd.f32 %v398, %v401
    %v407 = vmax.f32 %v403, 0.0
    %v408 = vmax.f32 %v404, 0.0
    %v409 = vmax.f32 %v405, 0.0
    %v410 = vmax.f32 %v406, 0.0
    %411 = vst [vmem:[#allocation3 + $0x1] sm:$0xff] %v407
    %412 = vst [vmem:[#allocation3 + $0x9] sm:$0xff] %v408
    %413 = vst [vmem:[#allocation3 + $0x19] sm:$0xff] %v409
    %414 = vst [vmem:[#allocation3 + $0x21] sm:$0xff] %v410
    %v415 = vld [vmem:[#allocation3] sm:$0xff]
    %v416 = vld [vmem:[#allocation3 + $0x8] sm:$0xff]
    %v417 = vld [vmem:[#allocation3 + $0x18] sm:$0xff]
    %v418 = vld [vmem:[#allocation3 + $0x20] sm:$0xff]
    %v419 = vpack.c.bf16 %v416, %v415
    %v420 = vpack.c.bf16 %v418, %v417
    %v421 = vld [vmem:[#allocation12] sm:$0xff]
    %v422 = vld [vmem:[#allocation12 + $0x8] sm:$0xff]
    %v423 = vld [vmem:[#allocation12 + $0x10] sm:$0xff]
    %v424 = vld [vmem:[#allocation12 + $0x18] sm:$0xff]
    %v425 = vld [vmem:[#allocation12 + $0x20] sm:$0xff]
    %v426 = vld [vmem:[#allocation12 + $0x28] sm:$0xff]
    %v427 = vld [vmem:[#allocation12 + $0x30] sm:$0xff]
    %v428 = vld [vmem:[#allocation12 + $0x38] sm:$0xff]
    %v429 = vld [vmem:[#allocation12 + $0x40] sm:$0xff]
    %v430 = vld [vmem:[#allocation12 + $0x48] sm:$0xff]
    %v431 = vld [vmem:[#allocation12 + $0x50] sm:$0xff]
    %v432 = vld [vmem:[#allocation12 + $0x58] sm:$0xff]
    %v433 = vld [vmem:[#allocation12 + $0x60] sm:$0xff]
    %v434 = vld [vmem:[#allocation12 + $0x68] sm:$0xff]
    %v435 = vld [vmem:[#allocation12 + $0x70] sm:$0xff]
    %v436 = vld [vmem:[#allocation12 + $0x78] sm:$0xff]
    %v437 = vld [vmem:[#allocation3 + $0x1] sm:$0xff]
    %v438 = vld [vmem:[#allocation3 + $0x9] sm:$0xff]
    %v439 = vld [vmem:[#allocation3 + $0x19] sm:$0xff]
    %v440 = vld [vmem:[#allocation3 + $0x21] sm:$0xff]
    %v441 = vpack.c.bf16 %v438, %v437
    %v442 = vpack.c.bf16 %v440, %v439
    %s443 = scalar_lea.vmem [#allocation12], 128
    %v444 = vld [vmem:[%s443] sm:$0xff]
    %v445 = vld [vmem:[%s443 + $0x8] sm:$0xff]
    %v446 = vld [vmem:[%s443 + $0x10] sm:$0xff]
    %v447 = vld [vmem:[%s443 + $0x18] sm:$0xff]
    %v448 = vld [vmem:[%s443 + $0x20] sm:$0xff]
    %v449 = vld [vmem:[%s443 + $0x28] sm:$0xff]
    %v450 = vld [vmem:[%s443 + $0x30] sm:$0xff]
    %v451 = vld [vmem:[%s443 + $0x38] sm:$0xff]
    %v452 = vld [vmem:[%s443 + $0x40] sm:$0xff]
    %v453 = vld [vmem:[%s443 + $0x48] sm:$0xff]
    %v454 = vld [vmem:[%s443 + $0x50] sm:$0xff]
    %v455 = vld [vmem:[%s443 + $0x58] sm:$0xff]
    %v456 = vld [vmem:[%s443 + $0x60] sm:$0xff]
    %v457 = vld [vmem:[%s443 + $0x68] sm:$0xff]
    %v458 = vld [vmem:[%s443 + $0x70] sm:$0xff]
    %v459 = vld [vmem:[%s443 + $0x78] sm:$0xff]
    %v476 = vunpack.c.l.b16 %v444
    %v477 = vunpack.c.h.b16 %v444
    %v478 = vunpack.c.l.b16 %v445
    %v479 = vunpack.c.h.b16 %v445
    %v480 = vunpack.c.l.b16 %v446
    %v481 = vunpack.c.h.b16 %v446
    %v482 = vunpack.c.l.b16 %v447
    %v483 = vunpack.c.h.b16 %v447
    %v484 = vunpack.c.l.b16 %v448
    %v485 = vunpack.c.h.b16 %v448
    %v486 = vunpack.c.l.b16 %v449
    %v487 = vunpack.c.h.b16 %v449
    %v488 = vunpack.c.l.b16 %v450
    %v489 = vunpack.c.h.b16 %v450
    %v490 = vunpack.c.l.b16 %v451
    %v491 = vunpack.c.h.b16 %v451
    %v492 = vunpack.c.l.b16 %v452
    %v493 = vunpack.c.h.b16 %v452
    %v494 = vunpack.c.l.b16 %v453
    %v495 = vunpack.c.h.b16 %v453
    %v496 = vunpack.c.l.b16 %v454
    %v497 = vunpack.c.h.b16 %v454
    %v498 = vunpack.c.l.b16 %v455
    %v499 = vunpack.c.h.b16 %v455
    %v500 = vunpack.c.l.b16 %v456
    %v501 = vunpack.c.h.b16 %v456
    %v502 = vunpack.c.l.b16 %v457
    %v503 = vunpack.c.h.b16 %v457
    %v504 = vunpack.c.l.b16 %v458
    %v505 = vunpack.c.h.b16 %v458
    %v506 = vunpack.c.l.b16 %v459
    %v507 = vunpack.c.h.b16 %v459
    %v508 = vpack.c.b16 %v478, %v476
    %v509 = vpack.c.b16 %v479, %v477
    %v510 = vpack.c.b16 %v482, %v480
    %v511 = vpack.c.b16 %v483, %v481
    %v512 = vpack.c.b16 %v486, %v484
    %v513 = vpack.c.b16 %v487, %v485
    %v514 = vpack.c.b16 %v490, %v488
    %v515 = vpack.c.b16 %v491, %v489
    %v516 = vpack.c.b16 %v494, %v492
    %v517 = vpack.c.b16 %v495, %v493
    %v518 = vpack.c.b16 %v498, %v496
    %v519 = vpack.c.b16 %v499, %v497
    %v520 = vpack.c.b16 %v502, %v500
    %v521 = vpack.c.b16 %v503, %v501
    %v522 = vpack.c.b16 %v506, %v504
    %v523 = vpack.c.b16 %v507, %v505
    %540 = vmatpush.bf16.msra.mxu0 %v522
    %541 = vmatpush.bf16.msra.mxu0 %v520
    %542 = vmatpush.bf16.msra.mxu0 %v518
    %543 = vmatpush.bf16.msra.mxu0 %v516
    %544 = vmatpush.bf16.msra.mxu0 %v514
    %545 = vmatpush.bf16.msra.mxu0 %v512
    %546 = vmatpush.bf16.msra.mxu0 %v510
    %547 = vmatpush.bf16.msra.mxu0 %v508
    %548 = vmatmul.bf16.gmra.mxu0 %v441
    %v549 = vpop.f32.mrf.mxu0
    %v550 = vadd.f32 0.0, %v549
    %v551 = vpop.f32.mrf.mxu0
    %v552 = vadd.f32 0.0, %v551
    %553 = vmatmul.bf16.gmra.mxu0 %v442
    %v554 = vpop.f32.mrf.mxu0
    %v555 = vadd.f32 0.0, %v554
    %v556 = vpop.f32.mrf.mxu0
    %v557 = vadd.f32 0.0, %v556
    %558 = vdwg.mxu0
    %559 = vmatpush.bf16.msra.mxu0 %v523
    %560 = vmatpush.bf16.msra.mxu0 %v521
    %561 = vmatpush.bf16.msra.mxu0 %v519
    %562 = vmatpush.bf16.msra.mxu0 %v517
    %563 = vmatpush.bf16.msra.mxu0 %v515
    %564 = vmatpush.bf16.msra.mxu0 %v513
    %565 = vmatpush.bf16.msra.mxu0 %v511
    %566 = vmatpush.bf16.msra.mxu0 %v509
    %567 = vmatmul.bf16.gmra.mxu0 %v441
    %v568 = vpop.f32.mrf.mxu0
    %v569 = vadd.f32 0.0, %v568
    %v570 = vpop.f32.mrf.mxu0
    %v571 = vadd.f32 0.0, %v570
    %572 = vmatmul.bf16.gmra.mxu0 %v442
    %v573 = vpop.f32.mrf.mxu0
    %v574 = vadd.f32 0.0, %v573
    %v575 = vpop.f32.mrf.mxu0
    %v576 = vadd.f32 0.0, %v575
    %577 = vdwg.mxu0
    %v594 = vunpack.c.l.b16 %v421
    %v595 = vunpack.c.h.b16 %v421
    %v596 = vunpack.c.l.b16 %v422
    %v597 = vunpack.c.h.b16 %v422
    %v598 = vunpack.c.l.b16 %v423
    %v599 = vunpack.c.h.b16 %v423
    %v600 = vunpack.c.l.b16 %v424
    %v601 = vunpack.c.h.b16 %v424
    %v602 = vunpack.c.l.b16 %v425
    %v603 = vunpack.c.h.b16 %v425
    %v604 = vunpack.c.l.b16 %v426
    %v605 = vunpack.c.h.b16 %v426
    %v606 = vunpack.c.l.b16 %v427
    %v607 = vunpack.c.h.b16 %v427
    %v608 = vunpack.c.l.b16 %v428
    %v609 = vunpack.c.h.b16 %v428
    %v610 = vunpack.c.l.b16 %v429
    %v611 = vunpack.c.h.b16 %v429
    %v612 = vunpack.c.l.b16 %v430
    %v613 = vunpack.c.h.b16 %v430
    %v614 = vunpack.c.l.b16 %v431
    %v615 = vunpack.c.h.b16 %v431
    %v616 = vunpack.c.l.b16 %v432
    %v617 = vunpack.c.h.b16 %v432
    %v618 = vunpack.c.l.b16 %v433
    %v619 = vunpack.c.h.b16 %v433
    %v620 = vunpack.c.l.b16 %v434
    %v621 = vunpack.c.h.b16 %v434
    %v622 = vunpack.c.l.b16 %v435
    %v623 = vunpack.c.h.b16 %v435
    %v624 = vunpack.c.l.b16 %v436
    %v625 = vunpack.c.h.b16 %v436
    %v626 = vpack.c.b16 %v596, %v594
    %v627 = vpack.c.b16 %v597, %v595
    %v628 = vpack.c.b16 %v600, %v598
    %v629 = vpack.c.b16 %v601, %v599
    %v630 = vpack.c.b16 %v604, %v602
    %v631 = vpack.c.b16 %v605, %v603
    %v632 = vpack.c.b16 %v608, %v606
    %v633 = vpack.c.b16 %v609, %v607
    %v634 = vpack.c.b16 %v612, %v610
    %v635 = vpack.c.b16 %v613, %v611
    %v636 = vpack.c.b16 %v616, %v614
    %v637 = vpack.c.b16 %v617, %v615
    %v638 = vpack.c.b16 %v620, %v618
    %v639 = vpack.c.b16 %v621, %v619
    %v640 = vpack.c.b16 %v624, %v622
    %v641 = vpack.c.b16 %v625, %v623
    %658 = vmatpush.bf16.msra.mxu0 %v640
    %659 = vmatpush.bf16.msra.mxu0 %v638
    %660 = vmatpush.bf16.msra.mxu0 %v636
    %661 = vmatpush.bf16.msra.mxu0 %v634
    %662 = vmatpush.bf16.msra.mxu0 %v632
    %663 = vmatpush.bf16.msra.mxu0 %v630
    %664 = vmatpush.bf16.msra.mxu0 %v628
    %665 = vmatpush.bf16.msra.mxu0 %v626
    %666 = vmatmul.bf16.gmra.mxu0 %v419
    %v667 = vpop.f32.mrf.mxu0
    %v668 = vadd.f32 %v550, %v667
    %v669 = vpop.f32.mrf.mxu0
    %v670 = vadd.f32 %v552, %v669
    %671 = vmatmul.bf16.gmra.mxu0 %v420
    %v672 = vpop.f32.mrf.mxu0
    %v673 = vadd.f32 %v555, %v672
    %v674 = vpop.f32.mrf.mxu0
    %v675 = vadd.f32 %v557, %v674
    %676 = vdwg.mxu0
    %677 = vmatpush.bf16.msra.mxu0 %v641
    %678 = vmatpush.bf16.msra.mxu0 %v639
    %679 = vmatpush.bf16.msra.mxu0 %v637
    %680 = vmatpush.bf16.msra.mxu0 %v635
    %681 = vmatpush.bf16.msra.mxu0 %v633
    %682 = vmatpush.bf16.msra.mxu0 %v631
    %683 = vmatpush.bf16.msra.mxu0 %v629
    %684 = vmatpush.bf16.msra.mxu0 %v627
    %685 = vmatmul.bf16.gmra.mxu0 %v419
    %v686 = vpop.f32.mrf.mxu0
    %v687 = vadd.f32 %v569, %v686
    %v688 = vpop.f32.mrf.mxu0
    %v689 = vadd.f32 %v571, %v688
    %690 = vmatmul.bf16.gmra.mxu0 %v420
    %v691 = vpop.f32.mrf.mxu0
    %v692 = vadd.f32 %v574, %v691
    %v693 = vpop.f32.mrf.mxu0
    %v694 = vadd.f32 %v576, %v693
    %695 = vdwg.mxu0
    %v696 = vld [vmem:[#allocation3 + $0x2] sm:$0xff]
    %v697 = vld [vmem:[#allocation3 + $0xa] sm:$0xff]
    %v698 = vld [vmem:[#allocation3 + $0x1a] sm:$0xff]
    %v699 = vld [vmem:[#allocation3 + $0x22] sm:$0xff]
    %v700 = vpack.c.bf16 %v697, %v696
    %v701 = vpack.c.bf16 %v699, %v698
    %s702 = scalar_lea.vmem [#allocation12], 256
    %v703 = vld [vmem:[%s702] sm:$0xff]
    %v704 = vld [vmem:[%s702 + $0x8] sm:$0xff]
    %v705 = vld [vmem:[%s702 + $0x10] sm:$0xff]
    %v706 = vld [vmem:[%s702 + $0x18] sm:$0xff]
    %v707 = vld [vmem:[%s702 + $0x20] sm:$0xff]
    %v708 = vld [vmem:[%s702 + $0x28] sm:$0xff]
    %v709 = vld [vmem:[%s702 + $0x30] sm:$0xff]
    %v710 = vld [vmem:[%s702 + $0x38] sm:$0xff]
    %v711 = vld [vmem:[%s702 + $0x40] sm:$0xff]
    %v712 = vld [vmem:[%s702 + $0x48] sm:$0xff]
    %v713 = vld [vmem:[%s702 + $0x50] sm:$0xff]
    %v714 = vld [vmem:[%s702 + $0x58] sm:$0xff]
    %v715 = vld [vmem:[%s702 + $0x60] sm:$0xff]
    %v716 = vld [vmem:[%s702 + $0x68] sm:$0xff]
    %v717 = vld [vmem:[%s702 + $0x70] sm:$0xff]
    %v718 = vld [vmem:[%s702 + $0x78] sm:$0xff]
    %v735 = vunpack.c.l.b16 %v703
    %v736 = vunpack.c.h.b16 %v703
    %v737 = vunpack.c.l.b16 %v704
    %v738 = vunpack.c.h.b16 %v704
    %v739 = vunpack.c.l.b16 %v705
    %v740 = vunpack.c.h.b16 %v705
    %v741 = vunpack.c.l.b16 %v706
    %v742 = vunpack.c.h.b16 %v706
    %v743 = vunpack.c.l.b16 %v707
    %v744 = vunpack.c.h.b16 %v707
    %v745 = vunpack.c.l.b16 %v708
    %v746 = vunpack.c.h.b16 %v708
    %v747 = vunpack.c.l.b16 %v709
    %v748 = vunpack.c.h.b16 %v709
    %v749 = vunpack.c.l.b16 %v710
    %v750 = vunpack.c.h.b16 %v710
    %v751 = vunpack.c.l.b16 %v711
    %v752 = vunpack.c.h.b16 %v711
    %v753 = vunpack.c.l.b16 %v712
    %v754 = vunpack.c.h.b16 %v712
    %v755 = vunpack.c.l.b16 %v713
    %v756 = vunpack.c.h.b16 %v713
    %v757 = vunpack.c.l.b16 %v714
    %v758 = vunpack.c.h.b16 %v714
    %v759 = vunpack.c.l.b16 %v715
    %v760 = vunpack.c.h.b16 %v715
    %v761 = vunpack.c.l.b16 %v716
    %v762 = vunpack.c.h.b16 %v716
    %v763 = vunpack.c.l.b16 %v717
    %v764 = vunpack.c.h.b16 %v717
    %v765 = vunpack.c.l.b16 %v718
    %v766 = vunpack.c.h.b16 %v718
    %v767 = vpack.c.b16 %v737, %v735
    %v768 = vpack.c.b16 %v738, %v736
    %v769 = vpack.c.b16 %v741, %v739
    %v770 = vpack.c.b16 %v742, %v740
    %v771 = vpack.c.b16 %v745, %v743
    %v772 = vpack.c.b16 %v746, %v744
    %v773 = vpack.c.b16 %v749, %v747
    %v774 = vpack.c.b16 %v750, %v748
    %v775 = vpack.c.b16 %v753, %v751
    %v776 = vpack.c.b16 %v754, %v752
    %v777 = vpack.c.b16 %v757, %v755
    %v778 = vpack.c.b16 %v758, %v756
    %v779 = vpack.c.b16 %v761, %v759
    %v780 = vpack.c.b16 %v762, %v760
    %v781 = vpack.c.b16 %v765, %v763
    %v782 = vpack.c.b16 %v766, %v764
    %799 = vmatpush.bf16.msra.mxu0 %v781
    %800 = vmatpush.bf16.msra.mxu0 %v779
    %801 = vmatpush.bf16.msra.mxu0 %v777
    %802 = vmatpush.bf16.msra.mxu0 %v775
    %803 = vmatpush.bf16.msra.mxu0 %v773
    %804 = vmatpush.bf16.msra.mxu0 %v771
    %805 = vmatpush.bf16.msra.mxu0 %v769
    %806 = vmatpush.bf16.msra.mxu0 %v767
    %807 = vmatmul.bf16.gmra.mxu0 %v700
    %v808 = vpop.f32.mrf.mxu0
    %v809 = vadd.f32 0.0, %v808
    %v810 = vpop.f32.mrf.mxu0
    %v811 = vadd.f32 0.0, %v810
    %812 = vmatmul.bf16.gmra.mxu0 %v701
    %v813 = vpop.f32.mrf.mxu0
    %v814 = vadd.f32 0.0, %v813
    %v815 = vpop.f32.mrf.mxu0
    %v816 = vadd.f32 0.0, %v815
    %817 = vdwg.mxu0
    %818 = vmatpush.bf16.msra.mxu0 %v782
    %819 = vmatpush.bf16.msra.mxu0 %v780
    %820 = vmatpush.bf16.msra.mxu0 %v778
    %821 = vmatpush.bf16.msra.mxu0 %v776
    %822 = vmatpush.bf16.msra.mxu0 %v774
    %823 = vmatpush.bf16.msra.mxu0 %v772
    %824 = vmatpush.bf16.msra.mxu0 %v770
    %825 = vmatpush.bf16.msra.mxu0 %v768
    %826 = vmatmul.bf16.gmra.mxu0 %v700
    %v827 = vpop.f32.mrf.mxu0
    %v828 = vadd.f32 0.0, %v827
    %v829 = vpop.f32.mrf.mxu0
    %v830 = vadd.f32 0.0, %v829
    %831 = vmatmul.bf16.gmra.mxu0 %v701
    %v832 = vpop.f32.mrf.mxu0
    %v833 = vadd.f32 0.0, %v832
    %v834 = vpop.f32.mrf.mxu0
    %v835 = vadd.f32 0.0, %v834
    %836 = vdwg.mxu0
    %v837 = vadd.f32 %v668, %v809
    %v838 = vadd.f32 %v687, %v828
    %v839 = vadd.f32 %v670, %v811
    %v840 = vadd.f32 %v689, %v830
    %v841 = vadd.f32 %v673, %v814
    %v842 = vadd.f32 %v692, %v833
    %v843 = vadd.f32 %v675, %v816
    %v844 = vadd.f32 %v694, %v835
    %v845 = vld [vmem:[#allocation13] sm:$0x3]
    %v847 = vperm.slane %v845, 0
    %v848 = vperm.slane %v845, 1
    %v851 = vadd.f32 %v837, %v847
    %v852 = vadd.f32 %v838, %v848
    %v853 = vadd.f32 %v839, %v847
    %v854 = vadd.f32 %v840, %v848
    %v855 = vadd.f32 %v841, %v847
    %v856 = vadd.f32 %v842, %v848
    %v857 = vadd.f32 %v843, %v847
    %v858 = vadd.f32 %v844, %v848
    %v859 = vmax.f32 %v851, 0.0
    %v860 = vmax.f32 %v852, 0.0
    %v861 = vmax.f32 %v853, 0.0
    %v862 = vmax.f32 %v854, 0.0
    %v863 = vmax.f32 %v855, 0.0
    %v864 = vmax.f32 %v856, 0.0
    %v865 = vmax.f32 %v857, 0.0
    %v866 = vmax.f32 %v858, 0.0
    %867 = vst [vmem:[#allocation4] sm:$0xff] %v859
    %868 = vst [vmem:[#allocation4 + $0x8] sm:$0xff] %v860
    %869 = vst [vmem:[#allocation4 + $0x10] sm:$0xff] %v861
    %870 = vst [vmem:[#allocation4 + $0x18] sm:$0xff] %v862
    %871 = vst [vmem:[#allocation4 + $0x20] sm:$0xff] %v863
    %872 = vst [vmem:[#allocation4 + $0x28] sm:$0xff] %v864
    %873 = vst [vmem:[#allocation4 + $0x30] sm:$0xff] %v865
    %874 = vst [vmem:[#allocation4 + $0x38] sm:$0xff] %v866
    %s875 = smul.u32 4, 16
    %s876 = smul.u32 %s875, 32
    %s877 = smul.u32 %s876, 2
    %s878 = sshll.u32 %s877, 4
    %879 = dma.done [#allocation6], %s878
    %v880 = vld [vmem:[%s5] sm:$0x3]
    %v881 = vld [vmem:[#allocation15] sm:$0x3]
    %883 = vset.pattern.permute.xlu0 0
    %884 = vperm.xlu0 %883, %v880
    %v885 = vpop.permute.xlu0 %884
    %v888 = vperm.slane %v881, 0
    %v889 = vperm.slane %v881, 1
    %v892 = vmul.f32 %v885, %v888
    %v893 = vmul.f32 %v885, %v889
    %v894 = vld [vmem:[#allocation16] sm:$0x3]
    %v896 = vperm.slane %v894, 0
    %v897 = vperm.slane %v894, 1
    %v900 = vadd.f32 %v892, %v896
    %v901 = vadd.f32 %v893, %v897
    %v902 = vld [vmem:[#allocation4] ss:$8 sm:$0x3]
    %s903 = scalar_lea.vmem [#allocation4], 32
    %v904 = vld [vmem:[%s903] ss:$8 sm:$0x3]
    %v907 = vperm.slane %v902, 0
    %v908 = vperm.slane %v902, 1
    %v909 = vperm.slane %v904, 0
    %v910 = vperm.slane %v904, 1
    %v915 = vpack.c.bf16 %v907, %v907
    %v916 = vpack.c.bf16 %v908, %v908
    %v917 = vpack.c.bf16 %v909, %v909
    %v918 = vpack.c.bf16 %v910, %v910
    %v919 = vld [vmem:[#allocation5] sm:$0xff]
    %v920 = vld [vmem:[#allocation5 + $0x8] sm:$0xff]
    %v921 = vld [vmem:[#allocation5 + $0x10] sm:$0xff]
    %v922 = vld [vmem:[#allocation5 + $0x18] sm:$0xff]
    %v923 = vld [vmem:[#allocation5 + $0x20] sm:$0xff]
    %v924 = vld [vmem:[#allocation5 + $0x28] sm:$0xff]
    %v925 = vld [vmem:[#allocation5 + $0x30] sm:$0xff]
    %v926 = vld [vmem:[#allocation5 + $0x38] sm:$0xff]
    %v927 = vld [vmem:[#allocation5 + $0x40] sm:$0xff]
    %v928 = vld [vmem:[#allocation5 + $0x48] sm:$0xff]
    %v929 = vld [vmem:[#allocation5 + $0x50] sm:$0xff]
    %v930 = vld [vmem:[#allocation5 + $0x58] sm:$0xff]
    %v931 = vld [vmem:[#allocation5 + $0x60] sm:$0xff]
    %v932 = vld [vmem:[#allocation5 + $0x68] sm:$0xff]
    %v933 = vld [vmem:[#allocation5 + $0x70] sm:$0xff]
    %v934 = vld [vmem:[#allocation5 + $0x78] sm:$0xff]
    %v935 = vld [vmem:[#allocation5 + $0x80] sm:$0xff]
    %v936 = vld [vmem:[#allocation5 + $0x88] sm:$0xff]
    %v937 = vld [vmem:[#allocation5 + $0x90] sm:$0xff]
    %v938 = vld [vmem:[#allocation5 + $0x98] sm:$0xff]
    %v939 = vld [vmem:[#allocation5 + $0xa0] sm:$0xff]
    %v940 = vld [vmem:[#allocation5 + $0xa8] sm:$0xff]
    %v941 = vld [vmem:[#allocation5 + $0xb0] sm:$0xff]
    %v942 = vld [vmem:[#allocation5 + $0xb8] sm:$0xff]
    %v943 = vld [vmem:[#allocation5 + $0xc0] sm:$0xff]
    %v944 = vld [vmem:[#allocation5 + $0xc8] sm:$0xff]
    %v945 = vld [vmem:[#allocation5 + $0xd0] sm:$0xff]
    %v946 = vld [vmem:[#allocation5 + $0xd8] sm:$0xff]
    %v947 = vld [vmem:[#allocation5 + $0xe0] sm:$0xff]
    %v948 = vld [vmem:[#allocation5 + $0xe8] sm:$0xff]
    %v949 = vld [vmem:[#allocation5 + $0xf0] sm:$0xff]
    %v950 = vld [vmem:[#allocation5 + $0xf8] sm:$0xff]
    %v955 = vunpack.c.l.b16 %v915
    %v956 = vunpack.c.l.b16 %v916
    %v957 = vunpack.c.l.b16 %v917
    %v958 = vunpack.c.l.b16 %v918
    %v959 = vrot.slane %v957, 7
    %vm960 = vcmask 1041409
    %v961 = vsel %vm960, %v959, %v955
    %v962 = vrot.slane %v958, 7
    %v963 = vsel %vm960, %v962, %v956
    %v964 = vpack.c.b16 %v961, %v961
    %v965 = vpack.c.b16 %v963, %v963
    %v1000 = vunpack.c.l.b16 %v919
    %v1001 = vunpack.c.h.b16 %v919
    %v1002 = vunpack.c.l.b16 %v920
    %v1003 = vunpack.c.h.b16 %v920
    %v1004 = vunpack.c.l.b16 %v921
    %v1005 = vunpack.c.h.b16 %v921
    %v1006 = vunpack.c.l.b16 %v922
    %v1007 = vunpack.c.h.b16 %v922
    %v1008 = vunpack.c.l.b16 %v923
    %v1009 = vunpack.c.h.b16 %v923
    %v1010 = vunpack.c.l.b16 %v924
    %v1011 = vunpack.c.h.b16 %v924
    %v1012 = vunpack.c.l.b16 %v925
    %v1013 = vunpack.c.h.b16 %v925
    %v1014 = vunpack.c.l.b16 %v926
    %v1015 = vunpack.c.h.b16 %v926
    %v1016 = vunpack.c.l.b16 %v927
    %v1017 = vunpack.c.h.b16 %v927
    %v1018 = vunpack.c.l.b16 %v928
    %v1019 = vunpack.c.h.b16 %v928
    %v1020 = vunpack.c.l.b16 %v929
    %v1021 = vunpack.c.h.b16 %v929
    %v1022 = vunpack.c.l.b16 %v930
    %v1023 = vunpack.c.h.b16 %v930
    %v1024 = vunpack.c.l.b16 %v931
    %v1025 = vunpack.c.h.b16 %v931
    %v1026 = vunpack.c.l.b16 %v932
    %v1027 = vunpack.c.h.b16 %v932
    %v1028 = vunpack.c.l.b16 %v933
    %v1029 = vunpack.c.h.b16 %v933
    %v1030 = vunpack.c.l.b16 %v934
    %v1031 = vunpack.c.h.b16 %v934
    %v1032 = vunpack.c.l.b16 %v935
    %v1033 = vunpack.c.h.b16 %v935
    %v1034 = vunpack.c.l.b16 %v936
    %v1035 = vunpack.c.h.b16 %v936
    %v1036 = vunpack.c.l.b16 %v937
    %v1037 = vunpack.c.h.b16 %v937
    %v1038 = vunpack.c.l.b16 %v938
    %v1039 = vunpack.c.h.b16 %v938
    %v1040 = vunpack.c.l.b16 %v939
    %v1041 = vunpack.c.h.b16 %v939
    %v1042 = vunpack.c.l.b16 %v940
    %v1043 = vunpack.c.h.b16 %v940
    %v1044 = vunpack.c.l.b16 %v941
    %v1045 = vunpack.c.h.b16 %v941
    %v1046 = vunpack.c.l.b16 %v942
    %v1047 = vunpack.c.h.b16 %v942
    %v1048 = vunpack.c.l.b16 %v943
    %v1049 = vunpack.c.h.b16 %v943
    %v1050 = vunpack.c.l.b16 %v944
    %v1051 = vunpack.c.h.b16 %v944
    %v1052 = vunpack.c.l.b16 %v945
    %v1053 = vunpack.c.h.b16 %v945
    %v1054 = vunpack.c.l.b16 %v946
    %v1055 = vunpack.c.h.b16 %v946
    %v1056 = vunpack.c.l.b16 %v947
    %v1057 = vunpack.c.h.b16 %v947
    %v1058 = vunpack.c.l.b16 %v948
    %v1059 = vunpack.c.h.b16 %v948
    %v1060 = vunpack.c.l.b16 %v949
    %v1061 = vunpack.c.h.b16 %v949
    %v1062 = vunpack.c.l.b16 %v950
    %v1063 = vunpack.c.h.b16 %v950
    %v1064 = vpack.c.b16 %v1002, %v1000
    %v1065 = vpack.c.b16 %v1003, %v1001
    %v1066 = vpack.c.b16 %v1006, %v1004
    %v1067 = vpack.c.b16 %v1007, %v1005
    %v1068 = vpack.c.b16 %v1010, %v1008
    %v1069 = vpack.c.b16 %v1011, %v1009
    %v1070 = vpack.c.b16 %v1014, %v1012
    %v1071 = vpack.c.b16 %v1015, %v1013
    %v1072 = vpack.c.b16 %v1018, %v1016
    %v1073 = vpack.c.b16 %v1019, %v1017
    %v1074 = vpack.c.b16 %v1022, %v1020
    %v1075 = vpack.c.b16 %v1023, %v1021
    %v1076 = vpack.c.b16 %v1026, %v1024
    %v1077 = vpack.c.b16 %v1027, %v1025
    %v1078 = vpack.c.b16 %v1030, %v1028
    %v1079 = vpack.c.b16 %v1031, %v1029
    %v1080 = vpack.c.b16 %v1034, %v1032
    %v1081 = vpack.c.b16 %v1035, %v1033
    %v1082 = vpack.c.b16 %v1038, %v1036
    %v1083 = vpack.c.b16 %v1039, %v1037
    %v1084 = vpack.c.b16 %v1042, %v1040
    %v1085 = vpack.c.b16 %v1043, %v1041
    %v1086 = vpack.c.b16 %v1046, %v1044
    %v1087 = vpack.c.b16 %v1047, %v1045
    %v1088 = vpack.c.b16 %v1050, %v1048
    %v1089 = vpack.c.b16 %v1051, %v1049
    %v1090 = vpack.c.b16 %v1054, %v1052
    %v1091 = vpack.c.b16 %v1055, %v1053
    %v1092 = vpack.c.b16 %v1058, %v1056
    %v1093 = vpack.c.b16 %v1059, %v1057
    %v1094 = vpack.c.b16 %v1062, %v1060
    %v1095 = vpack.c.b16 %v1063, %v1061
    %1128 = vmatpush.bf16.msra.mxu0 %v1078
    %1129 = vmatpush.bf16.msra.mxu0 %v1076
    %1130 = vmatpush.bf16.msra.mxu0 %v1074
    %1131 = vmatpush.bf16.msra.mxu0 %v1072
    %1132 = vmatpush.bf16.msra.mxu0 %v1070
    %1133 = vmatpush.bf16.msra.mxu0 %v1068
    %1134 = vmatpush.bf16.msra.mxu0 %v1066
    %1135 = vmatpush.bf16.msra.mxu0 %v1064
    %1136 = vmatmul.bf16.gmra.mxu0 %v964
    %v1137 = vpop.f32.mrf.mxu0
    %v1138 = vadd.f32 0.0, %v1137
    %v1139 = vpop.f32.mrf.mxu0
    %1140 = vdwg.mxu0
    %1141 = vmatpush.bf16.msra.mxu0 %v1094
    %1142 = vmatpush.bf16.msra.mxu0 %v1092
    %1143 = vmatpush.bf16.msra.mxu0 %v1090
    %1144 = vmatpush.bf16.msra.mxu0 %v1088
    %1145 = vmatpush.bf16.msra.mxu0 %v1086
    %1146 = vmatpush.bf16.msra.mxu0 %v1084
    %1147 = vmatpush.bf16.msra.mxu0 %v1082
    %1148 = vmatpush.bf16.msra.mxu0 %v1080
    %1149 = vmatmul.bf16.gmra.mxu0 %v965
    %v1150 = vpop.f32.mrf.mxu0
    %v1151 = vadd.f32 %v1138, %v1150
    %v1152 = vpop.f32.mrf.mxu0
    %1153 = vdwg.mxu0
    %1154 = vmatpush.bf16.msra.mxu0 %v1079
    %1155 = vmatpush.bf16.msra.mxu0 %v1077
    %1156 = vmatpush.bf16.msra.mxu0 %v1075
    %1157 = vmatpush.bf16.msra.mxu0 %v1073
    %1158 = vmatpush.bf16.msra.mxu0 %v1071
    %1159 = vmatpush.bf16.msra.mxu0 %v1069
    %1160 = vmatpush.bf16.msra.mxu0 %v1067
    %1161 = vmatpush.bf16.msra.mxu0 %v1065
    %1162 = vmatmul.bf16.gmra.mxu0 %v964
    %v1163 = vpop.f32.mrf.mxu0
    %v1164 = vadd.f32 0.0, %v1163
    %v1165 = vpop.f32.mrf.mxu0
    %1166 = vdwg.mxu0
    %1167 = vmatpush.bf16.msra.mxu0 %v1095
    %1168 = vmatpush.bf16.msra.mxu0 %v1093
    %1169 = vmatpush.bf16.msra.mxu0 %v1091
    %1170 = vmatpush.bf16.msra.mxu0 %v1089
    %1171 = vmatpush.bf16.msra.mxu0 %v1087
    %1172 = vmatpush.bf16.msra.mxu0 %v1085
    %1173 = vmatpush.bf16.msra.mxu0 %v1083
    %1174 = vmatpush.bf16.msra.mxu0 %v1081
    %1175 = vmatmul.bf16.gmra.mxu0 %v965
    %v1176 = vpop.f32.mrf.mxu0
    %v1177 = vadd.f32 %v1164, %v1176
    %v1178 = vpop.f32.mrf.mxu0
    %1179 = vdwg.mxu0
    %v1180 = vadd.f32 %v900, %v1151
    %v1181 = vadd.f32 %v901, %v1177
    %s1182 = scalar_lea.vmem [#allocation4], 1
    %v1183 = vld [vmem:[%s1182] ss:$8 sm:$0x3]
    %s1184 = scalar_lea.vmem [#allocation4], 33
    %v1185 = vld [vmem:[%s1184] ss:$8 sm:$0x3]
    %v1188 = vperm.slane %v1183, 0
    %v1189 = vperm.slane %v1183, 1
    %v1190 = vperm.slane %v1185, 0
    %v1191 = vperm.slane %v1185, 1
    %v1196 = vpack.c.bf16 %v1188, %v1188
    %v1197 = vpack.c.bf16 %v1189, %v1189
    %v1198 = vpack.c.bf16 %v1190, %v1190
    %v1199 = vpack.c.bf16 %v1191, %v1191
    %s1200 = scalar_lea.vmem [#allocation5], 256
    %v1201 = vld [vmem:[%s1200] sm:$0xff]
    %v1202 = vld [vmem:[%s1200 + $0x8] sm:$0xff]
    %v1203 = vld [vmem:[%s1200 + $0x10] sm:$0xff]
    %v1204 = vld [vmem:[%s1200 + $0x18] sm:$0xff]
    %v1205 = vld [vmem:[%s1200 + $0x20] sm:$0xff]
    %v1206 = vld [vmem:[%s1200 + $0x28] sm:$0xff]
    %v1207 = vld [vmem:[%s1200 + $0x30] sm:$0xff]
    %v1208 = vld [vmem:[%s1200 + $0x38] sm:$0xff]
    %v1209 = vld [vmem:[%s1200 + $0x40] sm:$0xff]
    %v1210 = vld [vmem:[%s1200 + $0x48] sm:$0xff]
    %v1211 = vld [vmem:[%s1200 + $0x50] sm:$0xff]
    %v1212 = vld [vmem:[%s1200 + $0x58] sm:$0xff]
    %v1213 = vld [vmem:[%s1200 + $0x60] sm:$0xff]
    %v1214 = vld [vmem:[%s1200 + $0x68] sm:$0xff]
    %v1215 = vld [vmem:[%s1200 + $0x70] sm:$0xff]
    %v1216 = vld [vmem:[%s1200 + $0x78] sm:$0xff]
    %v1217 = vld [vmem:[%s1200 + $0x80] sm:$0xff]
    %v1218 = vld [vmem:[%s1200 + $0x88] sm:$0xff]
    %v1219 = vld [vmem:[%s1200 + $0x90] sm:$0xff]
    %v1220 = vld [vmem:[%s1200 + $0x98] sm:$0xff]
    %v1221 = vld [vmem:[%s1200 + $0xa0] sm:$0xff]
    %v1222 = vld [vmem:[%s1200 + $0xa8] sm:$0xff]
    %v1223 = vld [vmem:[%s1200 + $0xb0] sm:$0xff]
    %v1224 = vld [vmem:[%s1200 + $0xb8] sm:$0xff]
    %v1225 = vld [vmem:[%s1200 + $0xc0] sm:$0xff]
    %v1226 = vld [vmem:[%s1200 + $0xc8] sm:$0xff]
    %v1227 = vld [vmem:[%s1200 + $0xd0] sm:$0xff]
    %v1228 = vld [vmem:[%s1200 + $0xd8] sm:$0xff]
    %v1229 = vld [vmem:[%s1200 + $0xe0] sm:$0xff]
    %v1230 = vld [vmem:[%s1200 + $0xe8] sm:$0xff]
    %v1231 = vld [vmem:[%s1200 + $0xf0] sm:$0xff]
    %v1232 = vld [vmem:[%s1200 + $0xf8] sm:$0xff]
    %v1237 = vunpack.c.l.b16 %v1196
    %v1238 = vunpack.c.l.b16 %v1197
    %v1239 = vunpack.c.l.b16 %v1198
    %v1240 = vunpack.c.l.b16 %v1199
    %v1241 = vrot.slane %v1239, 7
    %v1242 = vsel %vm960, %v1241, %v1237
    %v1243 = vrot.slane %v1240, 7
    %v1244 = vsel %vm960, %v1243, %v1238
    %v1245 = vpack.c.b16 %v1242, %v1242
    %v1246 = vpack.c.b16 %v1244, %v1244
    %v1281 = vunpack.c.l.b16 %v1201
    %v1282 = vunpack.c.h.b16 %v1201
    %v1283 = vunpack.c.l.b16 %v1202
    %v1284 = vunpack.c.h.b16 %v1202
    %v1285 = vunpack.c.l.b16 %v1203
    %v1286 = vunpack.c.h.b16 %v1203
    %v1287 = vunpack.c.l.b16 %v1204
    %v1288 = vunpack.c.h.b16 %v1204
    %v1289 = vunpack.c.l.b16 %v1205
    %v1290 = vunpack.c.h.b16 %v1205
    %v1291 = vunpack.c.l.b16 %v1206
    %v1292 = vunpack.c.h.b16 %v1206
    %v1293 = vunpack.c.l.b16 %v1207
    %v1294 = vunpack.c.h.b16 %v1207
    %v1295 = vunpack.c.l.b16 %v1208
    %v1296 = vunpack.c.h.b16 %v1208
    %v1297 = vunpack.c.l.b16 %v1209
    %v1298 = vunpack.c.h.b16 %v1209
    %v1299 = vunpack.c.l.b16 %v1210
    %v1300 = vunpack.c.h.b16 %v1210
    %v1301 = vunpack.c.l.b16 %v1211
    %v1302 = vunpack.c.h.b16 %v1211
    %v1303 = vunpack.c.l.b16 %v1212
    %v1304 = vunpack.c.h.b16 %v1212
    %v1305 = vunpack.c.l.b16 %v1213
    %v1306 = vunpack.c.h.b16 %v1213
    %v1307 = vunpack.c.l.b16 %v1214
    %v1308 = vunpack.c.h.b16 %v1214
    %v1309 = vunpack.c.l.b16 %v1215
    %v1310 = vunpack.c.h.b16 %v1215
    %v1311 = vunpack.c.l.b16 %v1216
    %v1312 = vunpack.c.h.b16 %v1216
    %v1313 = vunpack.c.l.b16 %v1217
    %v1314 = vunpack.c.h.b16 %v1217
    %v1315 = vunpack.c.l.b16 %v1218
    %v1316 = vunpack.c.h.b16 %v1218
    %v1317 = vunpack.c.l.b16 %v1219
    %v1318 = vunpack.c.h.b16 %v1219
    %v1319 = vunpack.c.l.b16 %v1220
    %v1320 = vunpack.c.h.b16 %v1220
    %v1321 = vunpack.c.l.b16 %v1221
    %v1322 = vunpack.c.h.b16 %v1221
    %v1323 = vunpack.c.l.b16 %v1222
    %v1324 = vunpack.c.h.b16 %v1222
    %v1325 = vunpack.c.l.b16 %v1223
    %v1326 = vunpack.c.h.b16 %v1223
    %v1327 = vunpack.c.l.b16 %v1224
    %v1328 = vunpack.c.h.b16 %v1224
    %v1329 = vunpack.c.l.b16 %v1225
    %v1330 = vunpack.c.h.b16 %v1225
    %v1331 = vunpack.c.l.b16 %v1226
    %v1332 = vunpack.c.h.b16 %v1226
    %v1333 = vunpack.c.l.b16 %v1227
    %v1334 = vunpack.c.h.b16 %v1227
    %v1335 = vunpack.c.l.b16 %v1228
    %v1336 = vunpack.c.h.b16 %v1228
    %v1337 = vunpack.c.l.b16 %v1229
    %v1338 = vunpack.c.h.b16 %v1229
    %v1339 = vunpack.c.l.b16 %v1230
    %v1340 = vunpack.c.h.b16 %v1230
    %v1341 = vunpack.c.l.b16 %v1231
    %v1342 = vunpack.c.h.b16 %v1231
    %v1343 = vunpack.c.l.b16 %v1232
    %v1344 = vunpack.c.h.b16 %v1232
    %v1345 = vpack.c.b16 %v1283, %v1281
    %v1346 = vpack.c.b16 %v1284, %v1282
    %v1347 = vpack.c.b16 %v1287, %v1285
    %v1348 = vpack.c.b16 %v1288, %v1286
    %v1349 = vpack.c.b16 %v1291, %v1289
    %v1350 = vpack.c.b16 %v1292, %v1290
    %v1351 = vpack.c.b16 %v1295, %v1293
    %v1352 = vpack.c.b16 %v1296, %v1294
    %v1353 = vpack.c.b16 %v1299, %v1297
    %v1354 = vpack.c.b16 %v1300, %v1298
    %v1355 = vpack.c.b16 %v1303, %v1301
    %v1356 = vpack.c.b16 %v1304, %v1302
    %v1357 = vpack.c.b16 %v1307, %v1305
    %v1358 = vpack.c.b16 %v1308, %v1306
    %v1359 = vpack.c.b16 %v1311, %v1309
    %v1360 = vpack.c.b16 %v1312, %v1310
    %v1361 = vpack.c.b16 %v1315, %v1313
    %v1362 = vpack.c.b16 %v1316, %v1314
    %v1363 = vpack.c.b16 %v1319, %v1317
    %v1364 = vpack.c.b16 %v1320, %v1318
    %v1365 = vpack.c.b16 %v1323, %v1321
    %v1366 = vpack.c.b16 %v1324, %v1322
    %v1367 = vpack.c.b16 %v1327, %v1325
    %v1368 = vpack.c.b16 %v1328, %v1326
    %v1369 = vpack.c.b16 %v1331, %v1329
    %v1370 = vpack.c.b16 %v1332, %v1330
    %v1371 = vpack.c.b16 %v1335, %v1333
    %v1372 = vpack.c.b16 %v1336, %v1334
    %v1373 = vpack.c.b16 %v1339, %v1337
    %v1374 = vpack.c.b16 %v1340, %v1338
    %v1375 = vpack.c.b16 %v1343, %v1341
    %v1376 = vpack.c.b16 %v1344, %v1342
    %1409 = vmatpush.bf16.msra.mxu0 %v1359
    %1410 = vmatpush.bf16.msra.mxu0 %v1357
    %1411 = vmatpush.bf16.msra.mxu0 %v1355
    %1412 = vmatpush.bf16.msra.mxu0 %v1353
    %1413 = vmatpush.bf16.msra.mxu0 %v1351
    %1414 = vmatpush.bf16.msra.mxu0 %v1349
    %1415 = vmatpush.bf16.msra.mxu0 %v1347
    %1416 = vmatpush.bf16.msra.mxu0 %v1345
    %1417 = vmatmul.bf16.gmra.mxu0 %v1245
    %v1418 = vpop.f32.mrf.mxu0
    %v1419 = vadd.f32 0.0, %v1418
    %v1420 = vpop.f32.mrf.mxu0
    %1421 = vdwg.mxu0
    %1422 = vmatpush.bf16.msra.mxu0 %v1375
    %1423 = vmatpush.bf16.msra.mxu0 %v1373
    %1424 = vmatpush.bf16.msra.mxu0 %v1371
    %1425 = vmatpush.bf16.msra.mxu0 %v1369
    %1426 = vmatpush.bf16.msra.mxu0 %v1367
    %1427 = vmatpush.bf16.msra.mxu0 %v1365
    %1428 = vmatpush.bf16.msra.mxu0 %v1363
    %1429 = vmatpush.bf16.msra.mxu0 %v1361
    %1430 = vmatmul.bf16.gmra.mxu0 %v1246
    %v1431 = vpop.f32.mrf.mxu0
    %v1432 = vadd.f32 %v1419, %v1431
    %v1433 = vpop.f32.mrf.mxu0
    %1434 = vdwg.mxu0
    %1435 = vmatpush.bf16.msra.mxu0 %v1360
    %1436 = vmatpush.bf16.msra.mxu0 %v1358
    %1437 = vmatpush.bf16.msra.mxu0 %v1356
    %1438 = vmatpush.bf16.msra.mxu0 %v1354
    %1439 = vmatpush.bf16.msra.mxu0 %v1352
    %1440 = vmatpush.bf16.msra.mxu0 %v1350
    %1441 = vmatpush.bf16.msra.mxu0 %v1348
    %1442 = vmatpush.bf16.msra.mxu0 %v1346
    %1443 = vmatmul.bf16.gmra.mxu0 %v1245
    %v1444 = vpop.f32.mrf.mxu0
    %v1445 = vadd.f32 0.0, %v1444
    %v1446 = vpop.f32.mrf.mxu0
    %1447 = vdwg.mxu0
    %1448 = vmatpush.bf16.msra.mxu0 %v1376
    %1449 = vmatpush.bf16.msra.mxu0 %v1374
    %1450 = vmatpush.bf16.msra.mxu0 %v1372
    %1451 = vmatpush.bf16.msra.mxu0 %v1370
    %1452 = vmatpush.bf16.msra.mxu0 %v1368
    %1453 = vmatpush.bf16.msra.mxu0 %v1366
    %1454 = vmatpush.bf16.msra.mxu0 %v1364
    %1455 = vmatpush.bf16.msra.mxu0 %v1362
    %1456 = vmatmul.bf16.gmra.mxu0 %v1246
    %v1457 = vpop.f32.mrf.mxu0
    %v1458 = vadd.f32 %v1445, %v1457
    %v1459 = vpop.f32.mrf.mxu0
    %1460 = vdwg.mxu0
    %v1461 = vadd.f32 %v1180, %v1432
    %v1462 = vadd.f32 %v1181, %v1458
    %s1463 = scalar_lea.vmem [#allocation4], 2
    %v1464 = vld [vmem:[%s1463] ss:$8 sm:$0x3]
    %s1465 = scalar_lea.vmem [#allocation4], 34
    %v1466 = vld [vmem:[%s1465] ss:$8 sm:$0x3]
    %v1469 = vperm.slane %v1464, 0
    %v1470 = vperm.slane %v1464, 1
    %v1471 = vperm.slane %v1466, 0
    %v1472 = vperm.slane %v1466, 1
    %v1477 = vpack.c.bf16 %v1469, %v1469
    %v1478 = vpack.c.bf16 %v1470, %v1470
    %v1479 = vpack.c.bf16 %v1471, %v1471
    %v1480 = vpack.c.bf16 %v1472, %v1472
    %s1481 = scalar_lea.vmem [#allocation5], 512
    %v1482 = vld [vmem:[%s1481] sm:$0xff]
    %v1483 = vld [vmem:[%s1481 + $0x8] sm:$0xff]
    %v1484 = vld [vmem:[%s1481 + $0x10] sm:$0xff]
    %v1485 = vld [vmem:[%s1481 + $0x18] sm:$0xff]
    %v1486 = vld [vmem:[%s1481 + $0x20] sm:$0xff]
    %v1487 = vld [vmem:[%s1481 + $0x28] sm:$0xff]
    %v1488 = vld [vmem:[%s1481 + $0x30] sm:$0xff]
    %v1489 = vld [vmem:[%s1481 + $0x38] sm:$0xff]
    %v1490 = vld [vmem:[%s1481 + $0x40] sm:$0xff]
    %v1491 = vld [vmem:[%s1481 + $0x48] sm:$0xff]
    %v1492 = vld [vmem:[%s1481 + $0x50] sm:$0xff]
    %v1493 = vld [vmem:[%s1481 + $0x58] sm:$0xff]
    %v1494 = vld [vmem:[%s1481 + $0x60] sm:$0xff]
    %v1495 = vld [vmem:[%s1481 + $0x68] sm:$0xff]
    %v1496 = vld [vmem:[%s1481 + $0x70] sm:$0xff]
    %v1497 = vld [vmem:[%s1481 + $0x78] sm:$0xff]
    %v1498 = vld [vmem:[%s1481 + $0x80] sm:$0xff]
    %v1499 = vld [vmem:[%s1481 + $0x88] sm:$0xff]
    %v1500 = vld [vmem:[%s1481 + $0x90] sm:$0xff]
    %v1501 = vld [vmem:[%s1481 + $0x98] sm:$0xff]
    %v1502 = vld [vmem:[%s1481 + $0xa0] sm:$0xff]
    %v1503 = vld [vmem:[%s1481 + $0xa8] sm:$0xff]
    %v1504 = vld [vmem:[%s1481 + $0xb0] sm:$0xff]
    %v1505 = vld [vmem:[%s1481 + $0xb8] sm:$0xff]
    %v1506 = vld [vmem:[%s1481 + $0xc0] sm:$0xff]
    %v1507 = vld [vmem:[%s1481 + $0xc8] sm:$0xff]
    %v1508 = vld [vmem:[%s1481 + $0xd0] sm:$0xff]
    %v1509 = vld [vmem:[%s1481 + $0xd8] sm:$0xff]
    %v1510 = vld [vmem:[%s1481 + $0xe0] sm:$0xff]
    %v1511 = vld [vmem:[%s1481 + $0xe8] sm:$0xff]
    %v1512 = vld [vmem:[%s1481 + $0xf0] sm:$0xff]
    %v1513 = vld [vmem:[%s1481 + $0xf8] sm:$0xff]
    %v1518 = vunpack.c.l.b16 %v1477
    %v1519 = vunpack.c.l.b16 %v1478
    %v1520 = vunpack.c.l.b16 %v1479
    %v1521 = vunpack.c.l.b16 %v1480
    %v1522 = vrot.slane %v1520, 7
    %v1523 = vsel %vm960, %v1522, %v1518
    %v1524 = vrot.slane %v1521, 7
    %v1525 = vsel %vm960, %v1524, %v1519
    %v1526 = vpack.c.b16 %v1523, %v1523
    %v1527 = vpack.c.b16 %v1525, %v1525
    %v1562 = vunpack.c.l.b16 %v1482
    %v1563 = vunpack.c.h.b16 %v1482
    %v1564 = vunpack.c.l.b16 %v1483
    %v1565 = vunpack.c.h.b16 %v1483
    %v1566 = vunpack.c.l.b16 %v1484
    %v1567 = vunpack.c.h.b16 %v1484
    %v1568 = vunpack.c.l.b16 %v1485
    %v1569 = vunpack.c.h.b16 %v1485
    %v1570 = vunpack.c.l.b16 %v1486
    %v1571 = vunpack.c.h.b16 %v1486
    %v1572 = vunpack.c.l.b16 %v1487
    %v1573 = vunpack.c.h.b16 %v1487
    %v1574 = vunpack.c.l.b16 %v1488
    %v1575 = vunpack.c.h.b16 %v1488
    %v1576 = vunpack.c.l.b16 %v1489
    %v1577 = vunpack.c.h.b16 %v1489
    %v1578 = vunpack.c.l.b16 %v1490
    %v1579 = vunpack.c.h.b16 %v1490
    %v1580 = vunpack.c.l.b16 %v1491
    %v1581 = vunpack.c.h.b16 %v1491
    %v1582 = vunpack.c.l.b16 %v1492
    %v1583 = vunpack.c.h.b16 %v1492
    %v1584 = vunpack.c.l.b16 %v1493
    %v1585 = vunpack.c.h.b16 %v1493
    %v1586 = vunpack.c.l.b16 %v1494
    %v1587 = vunpack.c.h.b16 %v1494
    %v1588 = vunpack.c.l.b16 %v1495
    %v1589 = vunpack.c.h.b16 %v1495
    %v1590 = vunpack.c.l.b16 %v1496
    %v1591 = vunpack.c.h.b16 %v1496
    %v1592 = vunpack.c.l.b16 %v1497
    %v1593 = vunpack.c.h.b16 %v1497
    %v1594 = vunpack.c.l.b16 %v1498
    %v1595 = vunpack.c.h.b16 %v1498
    %v1596 = vunpack.c.l.b16 %v1499
    %v1597 = vunpack.c.h.b16 %v1499
    %v1598 = vunpack.c.l.b16 %v1500
    %v1599 = vunpack.c.h.b16 %v1500
    %v1600 = vunpack.c.l.b16 %v1501
    %v1601 = vunpack.c.h.b16 %v1501
    %v1602 = vunpack.c.l.b16 %v1502
    %v1603 = vunpack.c.h.b16 %v1502
    %v1604 = vunpack.c.l.b16 %v1503
    %v1605 = vunpack.c.h.b16 %v1503
    %v1606 = vunpack.c.l.b16 %v1504
    %v1607 = vunpack.c.h.b16 %v1504
    %v1608 = vunpack.c.l.b16 %v1505
    %v1609 = vunpack.c.h.b16 %v1505
    %v1610 = vunpack.c.l.b16 %v1506
    %v1611 = vunpack.c.h.b16 %v1506
    %v1612 = vunpack.c.l.b16 %v1507
    %v1613 = vunpack.c.h.b16 %v1507
    %v1614 = vunpack.c.l.b16 %v1508
    %v1615 = vunpack.c.h.b16 %v1508
    %v1616 = vunpack.c.l.b16 %v1509
    %v1617 = vunpack.c.h.b16 %v1509
    %v1618 = vunpack.c.l.b16 %v1510
    %v1619 = vunpack.c.h.b16 %v1510
    %v1620 = vunpack.c.l.b16 %v1511
    %v1621 = vunpack.c.h.b16 %v1511
    %v1622 = vunpack.c.l.b16 %v1512
    %v1623 = vunpack.c.h.b16 %v1512
    %v1624 = vunpack.c.l.b16 %v1513
    %v1625 = vunpack.c.h.b16 %v1513
    %v1626 = vpack.c.b16 %v1564, %v1562
    %v1627 = vpack.c.b16 %v1565, %v1563
    %v1628 = vpack.c.b16 %v1568, %v1566
    %v1629 = vpack.c.b16 %v1569, %v1567
    %v1630 = vpack.c.b16 %v1572, %v1570
    %v1631 = vpack.c.b16 %v1573, %v1571
    %v1632 = vpack.c.b16 %v1576, %v1574
    %v1633 = vpack.c.b16 %v1577, %v1575
    %v1634 = vpack.c.b16 %v1580, %v1578
    %v1635 = vpack.c.b16 %v1581, %v1579
    %v1636 = vpack.c.b16 %v1584, %v1582
    %v1637 = vpack.c.b16 %v1585, %v1583
    %v1638 = vpack.c.b16 %v1588, %v1586
    %v1639 = vpack.c.b16 %v1589, %v1587
    %v1640 = vpack.c.b16 %v1592, %v1590
    %v1641 = vpack.c.b16 %v1593, %v1591
    %v1642 = vpack.c.b16 %v1596, %v1594
    %v1643 = vpack.c.b16 %v1597, %v1595
    %v1644 = vpack.c.b16 %v1600, %v1598
    %v1645 = vpack.c.b16 %v1601, %v1599
    %v1646 = vpack.c.b16 %v1604, %v1602
    %v1647 = vpack.c.b16 %v1605, %v1603
    %v1648 = vpack.c.b16 %v1608, %v1606
    %v1649 = vpack.c.b16 %v1609, %v1607
    %v1650 = vpack.c.b16 %v1612, %v1610
    %v1651 = vpack.c.b16 %v1613, %v1611
    %v1652 = vpack.c.b16 %v1616, %v1614
    %v1653 = vpack.c.b16 %v1617, %v1615
    %v1654 = vpack.c.b16 %v1620, %v1618
    %v1655 = vpack.c.b16 %v1621, %v1619
    %v1656 = vpack.c.b16 %v1624, %v1622
    %v1657 = vpack.c.b16 %v1625, %v1623
    %1690 = vmatpush.bf16.msra.mxu0 %v1640
    %1691 = vmatpush.bf16.msra.mxu0 %v1638
    %1692 = vmatpush.bf16.msra.mxu0 %v1636
    %1693 = vmatpush.bf16.msra.mxu0 %v1634
    %1694 = vmatpush.bf16.msra.mxu0 %v1632
    %1695 = vmatpush.bf16.msra.mxu0 %v1630
    %1696 = vmatpush.bf16.msra.mxu0 %v1628
    %1697 = vmatpush.bf16.msra.mxu0 %v1626
    %1698 = vmatmul.bf16.gmra.mxu0 %v1526
    %v1699 = vpop.f32.mrf.mxu0
    %v1700 = vadd.f32 0.0, %v1699
    %v1701 = vpop.f32.mrf.mxu0
    %1702 = vdwg.mxu0
    %1703 = vmatpush.bf16.msra.mxu0 %v1656
    %1704 = vmatpush.bf16.msra.mxu0 %v1654
    %1705 = vmatpush.bf16.msra.mxu0 %v1652
    %1706 = vmatpush.bf16.msra.mxu0 %v1650
    %1707 = vmatpush.bf16.msra.mxu0 %v1648
    %1708 = vmatpush.bf16.msra.mxu0 %v1646
    %1709 = vmatpush.bf16.msra.mxu0 %v1644
    %1710 = vmatpush.bf16.msra.mxu0 %v1642
    %1711 = vmatmul.bf16.gmra.mxu0 %v1527
    %v1712 = vpop.f32.mrf.mxu0
    %v1713 = vadd.f32 %v1700, %v1712
    %v1714 = vpop.f32.mrf.mxu0
    %1715 = vdwg.mxu0
    %1716 = vmatpush.bf16.msra.mxu0 %v1641
    %1717 = vmatpush.bf16.msra.mxu0 %v1639
    %1718 = vmatpush.bf16.msra.mxu0 %v1637
    %1719 = vmatpush.bf16.msra.mxu0 %v1635
    %1720 = vmatpush.bf16.msra.mxu0 %v1633
    %1721 = vmatpush.bf16.msra.mxu0 %v1631
    %1722 = vmatpush.bf16.msra.mxu0 %v1629
    %1723 = vmatpush.bf16.msra.mxu0 %v1627
    %1724 = vmatmul.bf16.gmra.mxu0 %v1526
    %v1725 = vpop.f32.mrf.mxu0
    %v1726 = vadd.f32 0.0, %v1725
    %v1727 = vpop.f32.mrf.mxu0
    %1728 = vdwg.mxu0
    %1729 = vmatpush.bf16.msra.mxu0 %v1657
    %1730 = vmatpush.bf16.msra.mxu0 %v1655
    %1731 = vmatpush.bf16.msra.mxu0 %v1653
    %1732 = vmatpush.bf16.msra.mxu0 %v1651
    %1733 = vmatpush.bf16.msra.mxu0 %v1649
    %1734 = vmatpush.bf16.msra.mxu0 %v1647
    %1735 = vmatpush.bf16.msra.mxu0 %v1645
    %1736 = vmatpush.bf16.msra.mxu0 %v1643
    %1737 = vmatmul.bf16.gmra.mxu0 %v1527
    %v1738 = vpop.f32.mrf.mxu0
    %v1739 = vadd.f32 %v1726, %v1738
    %v1740 = vpop.f32.mrf.mxu0
    %1741 = vdwg.mxu0
    %v1742 = vadd.f32 %v1461, %v1713
    %v1743 = vadd.f32 %v1462, %v1739
    %s1744 = scalar_lea.vmem [#allocation4], 3
    %v1745 = vld [vmem:[%s1744] ss:$8 sm:$0x3]
    %s1746 = scalar_lea.vmem [#allocation4], 35
    %v1747 = vld [vmem:[%s1746] ss:$8 sm:$0x3]
    %v1750 = vperm.slane %v1745, 0
    %v1751 = vperm.slane %v1745, 1
    %v1752 = vperm.slane %v1747, 0
    %v1753 = vperm.slane %v1747, 1
    %v1758 = vpack.c.bf16 %v1750, %v1750
    %v1759 = vpack.c.bf16 %v1751, %v1751
    %v1760 = vpack.c.bf16 %v1752, %v1752
    %v1761 = vpack.c.bf16 %v1753, %v1753
    %s1762 = scalar_lea.vmem [#allocation5], 768
    %v1763 = vld [vmem:[%s1762] sm:$0xff]
    %v1764 = vld [vmem:[%s1762 + $0x8] sm:$0xff]
    %v1765 = vld [vmem:[%s1762 + $0x10] sm:$0xff]
    %v1766 = vld [vmem:[%s1762 + $0x18] sm:$0xff]
    %v1767 = vld [vmem:[%s1762 + $0x20] sm:$0xff]
    %v1768 = vld [vmem:[%s1762 + $0x28] sm:$0xff]
    %v1769 = vld [vmem:[%s1762 + $0x30] sm:$0xff]
    %v1770 = vld [vmem:[%s1762 + $0x38] sm:$0xff]
    %v1771 = vld [vmem:[%s1762 + $0x40] sm:$0xff]
    %v1772 = vld [vmem:[%s1762 + $0x48] sm:$0xff]
    %v1773 = vld [vmem:[%s1762 + $0x50] sm:$0xff]
    %v1774 = vld [vmem:[%s1762 + $0x58] sm:$0xff]
    %v1775 = vld [vmem:[%s1762 + $0x60] sm:$0xff]
    %v1776 = vld [vmem:[%s1762 + $0x68] sm:$0xff]
    %v1777 = vld [vmem:[%s1762 + $0x70] sm:$0xff]
    %v1778 = vld [vmem:[%s1762 + $0x78] sm:$0xff]
    %v1779 = vld [vmem:[%s1762 + $0x80] sm:$0xff]
    %v1780 = vld [vmem:[%s1762 + $0x88] sm:$0xff]
    %v1781 = vld [vmem:[%s1762 + $0x90] sm:$0xff]
    %v1782 = vld [vmem:[%s1762 + $0x98] sm:$0xff]
    %v1783 = vld [vmem:[%s1762 + $0xa0] sm:$0xff]
    %v1784 = vld [vmem:[%s1762 + $0xa8] sm:$0xff]
    %v1785 = vld [vmem:[%s1762 + $0xb0] sm:$0xff]
    %v1786 = vld [vmem:[%s1762 + $0xb8] sm:$0xff]
    %v1787 = vld [vmem:[%s1762 + $0xc0] sm:$0xff]
    %v1788 = vld [vmem:[%s1762 + $0xc8] sm:$0xff]
    %v1789 = vld [vmem:[%s1762 + $0xd0] sm:$0xff]
    %v1790 = vld [vmem:[%s1762 + $0xd8] sm:$0xff]
    %v1791 = vld [vmem:[%s1762 + $0xe0] sm:$0xff]
    %v1792 = vld [vmem:[%s1762 + $0xe8] sm:$0xff]
    %v1793 = vld [vmem:[%s1762 + $0xf0] sm:$0xff]
    %v1794 = vld [vmem:[%s1762 + $0xf8] sm:$0xff]
    %v1799 = vunpack.c.l.b16 %v1758
    %v1800 = vunpack.c.l.b16 %v1759
    %v1801 = vunpack.c.l.b16 %v1760
    %v1802 = vunpack.c.l.b16 %v1761
    %v1803 = vrot.slane %v1801, 7
    %v1804 = vsel %vm960, %v1803, %v1799
    %v1805 = vrot.slane %v1802, 7
    %v1806 = vsel %vm960, %v1805, %v1800
    %v1807 = vpack.c.b16 %v1804, %v1804
    %v1808 = vpack.c.b16 %v1806, %v1806
    %v1843 = vunpack.c.l.b16 %v1763
    %v1844 = vunpack.c.h.b16 %v1763
    %v1845 = vunpack.c.l.b16 %v1764
    %v1846 = vunpack.c.h.b16 %v1764
    %v1847 = vunpack.c.l.b16 %v1765
    %v1848 = vunpack.c.h.b16 %v1765
    %v1849 = vunpack.c.l.b16 %v1766
    %v1850 = vunpack.c.h.b16 %v1766
    %v1851 = vunpack.c.l.b16 %v1767
    %v1852 = vunpack.c.h.b16 %v1767
    %v1853 = vunpack.c.l.b16 %v1768
    %v1854 = vunpack.c.h.b16 %v1768
    %v1855 = vunpack.c.l.b16 %v1769
    %v1856 = vunpack.c.h.b16 %v1769
    %v1857 = vunpack.c.l.b16 %v1770
    %v1858 = vunpack.c.h.b16 %v1770
    %v1859 = vunpack.c.l.b16 %v1771
    %v1860 = vunpack.c.h.b16 %v1771
    %v1861 = vunpack.c.l.b16 %v1772
    %v1862 = vunpack.c.h.b16 %v1772
    %v1863 = vunpack.c.l.b16 %v1773
    %v1864 = vunpack.c.h.b16 %v1773
    %v1865 = vunpack.c.l.b16 %v1774
    %v1866 = vunpack.c.h.b16 %v1774
    %v1867 = vunpack.c.l.b16 %v1775
    %v1868 = vunpack.c.h.b16 %v1775
    %v1869 = vunpack.c.l.b16 %v1776
    %v1870 = vunpack.c.h.b16 %v1776
    %v1871 = vunpack.c.l.b16 %v1777
    %v1872 = vunpack.c.h.b16 %v1777
    %v1873 = vunpack.c.l.b16 %v1778
    %v1874 = vunpack.c.h.b16 %v1778
    %v1875 = vunpack.c.l.b16 %v1779
    %v1876 = vunpack.c.h.b16 %v1779
    %v1877 = vunpack.c.l.b16 %v1780
    %v1878 = vunpack.c.h.b16 %v1780
    %v1879 = vunpack.c.l.b16 %v1781
    %v1880 = vunpack.c.h.b16 %v1781
    %v1881 = vunpack.c.l.b16 %v1782
    %v1882 = vunpack.c.h.b16 %v1782
    %v1883 = vunpack.c.l.b16 %v1783
    %v1884 = vunpack.c.h.b16 %v1783
    %v1885 = vunpack.c.l.b16 %v1784
    %v1886 = vunpack.c.h.b16 %v1784
    %v1887 = vunpack.c.l.b16 %v1785
    %v1888 = vunpack.c.h.b16 %v1785
    %v1889 = vunpack.c.l.b16 %v1786
    %v1890 = vunpack.c.h.b16 %v1786
    %v1891 = vunpack.c.l.b16 %v1787
    %v1892 = vunpack.c.h.b16 %v1787
    %v1893 = vunpack.c.l.b16 %v1788
    %v1894 = vunpack.c.h.b16 %v1788
    %v1895 = vunpack.c.l.b16 %v1789
    %v1896 = vunpack.c.h.b16 %v1789
    %v1897 = vunpack.c.l.b16 %v1790
    %v1898 = vunpack.c.h.b16 %v1790
    %v1899 = vunpack.c.l.b16 %v1791
    %v1900 = vunpack.c.h.b16 %v1791
    %v1901 = vunpack.c.l.b16 %v1792
    %v1902 = vunpack.c.h.b16 %v1792
    %v1903 = vunpack.c.l.b16 %v1793
    %v1904 = vunpack.c.h.b16 %v1793
    %v1905 = vunpack.c.l.b16 %v1794
    %v1906 = vunpack.c.h.b16 %v1794
    %v1907 = vpack.c.b16 %v1845, %v1843
    %v1908 = vpack.c.b16 %v1846, %v1844
    %v1909 = vpack.c.b16 %v1849, %v1847
    %v1910 = vpack.c.b16 %v1850, %v1848
    %v1911 = vpack.c.b16 %v1853, %v1851
    %v1912 = vpack.c.b16 %v1854, %v1852
    %v1913 = vpack.c.b16 %v1857, %v1855
    %v1914 = vpack.c.b16 %v1858, %v1856
    %v1915 = vpack.c.b16 %v1861, %v1859
    %v1916 = vpack.c.b16 %v1862, %v1860
    %v1917 = vpack.c.b16 %v1865, %v1863
    %v1918 = vpack.c.b16 %v1866, %v1864
    %v1919 = vpack.c.b16 %v1869, %v1867
    %v1920 = vpack.c.b16 %v1870, %v1868
    %v1921 = vpack.c.b16 %v1873, %v1871
    %v1922 = vpack.c.b16 %v1874, %v1872
    %v1923 = vpack.c.b16 %v1877, %v1875
    %v1924 = vpack.c.b16 %v1878, %v1876
    %v1925 = vpack.c.b16 %v1881, %v1879
    %v1926 = vpack.c.b16 %v1882, %v1880
    %v1927 = vpack.c.b16 %v1885, %v1883
    %v1928 = vpack.c.b16 %v1886, %v1884
    %v1929 = vpack.c.b16 %v1889, %v1887
    %v1930 = vpack.c.b16 %v1890, %v1888
    %v1931 = vpack.c.b16 %v1893, %v1891
    %v1932 = vpack.c.b16 %v1894, %v1892
    %v1933 = vpack.c.b16 %v1897, %v1895
    %v1934 = vpack.c.b16 %v1898, %v1896
    %v1935 = vpack.c.b16 %v1901, %v1899
    %v1936 = vpack.c.b16 %v1902, %v1900
    %v1937 = vpack.c.b16 %v1905, %v1903
    %v1938 = vpack.c.b16 %v1906, %v1904
    %1971 = vmatpush.bf16.msra.mxu0 %v1921
    %1972 = vmatpush.bf16.msra.mxu0 %v1919
    %1973 = vmatpush.bf16.msra.mxu0 %v1917
    %1974 = vmatpush.bf16.msra.mxu0 %v1915
    %1975 = vmatpush.bf16.msra.mxu0 %v1913
    %1976 = vmatpush.bf16.msra.mxu0 %v1911
    %1977 = vmatpush.bf16.msra.mxu0 %v1909
    %1978 = vmatpush.bf16.msra.mxu0 %v1907
    %1979 = vmatmul.bf16.gmra.mxu0 %v1807
    %v1980 = vpop.f32.mrf.mxu0
    %v1981 = vadd.f32 0.0, %v1980
    %v1982 = vpop.f32.mrf.mxu0
    %1983 = vdwg.mxu0
    %1984 = vmatpush.bf16.msra.mxu0 %v1937
    %1985 = vmatpush.bf16.msra.mxu0 %v1935
    %1986 = vmatpush.bf16.msra.mxu0 %v1933
    %1987 = vmatpush.bf16.msra.mxu0 %v1931
    %1988 = vmatpush.bf16.msra.mxu0 %v1929
    %1989 = vmatpush.bf16.msra.mxu0 %v1927
    %1990 = vmatpush.bf16.msra.mxu0 %v1925
    %1991 = vmatpush.bf16.msra.mxu0 %v1923
    %1992 = vmatmul.bf16.gmra.mxu0 %v1808
    %v1993 = vpop.f32.mrf.mxu0
    %v1994 = vadd.f32 %v1981, %v1993
    %v1995 = vpop.f32.mrf.mxu0
    %1996 = vdwg.mxu0
    %1997 = vmatpush.bf16.msra.mxu0 %v1922
    %1998 = vmatpush.bf16.msra.mxu0 %v1920
    %1999 = vmatpush.bf16.msra.mxu0 %v1918
    %2000 = vmatpush.bf16.msra.mxu0 %v1916
    %2001 = vmatpush.bf16.msra.mxu0 %v1914
    %2002 = vmatpush.bf16.msra.mxu0 %v1912
    %2003 = vmatpush.bf16.msra.mxu0 %v1910
    %2004 = vmatpush.bf16.msra.mxu0 %v1908
    %2005 = vmatmul.bf16.gmra.mxu0 %v1807
    %v2006 = vpop.f32.mrf.mxu0
    %v2007 = vadd.f32 0.0, %v2006
    %v2008 = vpop.f32.mrf.mxu0
    %2009 = vdwg.mxu0
    %2010 = vmatpush.bf16.msra.mxu0 %v1938
    %2011 = vmatpush.bf16.msra.mxu0 %v1936
    %2012 = vmatpush.bf16.msra.mxu0 %v1934
    %2013 = vmatpush.bf16.msra.mxu0 %v1932
    %2014 = vmatpush.bf16.msra.mxu0 %v1930
    %2015 = vmatpush.bf16.msra.mxu0 %v1928
    %2016 = vmatpush.bf16.msra.mxu0 %v1926
    %2017 = vmatpush.bf16.msra.mxu0 %v1924
    %2018 = vmatmul.bf16.gmra.mxu0 %v1808
    %v2019 = vpop.f32.mrf.mxu0
    %v2020 = vadd.f32 %v2007, %v2019
    %v2021 = vpop.f32.mrf.mxu0
    %2022 = vdwg.mxu0
    %v2023 = vadd.f32 %v1742, %v1994
    %v2024 = vadd.f32 %v1743, %v2020
    %s2025 = scalar_lea.vmem [#allocation4], 4
    %v2026 = vld [vmem:[%s2025] ss:$8 sm:$0x3]
    %s2027 = scalar_lea.vmem [#allocation4], 36
    %v2028 = vld [vmem:[%s2027] ss:$8 sm:$0x3]
    %v2031 = vperm.slane %v2026, 0
    %v2032 = vperm.slane %v2026, 1
    %v2033 = vperm.slane %v2028, 0
    %v2034 = vperm.slane %v2028, 1
    %v2039 = vpack.c.bf16 %v2031, %v2031
    %v2040 = vpack.c.bf16 %v2032, %v2032
    %v2041 = vpack.c.bf16 %v2033, %v2033
    %v2042 = vpack.c.bf16 %v2034, %v2034
    %s2043 = scalar_lea.vmem [#allocation5], 1024
    %v2044 = vld [vmem:[%s2043] sm:$0xff]
    %v2045 = vld [vmem:[%s2043 + $0x8] sm:$0xff]
    %v2046 = vld [vmem:[%s2043 + $0x10] sm:$0xff]
    %v2047 = vld [vmem:[%s2043 + $0x18] sm:$0xff]
    %v2048 = vld [vmem:[%s2043 + $0x20] sm:$0xff]
    %v2049 = vld [vmem:[%s2043 + $0x28] sm:$0xff]
    %v2050 = vld [vmem:[%s2043 + $0x30] sm:$0xff]
    %v2051 = vld [vmem:[%s2043 + $0x38] sm:$0xff]
    %v2052 = vld [vmem:[%s2043 + $0x40] sm:$0xff]
    %v2053 = vld [vmem:[%s2043 + $0x48] sm:$0xff]
    %v2054 = vld [vmem:[%s2043 + $0x50] sm:$0xff]
    %v2055 = vld [vmem:[%s2043 + $0x58] sm:$0xff]
    %v2056 = vld [vmem:[%s2043 + $0x60] sm:$0xff]
    %v2057 = vld [vmem:[%s2043 + $0x68] sm:$0xff]
    %v2058 = vld [vmem:[%s2043 + $0x70] sm:$0xff]
    %v2059 = vld [vmem:[%s2043 + $0x78] sm:$0xff]
    %v2060 = vld [vmem:[%s2043 + $0x80] sm:$0xff]
    %v2061 = vld [vmem:[%s2043 + $0x88] sm:$0xff]
    %v2062 = vld [vmem:[%s2043 + $0x90] sm:$0xff]
    %v2063 = vld [vmem:[%s2043 + $0x98] sm:$0xff]
    %v2064 = vld [vmem:[%s2043 + $0xa0] sm:$0xff]
    %v2065 = vld [vmem:[%s2043 + $0xa8] sm:$0xff]
    %v2066 = vld [vmem:[%s2043 + $0xb0] sm:$0xff]
    %v2067 = vld [vmem:[%s2043 + $0xb8] sm:$0xff]
    %v2068 = vld [vmem:[%s2043 + $0xc0] sm:$0xff]
    %v2069 = vld [vmem:[%s2043 + $0xc8] sm:$0xff]
    %v2070 = vld [vmem:[%s2043 + $0xd0] sm:$0xff]
    %v2071 = vld [vmem:[%s2043 + $0xd8] sm:$0xff]
    %v2072 = vld [vmem:[%s2043 + $0xe0] sm:$0xff]
    %v2073 = vld [vmem:[%s2043 + $0xe8] sm:$0xff]
    %v2074 = vld [vmem:[%s2043 + $0xf0] sm:$0xff]
    %v2075 = vld [vmem:[%s2043 + $0xf8] sm:$0xff]
    %v2080 = vunpack.c.l.b16 %v2039
    %v2081 = vunpack.c.l.b16 %v2040
    %v2082 = vunpack.c.l.b16 %v2041
    %v2083 = vunpack.c.l.b16 %v2042
    %v2084 = vrot.slane %v2082, 7
    %v2085 = vsel %vm960, %v2084, %v2080
    %v2086 = vrot.slane %v2083, 7
    %v2087 = vsel %vm960, %v2086, %v2081
    %v2088 = vpack.c.b16 %v2085, %v2085
    %v2089 = vpack.c.b16 %v2087, %v2087
    %v2124 = vunpack.c.l.b16 %v2044
    %v2125 = vunpack.c.h.b16 %v2044
    %v2126 = vunpack.c.l.b16 %v2045
    %v2127 = vunpack.c.h.b16 %v2045
    %v2128 = vunpack.c.l.b16 %v2046
    %v2129 = vunpack.c.h.b16 %v2046
    %v2130 = vunpack.c.l.b16 %v2047
    %v2131 = vunpack.c.h.b16 %v2047
    %v2132 = vunpack.c.l.b16 %v2048
    %v2133 = vunpack.c.h.b16 %v2048
    %v2134 = vunpack.c.l.b16 %v2049
    %v2135 = vunpack.c.h.b16 %v2049
    %v2136 = vunpack.c.l.b16 %v2050
    %v2137 = vunpack.c.h.b16 %v2050
    %v2138 = vunpack.c.l.b16 %v2051
    %v2139 = vunpack.c.h.b16 %v2051
    %v2140 = vunpack.c.l.b16 %v2052
    %v2141 = vunpack.c.h.b16 %v2052
    %v2142 = vunpack.c.l.b16 %v2053
    %v2143 = vunpack.c.h.b16 %v2053
    %v2144 = vunpack.c.l.b16 %v2054
    %v2145 = vunpack.c.h.b16 %v2054
    %v2146 = vunpack.c.l.b16 %v2055
    %v2147 = vunpack.c.h.b16 %v2055
    %v2148 = vunpack.c.l.b16 %v2056
    %v2149 = vunpack.c.h.b16 %v2056
    %v2150 = vunpack.c.l.b16 %v2057
    %v2151 = vunpack.c.h.b16 %v2057
    %v2152 = vunpack.c.l.b16 %v2058
    %v2153 = vunpack.c.h.b16 %v2058
    %v2154 = vunpack.c.l.b16 %v2059
    %v2155 = vunpack.c.h.b16 %v2059
    %v2156 = vunpack.c.l.b16 %v2060
    %v2157 = vunpack.c.h.b16 %v2060
    %v2158 = vunpack.c.l.b16 %v2061
    %v2159 = vunpack.c.h.b16 %v2061
    %v2160 = vunpack.c.l.b16 %v2062
    %v2161 = vunpack.c.h.b16 %v2062
    %v2162 = vunpack.c.l.b16 %v2063
    %v2163 = vunpack.c.h.b16 %v2063
    %v2164 = vunpack.c.l.b16 %v2064
    %v2165 = vunpack.c.h.b16 %v2064
    %v2166 = vunpack.c.l.b16 %v2065
    %v2167 = vunpack.c.h.b16 %v2065
    %v2168 = vunpack.c.l.b16 %v2066
    %v2169 = vunpack.c.h.b16 %v2066
    %v2170 = vunpack.c.l.b16 %v2067
    %v2171 = vunpack.c.h.b16 %v2067
    %v2172 = vunpack.c.l.b16 %v2068
    %v2173 = vunpack.c.h.b16 %v2068
    %v2174 = vunpack.c.l.b16 %v2069
    %v2175 = vunpack.c.h.b16 %v2069
    %v2176 = vunpack.c.l.b16 %v2070
    %v2177 = vunpack.c.h.b16 %v2070
    %v2178 = vunpack.c.l.b16 %v2071
    %v2179 = vunpack.c.h.b16 %v2071
    %v2180 = vunpack.c.l.b16 %v2072
    %v2181 = vunpack.c.h.b16 %v2072
    %v2182 = vunpack.c.l.b16 %v2073
    %v2183 = vunpack.c.h.b16 %v2073
    %v2184 = vunpack.c.l.b16 %v2074
    %v2185 = vunpack.c.h.b16 %v2074
    %v2186 = vunpack.c.l.b16 %v2075
    %v2187 = vunpack.c.h.b16 %v2075
    %v2188 = vpack.c.b16 %v2126, %v2124
    %v2189 = vpack.c.b16 %v2127, %v2125
    %v2190 = vpack.c.b16 %v2130, %v2128
    %v2191 = vpack.c.b16 %v2131, %v2129
    %v2192 = vpack.c.b16 %v2134, %v2132
    %v2193 = vpack.c.b16 %v2135, %v2133
    %v2194 = vpack.c.b16 %v2138, %v2136
    %v2195 = vpack.c.b16 %v2139, %v2137
    %v2196 = vpack.c.b16 %v2142, %v2140
    %v2197 = vpack.c.b16 %v2143, %v2141
    %v2198 = vpack.c.b16 %v2146, %v2144
    %v2199 = vpack.c.b16 %v2147, %v2145
    %v2200 = vpack.c.b16 %v2150, %v2148
    %v2201 = vpack.c.b16 %v2151, %v2149
    %v2202 = vpack.c.b16 %v2154, %v2152
    %v2203 = vpack.c.b16 %v2155, %v2153
    %v2204 = vpack.c.b16 %v2158, %v2156
    %v2205 = vpack.c.b16 %v2159, %v2157
    %v2206 = vpack.c.b16 %v2162, %v2160
    %v2207 = vpack.c.b16 %v2163, %v2161
    %v2208 = vpack.c.b16 %v2166, %v2164
    %v2209 = vpack.c.b16 %v2167, %v2165
    %v2210 = vpack.c.b16 %v2170, %v2168
    %v2211 = vpack.c.b16 %v2171, %v2169
    %v2212 = vpack.c.b16 %v2174, %v2172
    %v2213 = vpack.c.b16 %v2175, %v2173
    %v2214 = vpack.c.b16 %v2178, %v2176
    %v2215 = vpack.c.b16 %v2179, %v2177
    %v2216 = vpack.c.b16 %v2182, %v2180
    %v2217 = vpack.c.b16 %v2183, %v2181
    %v2218 = vpack.c.b16 %v2186, %v2184
    %v2219 = vpack.c.b16 %v2187, %v2185
    %2252 = vmatpush.bf16.msra.mxu0 %v2202
    %2253 = vmatpush.bf16.msra.mxu0 %v2200
    %2254 = vmatpush.bf16.msra.mxu0 %v2198
    %2255 = vmatpush.bf16.msra.mxu0 %v2196
    %2256 = vmatpush.bf16.msra.mxu0 %v2194
    %2257 = vmatpush.bf16.msra.mxu0 %v2192
    %2258 = vmatpush.bf16.msra.mxu0 %v2190
    %2259 = vmatpush.bf16.msra.mxu0 %v2188
    %2260 = vmatmul.bf16.gmra.mxu0 %v2088
    %v2261 = vpop.f32.mrf.mxu0
    %v2262 = vadd.f32 0.0, %v2261
    %v2263 = vpop.f32.mrf.mxu0
    %2264 = vdwg.mxu0
    %2265 = vmatpush.bf16.msra.mxu0 %v2218
    %2266 = vmatpush.bf16.msra.mxu0 %v2216
    %2267 = vmatpush.bf16.msra.mxu0 %v2214
    %2268 = vmatpush.bf16.msra.mxu0 %v2212
    %2269 = vmatpush.bf16.msra.mxu0 %v2210
    %2270 = vmatpush.bf16.msra.mxu0 %v2208
    %2271 = vmatpush.bf16.msra.mxu0 %v2206
    %2272 = vmatpush.bf16.msra.mxu0 %v2204
    %2273 = vmatmul.bf16.gmra.mxu0 %v2089
    %v2274 = vpop.f32.mrf.mxu0
    %v2275 = vadd.f32 %v2262, %v2274
    %v2276 = vpop.f32.mrf.mxu0
    %2277 = vdwg.mxu0
    %2278 = vmatpush.bf16.msra.mxu0 %v2203
    %2279 = vmatpush.bf16.msra.mxu0 %v2201
    %2280 = vmatpush.bf16.msra.mxu0 %v2199
    %2281 = vmatpush.bf16.msra.mxu0 %v2197
    %2282 = vmatpush.bf16.msra.mxu0 %v2195
    %2283 = vmatpush.bf16.msra.mxu0 %v2193
    %2284 = vmatpush.bf16.msra.mxu0 %v2191
    %2285 = vmatpush.bf16.msra.mxu0 %v2189
    %2286 = vmatmul.bf16.gmra.mxu0 %v2088
    %v2287 = vpop.f32.mrf.mxu0
    %v2288 = vadd.f32 0.0, %v2287
    %v2289 = vpop.f32.mrf.mxu0
    %2290 = vdwg.mxu0
    %2291 = vmatpush.bf16.msra.mxu0 %v2219
    %2292 = vmatpush.bf16.msra.mxu0 %v2217
    %2293 = vmatpush.bf16.msra.mxu0 %v2215
    %2294 = vmatpush.bf16.msra.mxu0 %v2213
    %2295 = vmatpush.bf16.msra.mxu0 %v2211
    %2296 = vmatpush.bf16.msra.mxu0 %v2209
    %2297 = vmatpush.bf16.msra.mxu0 %v2207
    %2298 = vmatpush.bf16.msra.mxu0 %v2205
    %2299 = vmatmul.bf16.gmra.mxu0 %v2089
    %v2300 = vpop.f32.mrf.mxu0
    %v2301 = vadd.f32 %v2288, %v2300
    %v2302 = vpop.f32.mrf.mxu0
    %2303 = vdwg.mxu0
    %v2304 = vadd.f32 %v2023, %v2275
    %v2305 = vadd.f32 %v2024, %v2301
    %s2306 = scalar_lea.vmem [#allocation4], 5
    %v2307 = vld [vmem:[%s2306] ss:$8 sm:$0x3]
    %s2308 = scalar_lea.vmem [#allocation4], 37
    %v2309 = vld [vmem:[%s2308] ss:$8 sm:$0x3]
    %v2312 = vperm.slane %v2307, 0
    %v2313 = vperm.slane %v2307, 1
    %v2314 = vperm.slane %v2309, 0
    %v2315 = vperm.slane %v2309, 1
    %v2320 = vpack.c.bf16 %v2312, %v2312
    %v2321 = vpack.c.bf16 %v2313, %v2313
    %v2322 = vpack.c.bf16 %v2314, %v2314
    %v2323 = vpack.c.bf16 %v2315, %v2315
    %s2324 = scalar_lea.vmem [#allocation5], 1280
    %v2325 = vld [vmem:[%s2324] sm:$0xff]
    %v2326 = vld [vmem:[%s2324 + $0x8] sm:$0xff]
    %v2327 = vld [vmem:[%s2324 + $0x10] sm:$0xff]
    %v2328 = vld [vmem:[%s2324 + $0x18] sm:$0xff]
    %v2329 = vld [vmem:[%s2324 + $0x20] sm:$0xff]
    %v2330 = vld [vmem:[%s2324 + $0x28] sm:$0xff]
    %v2331 = vld [vmem:[%s2324 + $0x30] sm:$0xff]
    %v2332 = vld [vmem:[%s2324 + $0x38] sm:$0xff]
    %v2333 = vld [vmem:[%s2324 + $0x40] sm:$0xff]
    %v2334 = vld [vmem:[%s2324 + $0x48] sm:$0xff]
    %v2335 = vld [vmem:[%s2324 + $0x50] sm:$0xff]
    %v2336 = vld [vmem:[%s2324 + $0x58] sm:$0xff]
    %v2337 = vld [vmem:[%s2324 + $0x60] sm:$0xff]
    %v2338 = vld [vmem:[%s2324 + $0x68] sm:$0xff]
    %v2339 = vld [vmem:[%s2324 + $0x70] sm:$0xff]
    %v2340 = vld [vmem:[%s2324 + $0x78] sm:$0xff]
    %v2341 = vld [vmem:[%s2324 + $0x80] sm:$0xff]
    %v2342 = vld [vmem:[%s2324 + $0x88] sm:$0xff]
    %v2343 = vld [vmem:[%s2324 + $0x90] sm:$0xff]
    %v2344 = vld [vmem:[%s2324 + $0x98] sm:$0xff]
    %v2345 = vld [vmem:[%s2324 + $0xa0] sm:$0xff]
    %v2346 = vld [vmem:[%s2324 + $0xa8] sm:$0xff]
    %v2347 = vld [vmem:[%s2324 + $0xb0] sm:$0xff]
    %v2348 = vld [vmem:[%s2324 + $0xb8] sm:$0xff]
    %v2349 = vld [vmem:[%s2324 + $0xc0] sm:$0xff]
    %v2350 = vld [vmem:[%s2324 + $0xc8] sm:$0xff]
    %v2351 = vld [vmem:[%s2324 + $0xd0] sm:$0xff]
    %v2352 = vld [vmem:[%s2324 + $0xd8] sm:$0xff]
    %v2353 = vld [vmem:[%s2324 + $0xe0] sm:$0xff]
    %v2354 = vld [vmem:[%s2324 + $0xe8] sm:$0xff]
    %v2355 = vld [vmem:[%s2324 + $0xf0] sm:$0xff]
    %v2356 = vld [vmem:[%s2324 + $0xf8] sm:$0xff]
    %v2361 = vunpack.c.l.b16 %v2320
    %v2362 = vunpack.c.l.b16 %v2321
    %v2363 = vunpack.c.l.b16 %v2322
    %v2364 = vunpack.c.l.b16 %v2323
    %v2365 = vrot.slane %v2363, 7
    %v2366 = vsel %vm960, %v2365, %v2361
    %v2367 = vrot.slane %v2364, 7
    %v2368 = vsel %vm960, %v2367, %v2362
    %v2369 = vpack.c.b16 %v2366, %v2366
    %v2370 = vpack.c.b16 %v2368, %v2368
    %v2405 = vunpack.c.l.b16 %v2325
    %v2406 = vunpack.c.h.b16 %v2325
    %v2407 = vunpack.c.l.b16 %v2326
    %v2408 = vunpack.c.h.b16 %v2326
    %v2409 = vunpack.c.l.b16 %v2327
    %v2410 = vunpack.c.h.b16 %v2327
    %v2411 = vunpack.c.l.b16 %v2328
    %v2412 = vunpack.c.h.b16 %v2328
    %v2413 = vunpack.c.l.b16 %v2329
    %v2414 = vunpack.c.h.b16 %v2329
    %v2415 = vunpack.c.l.b16 %v2330
    %v2416 = vunpack.c.h.b16 %v2330
    %v2417 = vunpack.c.l.b16 %v2331
    %v2418 = vunpack.c.h.b16 %v2331
    %v2419 = vunpack.c.l.b16 %v2332
    %v2420 = vunpack.c.h.b16 %v2332
    %v2421 = vunpack.c.l.b16 %v2333
    %v2422 = vunpack.c.h.b16 %v2333
    %v2423 = vunpack.c.l.b16 %v2334
    %v2424 = vunpack.c.h.b16 %v2334
    %v2425 = vunpack.c.l.b16 %v2335
    %v2426 = vunpack.c.h.b16 %v2335
    %v2427 = vunpack.c.l.b16 %v2336
    %v2428 = vunpack.c.h.b16 %v2336
    %v2429 = vunpack.c.l.b16 %v2337
    %v2430 = vunpack.c.h.b16 %v2337
    %v2431 = vunpack.c.l.b16 %v2338
    %v2432 = vunpack.c.h.b16 %v2338
    %v2433 = vunpack.c.l.b16 %v2339
    %v2434 = vunpack.c.h.b16 %v2339
    %v2435 = vunpack.c.l.b16 %v2340
    %v2436 = vunpack.c.h.b16 %v2340
    %v2437 = vunpack.c.l.b16 %v2341
    %v2438 = vunpack.c.h.b16 %v2341
    %v2439 = vunpack.c.l.b16 %v2342
    %v2440 = vunpack.c.h.b16 %v2342
    %v2441 = vunpack.c.l.b16 %v2343
    %v2442 = vunpack.c.h.b16 %v2343
    %v2443 = vunpack.c.l.b16 %v2344
    %v2444 = vunpack.c.h.b16 %v2344
    %v2445 = vunpack.c.l.b16 %v2345
    %v2446 = vunpack.c.h.b16 %v2345
    %v2447 = vunpack.c.l.b16 %v2346
    %v2448 = vunpack.c.h.b16 %v2346
    %v2449 = vunpack.c.l.b16 %v2347
    %v2450 = vunpack.c.h.b16 %v2347
    %v2451 = vunpack.c.l.b16 %v2348
    %v2452 = vunpack.c.h.b16 %v2348
    %v2453 = vunpack.c.l.b16 %v2349
    %v2454 = vunpack.c.h.b16 %v2349
    %v2455 = vunpack.c.l.b16 %v2350
    %v2456 = vunpack.c.h.b16 %v2350
    %v2457 = vunpack.c.l.b16 %v2351
    %v2458 = vunpack.c.h.b16 %v2351
    %v2459 = vunpack.c.l.b16 %v2352
    %v2460 = vunpack.c.h.b16 %v2352
    %v2461 = vunpack.c.l.b16 %v2353
    %v2462 = vunpack.c.h.b16 %v2353
    %v2463 = vunpack.c.l.b16 %v2354
    %v2464 = vunpack.c.h.b16 %v2354
    %v2465 = vunpack.c.l.b16 %v2355
    %v2466 = vunpack.c.h.b16 %v2355
    %v2467 = vunpack.c.l.b16 %v2356
    %v2468 = vunpack.c.h.b16 %v2356
    %v2469 = vpack.c.b16 %v2407, %v2405
    %v2470 = vpack.c.b16 %v2408, %v2406
    %v2471 = vpack.c.b16 %v2411, %v2409
    %v2472 = vpack.c.b16 %v2412, %v2410
    %v2473 = vpack.c.b16 %v2415, %v2413
    %v2474 = vpack.c.b16 %v2416, %v2414
    %v2475 = vpack.c.b16 %v2419, %v2417
    %v2476 = vpack.c.b16 %v2420, %v2418
    %v2477 = vpack.c.b16 %v2423, %v2421
    %v2478 = vpack.c.b16 %v2424, %v2422
    %v2479 = vpack.c.b16 %v2427, %v2425
    %v2480 = vpack.c.b16 %v2428, %v2426
    %v2481 = vpack.c.b16 %v2431, %v2429
    %v2482 = vpack.c.b16 %v2432, %v2430
    %v2483 = vpack.c.b16 %v2435, %v2433
    %v2484 = vpack.c.b16 %v2436, %v2434
    %v2485 = vpack.c.b16 %v2439, %v2437
    %v2486 = vpack.c.b16 %v2440, %v2438
    %v2487 = vpack.c.b16 %v2443, %v2441
    %v2488 = vpack.c.b16 %v2444, %v2442
    %v2489 = vpack.c.b16 %v2447, %v2445
    %v2490 = vpack.c.b16 %v2448, %v2446
    %v2491 = vpack.c.b16 %v2451, %v2449
    %v2492 = vpack.c.b16 %v2452, %v2450
    %v2493 = vpack.c.b16 %v2455, %v2453
    %v2494 = vpack.c.b16 %v2456, %v2454
    %v2495 = vpack.c.b16 %v2459, %v2457
    %v2496 = vpack.c.b16 %v2460, %v2458
    %v2497 = vpack.c.b16 %v2463, %v2461
    %v2498 = vpack.c.b16 %v2464, %v2462
    %v2499 = vpack.c.b16 %v2467, %v2465
    %v2500 = vpack.c.b16 %v2468, %v2466
    %2533 = vmatpush.bf16.msra.mxu0 %v2483
    %2534 = vmatpush.bf16.msra.mxu0 %v2481
    %2535 = vmatpush.bf16.msra.mxu0 %v2479
    %2536 = vmatpush.bf16.msra.mxu0 %v2477
    %2537 = vmatpush.bf16.msra.mxu0 %v2475
    %2538 = vmatpush.bf16.msra.mxu0 %v2473
    %2539 = vmatpush.bf16.msra.mxu0 %v2471
    %2540 = vmatpush.bf16.msra.mxu0 %v2469
    %2541 = vmatmul.bf16.gmra.mxu0 %v2369
    %v2542 = vpop.f32.mrf.mxu0
    %v2543 = vadd.f32 0.0, %v2542
    %v2544 = vpop.f32.mrf.mxu0
    %2545 = vdwg.mxu0
    %2546 = vmatpush.bf16.msra.mxu0 %v2499
    %2547 = vmatpush.bf16.msra.mxu0 %v2497
    %2548 = vmatpush.bf16.msra.mxu0 %v2495
    %2549 = vmatpush.bf16.msra.mxu0 %v2493
    %2550 = vmatpush.bf16.msra.mxu0 %v2491
    %2551 = vmatpush.bf16.msra.mxu0 %v2489
    %2552 = vmatpush.bf16.msra.mxu0 %v2487
    %2553 = vmatpush.bf16.msra.mxu0 %v2485
    %2554 = vmatmul.bf16.gmra.mxu0 %v2370
    %v2555 = vpop.f32.mrf.mxu0
    %v2556 = vadd.f32 %v2543, %v2555
    %v2557 = vpop.f32.mrf.mxu0
    %2558 = vdwg.mxu0
    %2559 = vmatpush.bf16.msra.mxu0 %v2484
    %2560 = vmatpush.bf16.msra.mxu0 %v2482
    %2561 = vmatpush.bf16.msra.mxu0 %v2480
    %2562 = vmatpush.bf16.msra.mxu0 %v2478
    %2563 = vmatpush.bf16.msra.mxu0 %v2476
    %2564 = vmatpush.bf16.msra.mxu0 %v2474
    %2565 = vmatpush.bf16.msra.mxu0 %v2472
    %2566 = vmatpush.bf16.msra.mxu0 %v2470
    %2567 = vmatmul.bf16.gmra.mxu0 %v2369
    %v2568 = vpop.f32.mrf.mxu0
    %v2569 = vadd.f32 0.0, %v2568
    %v2570 = vpop.f32.mrf.mxu0
    %2571 = vdwg.mxu0
    %2572 = vmatpush.bf16.msra.mxu0 %v2500
    %2573 = vmatpush.bf16.msra.mxu0 %v2498
    %2574 = vmatpush.bf16.msra.mxu0 %v2496
    %2575 = vmatpush.bf16.msra.mxu0 %v2494
    %2576 = vmatpush.bf16.msra.mxu0 %v2492
    %2577 = vmatpush.bf16.msra.mxu0 %v2490
    %2578 = vmatpush.bf16.msra.mxu0 %v2488
    %2579 = vmatpush.bf16.msra.mxu0 %v2486
    %2580 = vmatmul.bf16.gmra.mxu0 %v2370
    %v2581 = vpop.f32.mrf.mxu0
    %v2582 = vadd.f32 %v2569, %v2581
    %v2583 = vpop.f32.mrf.mxu0
    %2584 = vdwg.mxu0
    %v2585 = vadd.f32 %v2304, %v2556
    %v2586 = vadd.f32 %v2305, %v2582
    %s2587 = scalar_lea.vmem [#allocation4], 6
    %v2588 = vld [vmem:[%s2587] ss:$8 sm:$0x3]
    %s2589 = scalar_lea.vmem [#allocation4], 38
    %v2590 = vld [vmem:[%s2589] ss:$8 sm:$0x3]
    %v2593 = vperm.slane %v2588, 0
    %v2594 = vperm.slane %v2588, 1
    %v2595 = vperm.slane %v2590, 0
    %v2596 = vperm.slane %v2590, 1
    %v2601 = vpack.c.bf16 %v2593, %v2593
    %v2602 = vpack.c.bf16 %v2594, %v2594
    %v2603 = vpack.c.bf16 %v2595, %v2595
    %v2604 = vpack.c.bf16 %v2596, %v2596
    %s2605 = scalar_lea.vmem [#allocation5], 1536
    %v2606 = vld [vmem:[%s2605] sm:$0xff]
    %v2607 = vld [vmem:[%s2605 + $0x8] sm:$0xff]
    %v2608 = vld [vmem:[%s2605 + $0x10] sm:$0xff]
    %v2609 = vld [vmem:[%s2605 + $0x18] sm:$0xff]
    %v2610 = vld [vmem:[%s2605 + $0x20] sm:$0xff]
    %v2611 = vld [vmem:[%s2605 + $0x28] sm:$0xff]
    %v2612 = vld [vmem:[%s2605 + $0x30] sm:$0xff]
    %v2613 = vld [vmem:[%s2605 + $0x38] sm:$0xff]
    %v2614 = vld [vmem:[%s2605 + $0x40] sm:$0xff]
    %v2615 = vld [vmem:[%s2605 + $0x48] sm:$0xff]
    %v2616 = vld [vmem:[%s2605 + $0x50] sm:$0xff]
    %v2617 = vld [vmem:[%s2605 + $0x58] sm:$0xff]
    %v2618 = vld [vmem:[%s2605 + $0x60] sm:$0xff]
    %v2619 = vld [vmem:[%s2605 + $0x68] sm:$0xff]
    %v2620 = vld [vmem:[%s2605 + $0x70] sm:$0xff]
    %v2621 = vld [vmem:[%s2605 + $0x78] sm:$0xff]
    %v2622 = vld [vmem:[%s2605 + $0x80] sm:$0xff]
    %v2623 = vld [vmem:[%s2605 + $0x88] sm:$0xff]
    %v2624 = vld [vmem:[%s2605 + $0x90] sm:$0xff]
    %v2625 = vld [vmem:[%s2605 + $0x98] sm:$0xff]
    %v2626 = vld [vmem:[%s2605 + $0xa0] sm:$0xff]
    %v2627 = vld [vmem:[%s2605 + $0xa8] sm:$0xff]
    %v2628 = vld [vmem:[%s2605 + $0xb0] sm:$0xff]
    %v2629 = vld [vmem:[%s2605 + $0xb8] sm:$0xff]
    %v2630 = vld [vmem:[%s2605 + $0xc0] sm:$0xff]
    %v2631 = vld [vmem:[%s2605 + $0xc8] sm:$0xff]
    %v2632 = vld [vmem:[%s2605 + $0xd0] sm:$0xff]
    %v2633 = vld [vmem:[%s2605 + $0xd8] sm:$0xff]
    %v2634 = vld [vmem:[%s2605 + $0xe0] sm:$0xff]
    %v2635 = vld [vmem:[%s2605 + $0xe8] sm:$0xff]
    %v2636 = vld [vmem:[%s2605 + $0xf0] sm:$0xff]
    %v2637 = vld [vmem:[%s2605 + $0xf8] sm:$0xff]
    %v2642 = vunpack.c.l.b16 %v2601
    %v2643 = vunpack.c.l.b16 %v2602
    %v2644 = vunpack.c.l.b16 %v2603
    %v2645 = vunpack.c.l.b16 %v2604
    %v2646 = vrot.slane %v2644, 7
    %v2647 = vsel %vm960, %v2646, %v2642
    %v2648 = vrot.slane %v2645, 7
    %v2649 = vsel %vm960, %v2648, %v2643
    %v2650 = vpack.c.b16 %v2647, %v2647
    %v2651 = vpack.c.b16 %v2649, %v2649
    %v2686 = vunpack.c.l.b16 %v2606
    %v2687 = vunpack.c.h.b16 %v2606
    %v2688 = vunpack.c.l.b16 %v2607
    %v2689 = vunpack.c.h.b16 %v2607
    %v2690 = vunpack.c.l.b16 %v2608
    %v2691 = vunpack.c.h.b16 %v2608
    %v2692 = vunpack.c.l.b16 %v2609
    %v2693 = vunpack.c.h.b16 %v2609
    %v2694 = vunpack.c.l.b16 %v2610
    %v2695 = vunpack.c.h.b16 %v2610
    %v2696 = vunpack.c.l.b16 %v2611
    %v2697 = vunpack.c.h.b16 %v2611
    %v2698 = vunpack.c.l.b16 %v2612
    %v2699 = vunpack.c.h.b16 %v2612
    %v2700 = vunpack.c.l.b16 %v2613
    %v2701 = vunpack.c.h.b16 %v2613
    %v2702 = vunpack.c.l.b16 %v2614
    %v2703 = vunpack.c.h.b16 %v2614
    %v2704 = vunpack.c.l.b16 %v2615
    %v2705 = vunpack.c.h.b16 %v2615
    %v2706 = vunpack.c.l.b16 %v2616
    %v2707 = vunpack.c.h.b16 %v2616
    %v2708 = vunpack.c.l.b16 %v2617
    %v2709 = vunpack.c.h.b16 %v2617
    %v2710 = vunpack.c.l.b16 %v2618
    %v2711 = vunpack.c.h.b16 %v2618
    %v2712 = vunpack.c.l.b16 %v2619
    %v2713 = vunpack.c.h.b16 %v2619
    %v2714 = vunpack.c.l.b16 %v2620
    %v2715 = vunpack.c.h.b16 %v2620
    %v2716 = vunpack.c.l.b16 %v2621
    %v2717 = vunpack.c.h.b16 %v2621
    %v2718 = vunpack.c.l.b16 %v2622
    %v2719 = vunpack.c.h.b16 %v2622
    %v2720 = vunpack.c.l.b16 %v2623
    %v2721 = vunpack.c.h.b16 %v2623
    %v2722 = vunpack.c.l.b16 %v2624
    %v2723 = vunpack.c.h.b16 %v2624
    %v2724 = vunpack.c.l.b16 %v2625
    %v2725 = vunpack.c.h.b16 %v2625
    %v2726 = vunpack.c.l.b16 %v2626
    %v2727 = vunpack.c.h.b16 %v2626
    %v2728 = vunpack.c.l.b16 %v2627
    %v2729 = vunpack.c.h.b16 %v2627
    %v2730 = vunpack.c.l.b16 %v2628
    %v2731 = vunpack.c.h.b16 %v2628
    %v2732 = vunpack.c.l.b16 %v2629
    %v2733 = vunpack.c.h.b16 %v2629
    %v2734 = vunpack.c.l.b16 %v2630
    %v2735 = vunpack.c.h.b16 %v2630
    %v2736 = vunpack.c.l.b16 %v2631
    %v2737 = vunpack.c.h.b16 %v2631
    %v2738 = vunpack.c.l.b16 %v2632
    %v2739 = vunpack.c.h.b16 %v2632
    %v2740 = vunpack.c.l.b16 %v2633
    %v2741 = vunpack.c.h.b16 %v2633
    %v2742 = vunpack.c.l.b16 %v2634
    %v2743 = vunpack.c.h.b16 %v2634
    %v2744 = vunpack.c.l.b16 %v2635
    %v2745 = vunpack.c.h.b16 %v2635
    %v2746 = vunpack.c.l.b16 %v2636
    %v2747 = vunpack.c.h.b16 %v2636
    %v2748 = vunpack.c.l.b16 %v2637
    %v2749 = vunpack.c.h.b16 %v2637
    %v2750 = vpack.c.b16 %v2688, %v2686
    %v2751 = vpack.c.b16 %v2689, %v2687
    %v2752 = vpack.c.b16 %v2692, %v2690
    %v2753 = vpack.c.b16 %v2693, %v2691
    %v2754 = vpack.c.b16 %v2696, %v2694
    %v2755 = vpack.c.b16 %v2697, %v2695
    %v2756 = vpack.c.b16 %v2700, %v2698
    %v2757 = vpack.c.b16 %v2701, %v2699
    %v2758 = vpack.c.b16 %v2704, %v2702
    %v2759 = vpack.c.b16 %v2705, %v2703
    %v2760 = vpack.c.b16 %v2708, %v2706
    %v2761 = vpack.c.b16 %v2709, %v2707
    %v2762 = vpack.c.b16 %v2712, %v2710
    %v2763 = vpack.c.b16 %v2713, %v2711
    %v2764 = vpack.c.b16 %v2716, %v2714
    %v2765 = vpack.c.b16 %v2717, %v2715
    %v2766 = vpack.c.b16 %v2720, %v2718
    %v2767 = vpack.c.b16 %v2721, %v2719
    %v2768 = vpack.c.b16 %v2724, %v2722
    %v2769 = vpack.c.b16 %v2725, %v2723
    %v2770 = vpack.c.b16 %v2728, %v2726
    %v2771 = vpack.c.b16 %v2729, %v2727
    %v2772 = vpack.c.b16 %v2732, %v2730
    %v2773 = vpack.c.b16 %v2733, %v2731
    %v2774 = vpack.c.b16 %v2736, %v2734
    %v2775 = vpack.c.b16 %v2737, %v2735
    %v2776 = vpack.c.b16 %v2740, %v2738
    %v2777 = vpack.c.b16 %v2741, %v2739
    %v2778 = vpack.c.b16 %v2744, %v2742
    %v2779 = vpack.c.b16 %v2745, %v2743
    %v2780 = vpack.c.b16 %v2748, %v2746
    %v2781 = vpack.c.b16 %v2749, %v2747
    %2814 = vmatpush.bf16.msra.mxu0 %v2764
    %2815 = vmatpush.bf16.msra.mxu0 %v2762
    %2816 = vmatpush.bf16.msra.mxu0 %v2760
    %2817 = vmatpush.bf16.msra.mxu0 %v2758
    %2818 = vmatpush.bf16.msra.mxu0 %v2756
    %2819 = vmatpush.bf16.msra.mxu0 %v2754
    %2820 = vmatpush.bf16.msra.mxu0 %v2752
    %2821 = vmatpush.bf16.msra.mxu0 %v2750
    %2822 = vmatmul.bf16.gmra.mxu0 %v2650
    %v2823 = vpop.f32.mrf.mxu0
    %v2824 = vadd.f32 0.0, %v2823
    %v2825 = vpop.f32.mrf.mxu0
    %2826 = vdwg.mxu0
    %2827 = vmatpush.bf16.msra.mxu0 %v2780
    %2828 = vmatpush.bf16.msra.mxu0 %v2778
    %2829 = vmatpush.bf16.msra.mxu0 %v2776
    %2830 = vmatpush.bf16.msra.mxu0 %v2774
    %2831 = vmatpush.bf16.msra.mxu0 %v2772
    %2832 = vmatpush.bf16.msra.mxu0 %v2770
    %2833 = vmatpush.bf16.msra.mxu0 %v2768
    %2834 = vmatpush.bf16.msra.mxu0 %v2766
    %2835 = vmatmul.bf16.gmra.mxu0 %v2651
    %v2836 = vpop.f32.mrf.mxu0
    %v2837 = vadd.f32 %v2824, %v2836
    %v2838 = vpop.f32.mrf.mxu0
    %2839 = vdwg.mxu0
    %2840 = vmatpush.bf16.msra.mxu0 %v2765
    %2841 = vmatpush.bf16.msra.mxu0 %v2763
    %2842 = vmatpush.bf16.msra.mxu0 %v2761
    %2843 = vmatpush.bf16.msra.mxu0 %v2759
    %2844 = vmatpush.bf16.msra.mxu0 %v2757
    %2845 = vmatpush.bf16.msra.mxu0 %v2755
    %2846 = vmatpush.bf16.msra.mxu0 %v2753
    %2847 = vmatpush.bf16.msra.mxu0 %v2751
    %2848 = vmatmul.bf16.gmra.mxu0 %v2650
    %v2849 = vpop.f32.mrf.mxu0
    %v2850 = vadd.f32 0.0, %v2849
    %v2851 = vpop.f32.mrf.mxu0
    %2852 = vdwg.mxu0
    %2853 = vmatpush.bf16.msra.mxu0 %v2781
    %2854 = vmatpush.bf16.msra.mxu0 %v2779
    %2855 = vmatpush.bf16.msra.mxu0 %v2777
    %2856 = vmatpush.bf16.msra.mxu0 %v2775
    %2857 = vmatpush.bf16.msra.mxu0 %v2773
    %2858 = vmatpush.bf16.msra.mxu0 %v2771
    %2859 = vmatpush.bf16.msra.mxu0 %v2769
    %2860 = vmatpush.bf16.msra.mxu0 %v2767
    %2861 = vmatmul.bf16.gmra.mxu0 %v2651
    %v2862 = vpop.f32.mrf.mxu0
    %v2863 = vadd.f32 %v2850, %v2862
    %v2864 = vpop.f32.mrf.mxu0
    %2865 = vdwg.mxu0
    %v2866 = vadd.f32 %v2585, %v2837
    %v2867 = vadd.f32 %v2586, %v2863
    %s2868 = scalar_lea.vmem [#allocation4], 7
    %v2869 = vld [vmem:[%s2868] ss:$8 sm:$0x3]
    %s2870 = scalar_lea.vmem [#allocation4], 39
    %v2871 = vld [vmem:[%s2870] ss:$8 sm:$0x3]
    %v2874 = vperm.slane %v2869, 0
    %v2875 = vperm.slane %v2869, 1
    %v2876 = vperm.slane %v2871, 0
    %v2877 = vperm.slane %v2871, 1
    %v2882 = vpack.c.bf16 %v2874, %v2874
    %v2883 = vpack.c.bf16 %v2875, %v2875
    %v2884 = vpack.c.bf16 %v2876, %v2876
    %v2885 = vpack.c.bf16 %v2877, %v2877
    %s2886 = scalar_lea.vmem [#allocation5], 1792
    %v2887 = vld [vmem:[%s2886] sm:$0xff]
    %v2888 = vld [vmem:[%s2886 + $0x8] sm:$0xff]
    %v2889 = vld [vmem:[%s2886 + $0x10] sm:$0xff]
    %v2890 = vld [vmem:[%s2886 + $0x18] sm:$0xff]
    %v2891 = vld [vmem:[%s2886 + $0x20] sm:$0xff]
    %v2892 = vld [vmem:[%s2886 + $0x28] sm:$0xff]
    %v2893 = vld [vmem:[%s2886 + $0x30] sm:$0xff]
    %v2894 = vld [vmem:[%s2886 + $0x38] sm:$0xff]
    %v2895 = vld [vmem:[%s2886 + $0x40] sm:$0xff]
    %v2896 = vld [vmem:[%s2886 + $0x48] sm:$0xff]
    %v2897 = vld [vmem:[%s2886 + $0x50] sm:$0xff]
    %v2898 = vld [vmem:[%s2886 + $0x58] sm:$0xff]
    %v2899 = vld [vmem:[%s2886 + $0x60] sm:$0xff]
    %v2900 = vld [vmem:[%s2886 + $0x68] sm:$0xff]
    %v2901 = vld [vmem:[%s2886 + $0x70] sm:$0xff]
    %v2902 = vld [vmem:[%s2886 + $0x78] sm:$0xff]
    %v2903 = vld [vmem:[%s2886 + $0x80] sm:$0xff]
    %v2904 = vld [vmem:[%s2886 + $0x88] sm:$0xff]
    %v2905 = vld [vmem:[%s2886 + $0x90] sm:$0xff]
    %v2906 = vld [vmem:[%s2886 + $0x98] sm:$0xff]
    %v2907 = vld [vmem:[%s2886 + $0xa0] sm:$0xff]
    %v2908 = vld [vmem:[%s2886 + $0xa8] sm:$0xff]
    %v2909 = vld [vmem:[%s2886 + $0xb0] sm:$0xff]
    %v2910 = vld [vmem:[%s2886 + $0xb8] sm:$0xff]
    %v2911 = vld [vmem:[%s2886 + $0xc0] sm:$0xff]
    %v2912 = vld [vmem:[%s2886 + $0xc8] sm:$0xff]
    %v2913 = vld [vmem:[%s2886 + $0xd0] sm:$0xff]
    %v2914 = vld [vmem:[%s2886 + $0xd8] sm:$0xff]
    %v2915 = vld [vmem:[%s2886 + $0xe0] sm:$0xff]
    %v2916 = vld [vmem:[%s2886 + $0xe8] sm:$0xff]
    %v2917 = vld [vmem:[%s2886 + $0xf0] sm:$0xff]
    %v2918 = vld [vmem:[%s2886 + $0xf8] sm:$0xff]
    %v2923 = vunpack.c.l.b16 %v2882
    %v2924 = vunpack.c.l.b16 %v2883
    %v2925 = vunpack.c.l.b16 %v2884
    %v2926 = vunpack.c.l.b16 %v2885
    %v2927 = vrot.slane %v2925, 7
    %v2928 = vsel %vm960, %v2927, %v2923
    %v2929 = vrot.slane %v2926, 7
    %v2930 = vsel %vm960, %v2929, %v2924
    %v2931 = vpack.c.b16 %v2928, %v2928
    %v2932 = vpack.c.b16 %v2930, %v2930
    %v2967 = vunpack.c.l.b16 %v2887
    %v2968 = vunpack.c.h.b16 %v2887
    %v2969 = vunpack.c.l.b16 %v2888
    %v2970 = vunpack.c.h.b16 %v2888
    %v2971 = vunpack.c.l.b16 %v2889
    %v2972 = vunpack.c.h.b16 %v2889
    %v2973 = vunpack.c.l.b16 %v2890
    %v2974 = vunpack.c.h.b16 %v2890
    %v2975 = vunpack.c.l.b16 %v2891
    %v2976 = vunpack.c.h.b16 %v2891
    %v2977 = vunpack.c.l.b16 %v2892
    %v2978 = vunpack.c.h.b16 %v2892
    %v2979 = vunpack.c.l.b16 %v2893
    %v2980 = vunpack.c.h.b16 %v2893
    %v2981 = vunpack.c.l.b16 %v2894
    %v2982 = vunpack.c.h.b16 %v2894
    %v2983 = vunpack.c.l.b16 %v2895
    %v2984 = vunpack.c.h.b16 %v2895
    %v2985 = vunpack.c.l.b16 %v2896
    %v2986 = vunpack.c.h.b16 %v2896
    %v2987 = vunpack.c.l.b16 %v2897
    %v2988 = vunpack.c.h.b16 %v2897
    %v2989 = vunpack.c.l.b16 %v2898
    %v2990 = vunpack.c.h.b16 %v2898
    %v2991 = vunpack.c.l.b16 %v2899
    %v2992 = vunpack.c.h.b16 %v2899
    %v2993 = vunpack.c.l.b16 %v2900
    %v2994 = vunpack.c.h.b16 %v2900
    %v2995 = vunpack.c.l.b16 %v2901
    %v2996 = vunpack.c.h.b16 %v2901
    %v2997 = vunpack.c.l.b16 %v2902
    %v2998 = vunpack.c.h.b16 %v2902
    %v2999 = vunpack.c.l.b16 %v2903
    %v3000 = vunpack.c.h.b16 %v2903
    %v3001 = vunpack.c.l.b16 %v2904
    %v3002 = vunpack.c.h.b16 %v2904
    %v3003 = vunpack.c.l.b16 %v2905
    %v3004 = vunpack.c.h.b16 %v2905
    %v3005 = vunpack.c.l.b16 %v2906
    %v3006 = vunpack.c.h.b16 %v2906
    %v3007 = vunpack.c.l.b16 %v2907
    %v3008 = vunpack.c.h.b16 %v2907
    %v3009 = vunpack.c.l.b16 %v2908
    %v3010 = vunpack.c.h.b16 %v2908
    %v3011 = vunpack.c.l.b16 %v2909
    %v3012 = vunpack.c.h.b16 %v2909
    %v3013 = vunpack.c.l.b16 %v2910
    %v3014 = vunpack.c.h.b16 %v2910
    %v3015 = vunpack.c.l.b16 %v2911
    %v3016 = vunpack.c.h.b16 %v2911
    %v3017 = vunpack.c.l.b16 %v2912
    %v3018 = vunpack.c.h.b16 %v2912
    %v3019 = vunpack.c.l.b16 %v2913
    %v3020 = vunpack.c.h.b16 %v2913
    %v3021 = vunpack.c.l.b16 %v2914
    %v3022 = vunpack.c.h.b16 %v2914
    %v3023 = vunpack.c.l.b16 %v2915
    %v3024 = vunpack.c.h.b16 %v2915
    %v3025 = vunpack.c.l.b16 %v2916
    %v3026 = vunpack.c.h.b16 %v2916
    %v3027 = vunpack.c.l.b16 %v2917
    %v3028 = vunpack.c.h.b16 %v2917
    %v3029 = vunpack.c.l.b16 %v2918
    %v3030 = vunpack.c.h.b16 %v2918
    %v3031 = vpack.c.b16 %v2969, %v2967
    %v3032 = vpack.c.b16 %v2970, %v2968
    %v3033 = vpack.c.b16 %v2973, %v2971
    %v3034 = vpack.c.b16 %v2974, %v2972
    %v3035 = vpack.c.b16 %v2977, %v2975
    %v3036 = vpack.c.b16 %v2978, %v2976
    %v3037 = vpack.c.b16 %v2981, %v2979
    %v3038 = vpack.c.b16 %v2982, %v2980
    %v3039 = vpack.c.b16 %v2985, %v2983
    %v3040 = vpack.c.b16 %v2986, %v2984
    %v3041 = vpack.c.b16 %v2989, %v2987
    %v3042 = vpack.c.b16 %v2990, %v2988
    %v3043 = vpack.c.b16 %v2993, %v2991
    %v3044 = vpack.c.b16 %v2994, %v2992
    %v3045 = vpack.c.b16 %v2997, %v2995
    %v3046 = vpack.c.b16 %v2998, %v2996
    %v3047 = vpack.c.b16 %v3001, %v2999
    %v3048 = vpack.c.b16 %v3002, %v3000
    %v3049 = vpack.c.b16 %v3005, %v3003
    %v3050 = vpack.c.b16 %v3006, %v3004
    %v3051 = vpack.c.b16 %v3009, %v3007
    %v3052 = vpack.c.b16 %v3010, %v3008
    %v3053 = vpack.c.b16 %v3013, %v3011
    %v3054 = vpack.c.b16 %v3014, %v3012
    %v3055 = vpack.c.b16 %v3017, %v3015
    %v3056 = vpack.c.b16 %v3018, %v3016
    %v3057 = vpack.c.b16 %v3021, %v3019
    %v3058 = vpack.c.b16 %v3022, %v3020
    %v3059 = vpack.c.b16 %v3025, %v3023
    %v3060 = vpack.c.b16 %v3026, %v3024
    %v3061 = vpack.c.b16 %v3029, %v3027
    %v3062 = vpack.c.b16 %v3030, %v3028
    %3095 = vmatpush.bf16.msra.mxu0 %v3045
    %3096 = vmatpush.bf16.msra.mxu0 %v3043
    %3097 = vmatpush.bf16.msra.mxu0 %v3041
    %3098 = vmatpush.bf16.msra.mxu0 %v3039
    %3099 = vmatpush.bf16.msra.mxu0 %v3037
    %3100 = vmatpush.bf16.msra.mxu0 %v3035
    %3101 = vmatpush.bf16.msra.mxu0 %v3033
    %3102 = vmatpush.bf16.msra.mxu0 %v3031
    %3103 = vmatmul.bf16.gmra.mxu0 %v2931
    %v3104 = vpop.f32.mrf.mxu0
    %v3105 = vadd.f32 0.0, %v3104
    %v3106 = vpop.f32.mrf.mxu0
    %3107 = vdwg.mxu0
    %3108 = vmatpush.bf16.msra.mxu0 %v3061
    %3109 = vmatpush.bf16.msra.mxu0 %v3059
    %3110 = vmatpush.bf16.msra.mxu0 %v3057
    %3111 = vmatpush.bf16.msra.mxu0 %v3055
    %3112 = vmatpush.bf16.msra.mxu0 %v3053
    %3113 = vmatpush.bf16.msra.mxu0 %v3051
    %3114 = vmatpush.bf16.msra.mxu0 %v3049
    %3115 = vmatpush.bf16.msra.mxu0 %v3047
    %3116 = vmatmul.bf16.gmra.mxu0 %v2932
    %v3117 = vpop.f32.mrf.mxu0
    %v3118 = vadd.f32 %v3105, %v3117
    %v3119 = vpop.f32.mrf.mxu0
    %3120 = vdwg.mxu0
    %3121 = vmatpush.bf16.msra.mxu0 %v3046
    %3122 = vmatpush.bf16.msra.mxu0 %v3044
    %3123 = vmatpush.bf16.msra.mxu0 %v3042
    %3124 = vmatpush.bf16.msra.mxu0 %v3040
    %3125 = vmatpush.bf16.msra.mxu0 %v3038
    %3126 = vmatpush.bf16.msra.mxu0 %v3036
    %3127 = vmatpush.bf16.msra.mxu0 %v3034
    %3128 = vmatpush.bf16.msra.mxu0 %v3032
    %3129 = vmatmul.bf16.gmra.mxu0 %v2931
    %v3130 = vpop.f32.mrf.mxu0
    %v3131 = vadd.f32 0.0, %v3130
    %v3132 = vpop.f32.mrf.mxu0
    %3133 = vdwg.mxu0
    %3134 = vmatpush.bf16.msra.mxu0 %v3062
    %3135 = vmatpush.bf16.msra.mxu0 %v3060
    %3136 = vmatpush.bf16.msra.mxu0 %v3058
    %3137 = vmatpush.bf16.msra.mxu0 %v3056
    %3138 = vmatpush.bf16.msra.mxu0 %v3054
    %3139 = vmatpush.bf16.msra.mxu0 %v3052
    %3140 = vmatpush.bf16.msra.mxu0 %v3050
    %3141 = vmatpush.bf16.msra.mxu0 %v3048
    %3142 = vmatmul.bf16.gmra.mxu0 %v2932
    %v3143 = vpop.f32.mrf.mxu0
    %v3144 = vadd.f32 %v3131, %v3143
    %v3145 = vpop.f32.mrf.mxu0
    %3146 = vdwg.mxu0
    %v3147 = vadd.f32 %v2866, %v3118
    %v3148 = vadd.f32 %v2867, %v3144
    %s3149 = scalar_lea.vmem [#allocation4], 16
    %v3150 = vld [vmem:[%s3149] ss:$8 sm:$0x3]
    %s3151 = scalar_lea.vmem [#allocation4], 48
    %v3152 = vld [vmem:[%s3151] ss:$8 sm:$0x3]
    %v3155 = vperm.slane %v3150, 0
    %v3156 = vperm.slane %v3150, 1
    %v3157 = vperm.slane %v3152, 0
    %v3158 = vperm.slane %v3152, 1
    %v3163 = vpack.c.bf16 %v3155, %v3155
    %v3164 = vpack.c.bf16 %v3156, %v3156
    %v3165 = vpack.c.bf16 %v3157, %v3157
    %v3166 = vpack.c.bf16 %v3158, %v3158
    %s3167 = scalar_lea.vmem [#allocation5], 2048
    %v3168 = vld [vmem:[%s3167] sm:$0xff]
    %v3169 = vld [vmem:[%s3167 + $0x8] sm:$0xff]
    %v3170 = vld [vmem:[%s3167 + $0x10] sm:$0xff]
    %v3171 = vld [vmem:[%s3167 + $0x18] sm:$0xff]
    %v3172 = vld [vmem:[%s3167 + $0x20] sm:$0xff]
    %v3173 = vld [vmem:[%s3167 + $0x28] sm:$0xff]
    %v3174 = vld [vmem:[%s3167 + $0x30] sm:$0xff]
    %v3175 = vld [vmem:[%s3167 + $0x38] sm:$0xff]
    %v3176 = vld [vmem:[%s3167 + $0x40] sm:$0xff]
    %v3177 = vld [vmem:[%s3167 + $0x48] sm:$0xff]
    %v3178 = vld [vmem:[%s3167 + $0x50] sm:$0xff]
    %v3179 = vld [vmem:[%s3167 + $0x58] sm:$0xff]
    %v3180 = vld [vmem:[%s3167 + $0x60] sm:$0xff]
    %v3181 = vld [vmem:[%s3167 + $0x68] sm:$0xff]
    %v3182 = vld [vmem:[%s3167 + $0x70] sm:$0xff]
    %v3183 = vld [vmem:[%s3167 + $0x78] sm:$0xff]
    %v3184 = vld [vmem:[%s3167 + $0x80] sm:$0xff]
    %v3185 = vld [vmem:[%s3167 + $0x88] sm:$0xff]
    %v3186 = vld [vmem:[%s3167 + $0x90] sm:$0xff]
    %v3187 = vld [vmem:[%s3167 + $0x98] sm:$0xff]
    %v3188 = vld [vmem:[%s3167 + $0xa0] sm:$0xff]
    %v3189 = vld [vmem:[%s3167 + $0xa8] sm:$0xff]
    %v3190 = vld [vmem:[%s3167 + $0xb0] sm:$0xff]
    %v3191 = vld [vmem:[%s3167 + $0xb8] sm:$0xff]
    %v3192 = vld [vmem:[%s3167 + $0xc0] sm:$0xff]
    %v3193 = vld [vmem:[%s3167 + $0xc8] sm:$0xff]
    %v3194 = vld [vmem:[%s3167 + $0xd0] sm:$0xff]
    %v3195 = vld [vmem:[%s3167 + $0xd8] sm:$0xff]
    %v3196 = vld [vmem:[%s3167 + $0xe0] sm:$0xff]
    %v3197 = vld [vmem:[%s3167 + $0xe8] sm:$0xff]
    %v3198 = vld [vmem:[%s3167 + $0xf0] sm:$0xff]
    %v3199 = vld [vmem:[%s3167 + $0xf8] sm:$0xff]
    %v3204 = vunpack.c.l.b16 %v3163
    %v3205 = vunpack.c.l.b16 %v3164
    %v3206 = vunpack.c.l.b16 %v3165
    %v3207 = vunpack.c.l.b16 %v3166
    %v3208 = vrot.slane %v3206, 7
    %v3209 = vsel %vm960, %v3208, %v3204
    %v3210 = vrot.slane %v3207, 7
    %v3211 = vsel %vm960, %v3210, %v3205
    %v3212 = vpack.c.b16 %v3209, %v3209
    %v3213 = vpack.c.b16 %v3211, %v3211
    %v3248 = vunpack.c.l.b16 %v3168
    %v3249 = vunpack.c.h.b16 %v3168
    %v3250 = vunpack.c.l.b16 %v3169
    %v3251 = vunpack.c.h.b16 %v3169
    %v3252 = vunpack.c.l.b16 %v3170
    %v3253 = vunpack.c.h.b16 %v3170
    %v3254 = vunpack.c.l.b16 %v3171
    %v3255 = vunpack.c.h.b16 %v3171
    %v3256 = vunpack.c.l.b16 %v3172
    %v3257 = vunpack.c.h.b16 %v3172
    %v3258 = vunpack.c.l.b16 %v3173
    %v3259 = vunpack.c.h.b16 %v3173
    %v3260 = vunpack.c.l.b16 %v3174
    %v3261 = vunpack.c.h.b16 %v3174
    %v3262 = vunpack.c.l.b16 %v3175
    %v3263 = vunpack.c.h.b16 %v3175
    %v3264 = vunpack.c.l.b16 %v3176
    %v3265 = vunpack.c.h.b16 %v3176
    %v3266 = vunpack.c.l.b16 %v3177
    %v3267 = vunpack.c.h.b16 %v3177
    %v3268 = vunpack.c.l.b16 %v3178
    %v3269 = vunpack.c.h.b16 %v3178
    %v3270 = vunpack.c.l.b16 %v3179
    %v3271 = vunpack.c.h.b16 %v3179
    %v3272 = vunpack.c.l.b16 %v3180
    %v3273 = vunpack.c.h.b16 %v3180
    %v3274 = vunpack.c.l.b16 %v3181
    %v3275 = vunpack.c.h.b16 %v3181
    %v3276 = vunpack.c.l.b16 %v3182
    %v3277 = vunpack.c.h.b16 %v3182
    %v3278 = vunpack.c.l.b16 %v3183
    %v3279 = vunpack.c.h.b16 %v3183
    %v3280 = vunpack.c.l.b16 %v3184
    %v3281 = vunpack.c.h.b16 %v3184
    %v3282 = vunpack.c.l.b16 %v3185
    %v3283 = vunpack.c.h.b16 %v3185
    %v3284 = vunpack.c.l.b16 %v3186
    %v3285 = vunpack.c.h.b16 %v3186
    %v3286 = vunpack.c.l.b16 %v3187
    %v3287 = vunpack.c.h.b16 %v3187
    %v3288 = vunpack.c.l.b16 %v3188
    %v3289 = vunpack.c.h.b16 %v3188
    %v3290 = vunpack.c.l.b16 %v3189
    %v3291 = vunpack.c.h.b16 %v3189
    %v3292 = vunpack.c.l.b16 %v3190
    %v3293 = vunpack.c.h.b16 %v3190
    %v3294 = vunpack.c.l.b16 %v3191
    %v3295 = vunpack.c.h.b16 %v3191
    %v3296 = vunpack.c.l.b16 %v3192
    %v3297 = vunpack.c.h.b16 %v3192
    %v3298 = vunpack.c.l.b16 %v3193
    %v3299 = vunpack.c.h.b16 %v3193
    %v3300 = vunpack.c.l.b16 %v3194
    %v3301 = vunpack.c.h.b16 %v3194
    %v3302 = vunpack.c.l.b16 %v3195
    %v3303 = vunpack.c.h.b16 %v3195
    %v3304 = vunpack.c.l.b16 %v3196
    %v3305 = vunpack.c.h.b16 %v3196
    %v3306 = vunpack.c.l.b16 %v3197
    %v3307 = vunpack.c.h.b16 %v3197
    %v3308 = vunpack.c.l.b16 %v3198
    %v3309 = vunpack.c.h.b16 %v3198
    %v3310 = vunpack.c.l.b16 %v3199
    %v3311 = vunpack.c.h.b16 %v3199
    %v3312 = vpack.c.b16 %v3250, %v3248
    %v3313 = vpack.c.b16 %v3251, %v3249
    %v3314 = vpack.c.b16 %v3254, %v3252
    %v3315 = vpack.c.b16 %v3255, %v3253
    %v3316 = vpack.c.b16 %v3258, %v3256
    %v3317 = vpack.c.b16 %v3259, %v3257
    %v3318 = vpack.c.b16 %v3262, %v3260
    %v3319 = vpack.c.b16 %v3263, %v3261
    %v3320 = vpack.c.b16 %v3266, %v3264
    %v3321 = vpack.c.b16 %v3267, %v3265
    %v3322 = vpack.c.b16 %v3270, %v3268
    %v3323 = vpack.c.b16 %v3271, %v3269
    %v3324 = vpack.c.b16 %v3274, %v3272
    %v3325 = vpack.c.b16 %v3275, %v3273
    %v3326 = vpack.c.b16 %v3278, %v3276
    %v3327 = vpack.c.b16 %v3279, %v3277
    %v3328 = vpack.c.b16 %v3282, %v3280
    %v3329 = vpack.c.b16 %v3283, %v3281
    %v3330 = vpack.c.b16 %v3286, %v3284
    %v3331 = vpack.c.b16 %v3287, %v3285
    %v3332 = vpack.c.b16 %v3290, %v3288
    %v3333 = vpack.c.b16 %v3291, %v3289
    %v3334 = vpack.c.b16 %v3294, %v3292
    %v3335 = vpack.c.b16 %v3295, %v3293
    %v3336 = vpack.c.b16 %v3298, %v3296
    %v3337 = vpack.c.b16 %v3299, %v3297
    %v3338 = vpack.c.b16 %v3302, %v3300
    %v3339 = vpack.c.b16 %v3303, %v3301
    %v3340 = vpack.c.b16 %v3306, %v3304
    %v3341 = vpack.c.b16 %v3307, %v3305
    %v3342 = vpack.c.b16 %v3310, %v3308
    %v3343 = vpack.c.b16 %v3311, %v3309
    %3376 = vmatpush.bf16.msra.mxu0 %v3326
    %3377 = vmatpush.bf16.msra.mxu0 %v3324
    %3378 = vmatpush.bf16.msra.mxu0 %v3322
    %3379 = vmatpush.bf16.msra.mxu0 %v3320
    %3380 = vmatpush.bf16.msra.mxu0 %v3318
    %3381 = vmatpush.bf16.msra.mxu0 %v3316
    %3382 = vmatpush.bf16.msra.mxu0 %v3314
    %3383 = vmatpush.bf16.msra.mxu0 %v3312
    %3384 = vmatmul.bf16.gmra.mxu0 %v3212
    %v3385 = vpop.f32.mrf.mxu0
    %v3386 = vadd.f32 0.0, %v3385
    %v3387 = vpop.f32.mrf.mxu0
    %3388 = vdwg.mxu0
    %3389 = vmatpush.bf16.msra.mxu0 %v3342
    %3390 = vmatpush.bf16.msra.mxu0 %v3340
    %3391 = vmatpush.bf16.msra.mxu0 %v3338
    %3392 = vmatpush.bf16.msra.mxu0 %v3336
    %3393 = vmatpush.bf16.msra.mxu0 %v3334
    %3394 = vmatpush.bf16.msra.mxu0 %v3332
    %3395 = vmatpush.bf16.msra.mxu0 %v3330
    %3396 = vmatpush.bf16.msra.mxu0 %v3328
    %3397 = vmatmul.bf16.gmra.mxu0 %v3213
    %v3398 = vpop.f32.mrf.mxu0
    %v3399 = vadd.f32 %v3386, %v3398
    %v3400 = vpop.f32.mrf.mxu0
    %3401 = vdwg.mxu0
    %3402 = vmatpush.bf16.msra.mxu0 %v3327
    %3403 = vmatpush.bf16.msra.mxu0 %v3325
    %3404 = vmatpush.bf16.msra.mxu0 %v3323
    %3405 = vmatpush.bf16.msra.mxu0 %v3321
    %3406 = vmatpush.bf16.msra.mxu0 %v3319
    %3407 = vmatpush.bf16.msra.mxu0 %v3317
    %3408 = vmatpush.bf16.msra.mxu0 %v3315
    %3409 = vmatpush.bf16.msra.mxu0 %v3313
    %3410 = vmatmul.bf16.gmra.mxu0 %v3212
    %v3411 = vpop.f32.mrf.mxu0
    %v3412 = vadd.f32 0.0, %v3411
    %v3413 = vpop.f32.mrf.mxu0
    %3414 = vdwg.mxu0
    %3415 = vmatpush.bf16.msra.mxu0 %v3343
    %3416 = vmatpush.bf16.msra.mxu0 %v3341
    %3417 = vmatpush.bf16.msra.mxu0 %v3339
    %3418 = vmatpush.bf16.msra.mxu0 %v3337
    %3419 = vmatpush.bf16.msra.mxu0 %v3335
    %3420 = vmatpush.bf16.msra.mxu0 %v3333
    %3421 = vmatpush.bf16.msra.mxu0 %v3331
    %3422 = vmatpush.bf16.msra.mxu0 %v3329
    %3423 = vmatmul.bf16.gmra.mxu0 %v3213
    %v3424 = vpop.f32.mrf.mxu0
    %v3425 = vadd.f32 %v3412, %v3424
    %v3426 = vpop.f32.mrf.mxu0
    %3427 = vdwg.mxu0
    %v3428 = vadd.f32 %v3147, %v3399
    %v3429 = vadd.f32 %v3148, %v3425
    %s3430 = scalar_lea.vmem [#allocation4], 17
    %v3431 = vld [vmem:[%s3430] ss:$8 sm:$0x3]
    %s3432 = scalar_lea.vmem [#allocation4], 49
    %v3433 = vld [vmem:[%s3432] ss:$8 sm:$0x3]
    %v3436 = vperm.slane %v3431, 0
    %v3437 = vperm.slane %v3431, 1
    %v3438 = vperm.slane %v3433, 0
    %v3439 = vperm.slane %v3433, 1
    %v3444 = vpack.c.bf16 %v3436, %v3436
    %v3445 = vpack.c.bf16 %v3437, %v3437
    %v3446 = vpack.c.bf16 %v3438, %v3438
    %v3447 = vpack.c.bf16 %v3439, %v3439
    %s3448 = scalar_lea.vmem [#allocation5], 2304
    %v3449 = vld [vmem:[%s3448] sm:$0xff]
    %v3450 = vld [vmem:[%s3448 + $0x8] sm:$0xff]
    %v3451 = vld [vmem:[%s3448 + $0x10] sm:$0xff]
    %v3452 = vld [vmem:[%s3448 + $0x18] sm:$0xff]
    %v3453 = vld [vmem:[%s3448 + $0x20] sm:$0xff]
    %v3454 = vld [vmem:[%s3448 + $0x28] sm:$0xff]
    %v3455 = vld [vmem:[%s3448 + $0x30] sm:$0xff]
    %v3456 = vld [vmem:[%s3448 + $0x38] sm:$0xff]
    %v3457 = vld [vmem:[%s3448 + $0x40] sm:$0xff]
    %v3458 = vld [vmem:[%s3448 + $0x48] sm:$0xff]
    %v3459 = vld [vmem:[%s3448 + $0x50] sm:$0xff]
    %v3460 = vld [vmem:[%s3448 + $0x58] sm:$0xff]
    %v3461 = vld [vmem:[%s3448 + $0x60] sm:$0xff]
    %v3462 = vld [vmem:[%s3448 + $0x68] sm:$0xff]
    %v3463 = vld [vmem:[%s3448 + $0x70] sm:$0xff]
    %v3464 = vld [vmem:[%s3448 + $0x78] sm:$0xff]
    %v3465 = vld [vmem:[%s3448 + $0x80] sm:$0xff]
    %v3466 = vld [vmem:[%s3448 + $0x88] sm:$0xff]
    %v3467 = vld [vmem:[%s3448 + $0x90] sm:$0xff]
    %v3468 = vld [vmem:[%s3448 + $0x98] sm:$0xff]
    %v3469 = vld [vmem:[%s3448 + $0xa0] sm:$0xff]
    %v3470 = vld [vmem:[%s3448 + $0xa8] sm:$0xff]
    %v3471 = vld [vmem:[%s3448 + $0xb0] sm:$0xff]
    %v3472 = vld [vmem:[%s3448 + $0xb8] sm:$0xff]
    %v3473 = vld [vmem:[%s3448 + $0xc0] sm:$0xff]
    %v3474 = vld [vmem:[%s3448 + $0xc8] sm:$0xff]
    %v3475 = vld [vmem:[%s3448 + $0xd0] sm:$0xff]
    %v3476 = vld [vmem:[%s3448 + $0xd8] sm:$0xff]
    %v3477 = vld [vmem:[%s3448 + $0xe0] sm:$0xff]
    %v3478 = vld [vmem:[%s3448 + $0xe8] sm:$0xff]
    %v3479 = vld [vmem:[%s3448 + $0xf0] sm:$0xff]
    %v3480 = vld [vmem:[%s3448 + $0xf8] sm:$0xff]
    %v3485 = vunpack.c.l.b16 %v3444
    %v3486 = vunpack.c.l.b16 %v3445
    %v3487 = vunpack.c.l.b16 %v3446
    %v3488 = vunpack.c.l.b16 %v3447
    %v3489 = vrot.slane %v3487, 7
    %v3490 = vsel %vm960, %v3489, %v3485
    %v3491 = vrot.slane %v3488, 7
    %v3492 = vsel %vm960, %v3491, %v3486
    %v3493 = vpack.c.b16 %v3490, %v3490
    %v3494 = vpack.c.b16 %v3492, %v3492
    %v3529 = vunpack.c.l.b16 %v3449
    %v3530 = vunpack.c.h.b16 %v3449
    %v3531 = vunpack.c.l.b16 %v3450
    %v3532 = vunpack.c.h.b16 %v3450
    %v3533 = vunpack.c.l.b16 %v3451
    %v3534 = vunpack.c.h.b16 %v3451
    %v3535 = vunpack.c.l.b16 %v3452
    %v3536 = vunpack.c.h.b16 %v3452
    %v3537 = vunpack.c.l.b16 %v3453
    %v3538 = vunpack.c.h.b16 %v3453
    %v3539 = vunpack.c.l.b16 %v3454
    %v3540 = vunpack.c.h.b16 %v3454
    %v3541 = vunpack.c.l.b16 %v3455
    %v3542 = vunpack.c.h.b16 %v3455
    %v3543 = vunpack.c.l.b16 %v3456
    %v3544 = vunpack.c.h.b16 %v3456
    %v3545 = vunpack.c.l.b16 %v3457
    %v3546 = vunpack.c.h.b16 %v3457
    %v3547 = vunpack.c.l.b16 %v3458
    %v3548 = vunpack.c.h.b16 %v3458
    %v3549 = vunpack.c.l.b16 %v3459
    %v3550 = vunpack.c.h.b16 %v3459
    %v3551 = vunpack.c.l.b16 %v3460
    %v3552 = vunpack.c.h.b16 %v3460
    %v3553 = vunpack.c.l.b16 %v3461
    %v3554 = vunpack.c.h.b16 %v3461
    %v3555 = vunpack.c.l.b16 %v3462
    %v3556 = vunpack.c.h.b16 %v3462
    %v3557 = vunpack.c.l.b16 %v3463
    %v3558 = vunpack.c.h.b16 %v3463
    %v3559 = vunpack.c.l.b16 %v3464
    %v3560 = vunpack.c.h.b16 %v3464
    %v3561 = vunpack.c.l.b16 %v3465
    %v3562 = vunpack.c.h.b16 %v3465
    %v3563 = vunpack.c.l.b16 %v3466
    %v3564 = vunpack.c.h.b16 %v3466
    %v3565 = vunpack.c.l.b16 %v3467
    %v3566 = vunpack.c.h.b16 %v3467
    %v3567 = vunpack.c.l.b16 %v3468
    %v3568 = vunpack.c.h.b16 %v3468
    %v3569 = vunpack.c.l.b16 %v3469
    %v3570 = vunpack.c.h.b16 %v3469
    %v3571 = vunpack.c.l.b16 %v3470
    %v3572 = vunpack.c.h.b16 %v3470
    %v3573 = vunpack.c.l.b16 %v3471
    %v3574 = vunpack.c.h.b16 %v3471
    %v3575 = vunpack.c.l.b16 %v3472
    %v3576 = vunpack.c.h.b16 %v3472
    %v3577 = vunpack.c.l.b16 %v3473
    %v3578 = vunpack.c.h.b16 %v3473
    %v3579 = vunpack.c.l.b16 %v3474
    %v3580 = vunpack.c.h.b16 %v3474
    %v3581 = vunpack.c.l.b16 %v3475
    %v3582 = vunpack.c.h.b16 %v3475
    %v3583 = vunpack.c.l.b16 %v3476
    %v3584 = vunpack.c.h.b16 %v3476
    %v3585 = vunpack.c.l.b16 %v3477
    %v3586 = vunpack.c.h.b16 %v3477
    %v3587 = vunpack.c.l.b16 %v3478
    %v3588 = vunpack.c.h.b16 %v3478
    %v3589 = vunpack.c.l.b16 %v3479
    %v3590 = vunpack.c.h.b16 %v3479
    %v3591 = vunpack.c.l.b16 %v3480
    %v3592 = vunpack.c.h.b16 %v3480
    %v3593 = vpack.c.b16 %v3531, %v3529
    %v3594 = vpack.c.b16 %v3532, %v3530
    %v3595 = vpack.c.b16 %v3535, %v3533
    %v3596 = vpack.c.b16 %v3536, %v3534
    %v3597 = vpack.c.b16 %v3539, %v3537
    %v3598 = vpack.c.b16 %v3540, %v3538
    %v3599 = vpack.c.b16 %v3543, %v3541
    %v3600 = vpack.c.b16 %v3544, %v3542
    %v3601 = vpack.c.b16 %v3547, %v3545
    %v3602 = vpack.c.b16 %v3548, %v3546
    %v3603 = vpack.c.b16 %v3551, %v3549
    %v3604 = vpack.c.b16 %v3552, %v3550
    %v3605 = vpack.c.b16 %v3555, %v3553
    %v3606 = vpack.c.b16 %v3556, %v3554
    %v3607 = vpack.c.b16 %v3559, %v3557
    %v3608 = vpack.c.b16 %v3560, %v3558
    %v3609 = vpack.c.b16 %v3563, %v3561
    %v3610 = vpack.c.b16 %v3564, %v3562
    %v3611 = vpack.c.b16 %v3567, %v3565
    %v3612 = vpack.c.b16 %v3568, %v3566
    %v3613 = vpack.c.b16 %v3571, %v3569
    %v3614 = vpack.c.b16 %v3572, %v3570
    %v3615 = vpack.c.b16 %v3575, %v3573
    %v3616 = vpack.c.b16 %v3576, %v3574
    %v3617 = vpack.c.b16 %v3579, %v3577
    %v3618 = vpack.c.b16 %v3580, %v3578
    %v3619 = vpack.c.b16 %v3583, %v3581
    %v3620 = vpack.c.b16 %v3584, %v3582
    %v3621 = vpack.c.b16 %v3587, %v3585
    %v3622 = vpack.c.b16 %v3588, %v3586
    %v3623 = vpack.c.b16 %v3591, %v3589
    %v3624 = vpack.c.b16 %v3592, %v3590
    %3657 = vmatpush.bf16.msra.mxu0 %v3607
    %3658 = vmatpush.bf16.msra.mxu0 %v3605
    %3659 = vmatpush.bf16.msra.mxu0 %v3603
    %3660 = vmatpush.bf16.msra.mxu0 %v3601
    %3661 = vmatpush.bf16.msra.mxu0 %v3599
    %3662 = vmatpush.bf16.msra.mxu0 %v3597
    %3663 = vmatpush.bf16.msra.mxu0 %v3595
    %3664 = vmatpush.bf16.msra.mxu0 %v3593
    %3665 = vmatmul.bf16.gmra.mxu0 %v3493
    %v3666 = vpop.f32.mrf.mxu0
    %v3667 = vadd.f32 0.0, %v3666
    %v3668 = vpop.f32.mrf.mxu0
    %3669 = vdwg.mxu0
    %3670 = vmatpush.bf16.msra.mxu0 %v3623
    %3671 = vmatpush.bf16.msra.mxu0 %v3621
    %3672 = vmatpush.bf16.msra.mxu0 %v3619
    %3673 = vmatpush.bf16.msra.mxu0 %v3617
    %3674 = vmatpush.bf16.msra.mxu0 %v3615
    %3675 = vmatpush.bf16.msra.mxu0 %v3613
    %3676 = vmatpush.bf16.msra.mxu0 %v3611
    %3677 = vmatpush.bf16.msra.mxu0 %v3609
    %3678 = vmatmul.bf16.gmra.mxu0 %v3494
    %v3679 = vpop.f32.mrf.mxu0
    %v3680 = vadd.f32 %v3667, %v3679
    %v3681 = vpop.f32.mrf.mxu0
    %3682 = vdwg.mxu0
    %3683 = vmatpush.bf16.msra.mxu0 %v3608
    %3684 = vmatpush.bf16.msra.mxu0 %v3606
    %3685 = vmatpush.bf16.msra.mxu0 %v3604
    %3686 = vmatpush.bf16.msra.mxu0 %v3602
    %3687 = vmatpush.bf16.msra.mxu0 %v3600
    %3688 = vmatpush.bf16.msra.mxu0 %v3598
    %3689 = vmatpush.bf16.msra.mxu0 %v3596
    %3690 = vmatpush.bf16.msra.mxu0 %v3594
    %3691 = vmatmul.bf16.gmra.mxu0 %v3493
    %v3692 = vpop.f32.mrf.mxu0
    %v3693 = vadd.f32 0.0, %v3692
    %v3694 = vpop.f32.mrf.mxu0
    %3695 = vdwg.mxu0
    %3696 = vmatpush.bf16.msra.mxu0 %v3624
    %3697 = vmatpush.bf16.msra.mxu0 %v3622
    %3698 = vmatpush.bf16.msra.mxu0 %v3620
    %3699 = vmatpush.bf16.msra.mxu0 %v3618
    %3700 = vmatpush.bf16.msra.mxu0 %v3616
    %3701 = vmatpush.bf16.msra.mxu0 %v3614
    %3702 = vmatpush.bf16.msra.mxu0 %v3612
    %3703 = vmatpush.bf16.msra.mxu0 %v3610
    %3704 = vmatmul.bf16.gmra.mxu0 %v3494
    %v3705 = vpop.f32.mrf.mxu0
    %v3706 = vadd.f32 %v3693, %v3705
    %v3707 = vpop.f32.mrf.mxu0
    %3708 = vdwg.mxu0
    %v3709 = vadd.f32 %v3428, %v3680
    %v3710 = vadd.f32 %v3429, %v3706
    %s3711 = scalar_lea.vmem [#allocation4], 18
    %v3712 = vld [vmem:[%s3711] ss:$8 sm:$0x3]
    %s3713 = scalar_lea.vmem [#allocation4], 50
    %v3714 = vld [vmem:[%s3713] ss:$8 sm:$0x3]
    %v3717 = vperm.slane %v3712, 0
    %v3718 = vperm.slane %v3712, 1
    %v3719 = vperm.slane %v3714, 0
    %v3720 = vperm.slane %v3714, 1
    %v3725 = vpack.c.bf16 %v3717, %v3717
    %v3726 = vpack.c.bf16 %v3718, %v3718
    %v3727 = vpack.c.bf16 %v3719, %v3719
    %v3728 = vpack.c.bf16 %v3720, %v3720
    %s3729 = scalar_lea.vmem [#allocation5], 2560
    %v3730 = vld [vmem:[%s3729] sm:$0xff]
    %v3731 = vld [vmem:[%s3729 + $0x8] sm:$0xff]
    %v3732 = vld [vmem:[%s3729 + $0x10] sm:$0xff]
    %v3733 = vld [vmem:[%s3729 + $0x18] sm:$0xff]
    %v3734 = vld [vmem:[%s3729 + $0x20] sm:$0xff]
    %v3735 = vld [vmem:[%s3729 + $0x28] sm:$0xff]
    %v3736 = vld [vmem:[%s3729 + $0x30] sm:$0xff]
    %v3737 = vld [vmem:[%s3729 + $0x38] sm:$0xff]
    %v3738 = vld [vmem:[%s3729 + $0x40] sm:$0xff]
    %v3739 = vld [vmem:[%s3729 + $0x48] sm:$0xff]
    %v3740 = vld [vmem:[%s3729 + $0x50] sm:$0xff]
    %v3741 = vld [vmem:[%s3729 + $0x58] sm:$0xff]
    %v3742 = vld [vmem:[%s3729 + $0x60] sm:$0xff]
    %v3743 = vld [vmem:[%s3729 + $0x68] sm:$0xff]
    %v3744 = vld [vmem:[%s3729 + $0x70] sm:$0xff]
    %v3745 = vld [vmem:[%s3729 + $0x78] sm:$0xff]
    %v3746 = vld [vmem:[%s3729 + $0x80] sm:$0xff]
    %v3747 = vld [vmem:[%s3729 + $0x88] sm:$0xff]
    %v3748 = vld [vmem:[%s3729 + $0x90] sm:$0xff]
    %v3749 = vld [vmem:[%s3729 + $0x98] sm:$0xff]
    %v3750 = vld [vmem:[%s3729 + $0xa0] sm:$0xff]
    %v3751 = vld [vmem:[%s3729 + $0xa8] sm:$0xff]
    %v3752 = vld [vmem:[%s3729 + $0xb0] sm:$0xff]
    %v3753 = vld [vmem:[%s3729 + $0xb8] sm:$0xff]
    %v3754 = vld [vmem:[%s3729 + $0xc0] sm:$0xff]
    %v3755 = vld [vmem:[%s3729 + $0xc8] sm:$0xff]
    %v3756 = vld [vmem:[%s3729 + $0xd0] sm:$0xff]
    %v3757 = vld [vmem:[%s3729 + $0xd8] sm:$0xff]
    %v3758 = vld [vmem:[%s3729 + $0xe0] sm:$0xff]
    %v3759 = vld [vmem:[%s3729 + $0xe8] sm:$0xff]
    %v3760 = vld [vmem:[%s3729 + $0xf0] sm:$0xff]
    %v3761 = vld [vmem:[%s3729 + $0xf8] sm:$0xff]
    %v3766 = vunpack.c.l.b16 %v3725
    %v3767 = vunpack.c.l.b16 %v3726
    %v3768 = vunpack.c.l.b16 %v3727
    %v3769 = vunpack.c.l.b16 %v3728
    %v3770 = vrot.slane %v3768, 7
    %v3771 = vsel %vm960, %v3770, %v3766
    %v3772 = vrot.slane %v3769, 7
    %v3773 = vsel %vm960, %v3772, %v3767
    %v3774 = vpack.c.b16 %v3771, %v3771
    %v3775 = vpack.c.b16 %v3773, %v3773
    %v3810 = vunpack.c.l.b16 %v3730
    %v3811 = vunpack.c.h.b16 %v3730
    %v3812 = vunpack.c.l.b16 %v3731
    %v3813 = vunpack.c.h.b16 %v3731
    %v3814 = vunpack.c.l.b16 %v3732
    %v3815 = vunpack.c.h.b16 %v3732
    %v3816 = vunpack.c.l.b16 %v3733
    %v3817 = vunpack.c.h.b16 %v3733
    %v3818 = vunpack.c.l.b16 %v3734
    %v3819 = vunpack.c.h.b16 %v3734
    %v3820 = vunpack.c.l.b16 %v3735
    %v3821 = vunpack.c.h.b16 %v3735
    %v3822 = vunpack.c.l.b16 %v3736
    %v3823 = vunpack.c.h.b16 %v3736
    %v3824 = vunpack.c.l.b16 %v3737
    %v3825 = vunpack.c.h.b16 %v3737
    %v3826 = vunpack.c.l.b16 %v3738
    %v3827 = vunpack.c.h.b16 %v3738
    %v3828 = vunpack.c.l.b16 %v3739
    %v3829 = vunpack.c.h.b16 %v3739
    %v3830 = vunpack.c.l.b16 %v3740
    %v3831 = vunpack.c.h.b16 %v3740
    %v3832 = vunpack.c.l.b16 %v3741
    %v3833 = vunpack.c.h.b16 %v3741
    %v3834 = vunpack.c.l.b16 %v3742
    %v3835 = vunpack.c.h.b16 %v3742
    %v3836 = vunpack.c.l.b16 %v3743
    %v3837 = vunpack.c.h.b16 %v3743
    %v3838 = vunpack.c.l.b16 %v3744
    %v3839 = vunpack.c.h.b16 %v3744
    %v3840 = vunpack.c.l.b16 %v3745
    %v3841 = vunpack.c.h.b16 %v3745
    %v3842 = vunpack.c.l.b16 %v3746
    %v3843 = vunpack.c.h.b16 %v3746
    %v3844 = vunpack.c.l.b16 %v3747
    %v3845 = vunpack.c.h.b16 %v3747
    %v3846 = vunpack.c.l.b16 %v3748
    %v3847 = vunpack.c.h.b16 %v3748
    %v3848 = vunpack.c.l.b16 %v3749
    %v3849 = vunpack.c.h.b16 %v3749
    %v3850 = vunpack.c.l.b16 %v3750
    %v3851 = vunpack.c.h.b16 %v3750
    %v3852 = vunpack.c.l.b16 %v3751
    %v3853 = vunpack.c.h.b16 %v3751
    %v3854 = vunpack.c.l.b16 %v3752
    %v3855 = vunpack.c.h.b16 %v3752
    %v3856 = vunpack.c.l.b16 %v3753
    %v3857 = vunpack.c.h.b16 %v3753
    %v3858 = vunpack.c.l.b16 %v3754
    %v3859 = vunpack.c.h.b16 %v3754
    %v3860 = vunpack.c.l.b16 %v3755
    %v3861 = vunpack.c.h.b16 %v3755
    %v3862 = vunpack.c.l.b16 %v3756
    %v3863 = vunpack.c.h.b16 %v3756
    %v3864 = vunpack.c.l.b16 %v3757
    %v3865 = vunpack.c.h.b16 %v3757
    %v3866 = vunpack.c.l.b16 %v3758
    %v3867 = vunpack.c.h.b16 %v3758
    %v3868 = vunpack.c.l.b16 %v3759
    %v3869 = vunpack.c.h.b16 %v3759
    %v3870 = vunpack.c.l.b16 %v3760
    %v3871 = vunpack.c.h.b16 %v3760
    %v3872 = vunpack.c.l.b16 %v3761
    %v3873 = vunpack.c.h.b16 %v3761
    %v3874 = vpack.c.b16 %v3812, %v3810
    %v3875 = vpack.c.b16 %v3813, %v3811
    %v3876 = vpack.c.b16 %v3816, %v3814
    %v3877 = vpack.c.b16 %v3817, %v3815
    %v3878 = vpack.c.b16 %v3820, %v3818
    %v3879 = vpack.c.b16 %v3821, %v3819
    %v3880 = vpack.c.b16 %v3824, %v3822
    %v3881 = vpack.c.b16 %v3825, %v3823
    %v3882 = vpack.c.b16 %v3828, %v3826
    %v3883 = vpack.c.b16 %v3829, %v3827
    %v3884 = vpack.c.b16 %v3832, %v3830
    %v3885 = vpack.c.b16 %v3833, %v3831
    %v3886 = vpack.c.b16 %v3836, %v3834
    %v3887 = vpack.c.b16 %v3837, %v3835
    %v3888 = vpack.c.b16 %v3840, %v3838
    %v3889 = vpack.c.b16 %v3841, %v3839
    %v3890 = vpack.c.b16 %v3844, %v3842
    %v3891 = vpack.c.b16 %v3845, %v3843
    %v3892 = vpack.c.b16 %v3848, %v3846
    %v3893 = vpack.c.b16 %v3849, %v3847
    %v3894 = vpack.c.b16 %v3852, %v3850
    %v3895 = vpack.c.b16 %v3853, %v3851
    %v3896 = vpack.c.b16 %v3856, %v3854
    %v3897 = vpack.c.b16 %v3857, %v3855
    %v3898 = vpack.c.b16 %v3860, %v3858
    %v3899 = vpack.c.b16 %v3861, %v3859
    %v3900 = vpack.c.b16 %v3864, %v3862
    %v3901 = vpack.c.b16 %v3865, %v3863
    %v3902 = vpack.c.b16 %v3868, %v3866
    %v3903 = vpack.c.b16 %v3869, %v3867
    %v3904 = vpack.c.b16 %v3872, %v3870
    %v3905 = vpack.c.b16 %v3873, %v3871
    %3938 = vmatpush.bf16.msra.mxu0 %v3888
    %3939 = vmatpush.bf16.msra.mxu0 %v3886
    %3940 = vmatpush.bf16.msra.mxu0 %v3884
    %3941 = vmatpush.bf16.msra.mxu0 %v3882
    %3942 = vmatpush.bf16.msra.mxu0 %v3880
    %3943 = vmatpush.bf16.msra.mxu0 %v3878
    %3944 = vmatpush.bf16.msra.mxu0 %v3876
    %3945 = vmatpush.bf16.msra.mxu0 %v3874
    %3946 = vmatmul.bf16.gmra.mxu0 %v3774
    %v3947 = vpop.f32.mrf.mxu0
    %v3948 = vadd.f32 0.0, %v3947
    %v3949 = vpop.f32.mrf.mxu0
    %3950 = vdwg.mxu0
    %3951 = vmatpush.bf16.msra.mxu0 %v3904
    %3952 = vmatpush.bf16.msra.mxu0 %v3902
    %3953 = vmatpush.bf16.msra.mxu0 %v3900
    %3954 = vmatpush.bf16.msra.mxu0 %v3898
    %3955 = vmatpush.bf16.msra.mxu0 %v3896
    %3956 = vmatpush.bf16.msra.mxu0 %v3894
    %3957 = vmatpush.bf16.msra.mxu0 %v3892
    %3958 = vmatpush.bf16.msra.mxu0 %v3890
    %3959 = vmatmul.bf16.gmra.mxu0 %v3775
    %v3960 = vpop.f32.mrf.mxu0
    %v3961 = vadd.f32 %v3948, %v3960
    %v3962 = vpop.f32.mrf.mxu0
    %3963 = vdwg.mxu0
    %3964 = vmatpush.bf16.msra.mxu0 %v3889
    %3965 = vmatpush.bf16.msra.mxu0 %v3887
    %3966 = vmatpush.bf16.msra.mxu0 %v3885
    %3967 = vmatpush.bf16.msra.mxu0 %v3883
    %3968 = vmatpush.bf16.msra.mxu0 %v3881
    %3969 = vmatpush.bf16.msra.mxu0 %v3879
    %3970 = vmatpush.bf16.msra.mxu0 %v3877
    %3971 = vmatpush.bf16.msra.mxu0 %v3875
    %3972 = vmatmul.bf16.gmra.mxu0 %v3774
    %v3973 = vpop.f32.mrf.mxu0
    %v3974 = vadd.f32 0.0, %v3973
    %v3975 = vpop.f32.mrf.mxu0
    %3976 = vdwg.mxu0
    %3977 = vmatpush.bf16.msra.mxu0 %v3905
    %3978 = vmatpush.bf16.msra.mxu0 %v3903
    %3979 = vmatpush.bf16.msra.mxu0 %v3901
    %3980 = vmatpush.bf16.msra.mxu0 %v3899
    %3981 = vmatpush.bf16.msra.mxu0 %v3897
    %3982 = vmatpush.bf16.msra.mxu0 %v3895
    %3983 = vmatpush.bf16.msra.mxu0 %v3893
    %3984 = vmatpush.bf16.msra.mxu0 %v3891
    %3985 = vmatmul.bf16.gmra.mxu0 %v3775
    %v3986 = vpop.f32.mrf.mxu0
    %v3987 = vadd.f32 %v3974, %v3986
    %v3988 = vpop.f32.mrf.mxu0
    %3989 = vdwg.mxu0
    %v3990 = vadd.f32 %v3709, %v3961
    %v3991 = vadd.f32 %v3710, %v3987
    %s3992 = scalar_lea.vmem [#allocation4], 19
    %v3993 = vld [vmem:[%s3992] ss:$8 sm:$0x3]
    %s3994 = scalar_lea.vmem [#allocation4], 51
    %v3995 = vld [vmem:[%s3994] ss:$8 sm:$0x3]
    %v3998 = vperm.slane %v3993, 0
    %v3999 = vperm.slane %v3993, 1
    %v4000 = vperm.slane %v3995, 0
    %v4001 = vperm.slane %v3995, 1
    %v4006 = vpack.c.bf16 %v3998, %v3998
    %v4007 = vpack.c.bf16 %v3999, %v3999
    %v4008 = vpack.c.bf16 %v4000, %v4000
    %v4009 = vpack.c.bf16 %v4001, %v4001
    %s4010 = scalar_lea.vmem [#allocation5], 2816
    %v4011 = vld [vmem:[%s4010] sm:$0xff]
    %v4012 = vld [vmem:[%s4010 + $0x8] sm:$0xff]
    %v4013 = vld [vmem:[%s4010 + $0x10] sm:$0xff]
    %v4014 = vld [vmem:[%s4010 + $0x18] sm:$0xff]
    %v4015 = vld [vmem:[%s4010 + $0x20] sm:$0xff]
    %v4016 = vld [vmem:[%s4010 + $0x28] sm:$0xff]
    %v4017 = vld [vmem:[%s4010 + $0x30] sm:$0xff]
    %v4018 = vld [vmem:[%s4010 + $0x38] sm:$0xff]
    %v4019 = vld [vmem:[%s4010 + $0x40] sm:$0xff]
    %v4020 = vld [vmem:[%s4010 + $0x48] sm:$0xff]
    %v4021 = vld [vmem:[%s4010 + $0x50] sm:$0xff]
    %v4022 = vld [vmem:[%s4010 + $0x58] sm:$0xff]
    %v4023 = vld [vmem:[%s4010 + $0x60] sm:$0xff]
    %v4024 = vld [vmem:[%s4010 + $0x68] sm:$0xff]
    %v4025 = vld [vmem:[%s4010 + $0x70] sm:$0xff]
    %v4026 = vld [vmem:[%s4010 + $0x78] sm:$0xff]
    %v4027 = vld [vmem:[%s4010 + $0x80] sm:$0xff]
    %v4028 = vld [vmem:[%s4010 + $0x88] sm:$0xff]
    %v4029 = vld [vmem:[%s4010 + $0x90] sm:$0xff]
    %v4030 = vld [vmem:[%s4010 + $0x98] sm:$0xff]
    %v4031 = vld [vmem:[%s4010 + $0xa0] sm:$0xff]
    %v4032 = vld [vmem:[%s4010 + $0xa8] sm:$0xff]
    %v4033 = vld [vmem:[%s4010 + $0xb0] sm:$0xff]
    %v4034 = vld [vmem:[%s4010 + $0xb8] sm:$0xff]
    %v4035 = vld [vmem:[%s4010 + $0xc0] sm:$0xff]
    %v4036 = vld [vmem:[%s4010 + $0xc8] sm:$0xff]
    %v4037 = vld [vmem:[%s4010 + $0xd0] sm:$0xff]
    %v4038 = vld [vmem:[%s4010 + $0xd8] sm:$0xff]
    %v4039 = vld [vmem:[%s4010 + $0xe0] sm:$0xff]
    %v4040 = vld [vmem:[%s4010 + $0xe8] sm:$0xff]
    %v4041 = vld [vmem:[%s4010 + $0xf0] sm:$0xff]
    %v4042 = vld [vmem:[%s4010 + $0xf8] sm:$0xff]
    %v4047 = vunpack.c.l.b16 %v4006
    %v4048 = vunpack.c.l.b16 %v4007
    %v4049 = vunpack.c.l.b16 %v4008
    %v4050 = vunpack.c.l.b16 %v4009
    %v4051 = vrot.slane %v4049, 7
    %v4052 = vsel %vm960, %v4051, %v4047
    %v4053 = vrot.slane %v4050, 7
    %v4054 = vsel %vm960, %v4053, %v4048
    %v4055 = vpack.c.b16 %v4052, %v4052
    %v4056 = vpack.c.b16 %v4054, %v4054
    %v4091 = vunpack.c.l.b16 %v4011
    %v4092 = vunpack.c.h.b16 %v4011
    %v4093 = vunpack.c.l.b16 %v4012
    %v4094 = vunpack.c.h.b16 %v4012
    %v4095 = vunpack.c.l.b16 %v4013
    %v4096 = vunpack.c.h.b16 %v4013
    %v4097 = vunpack.c.l.b16 %v4014
    %v4098 = vunpack.c.h.b16 %v4014
    %v4099 = vunpack.c.l.b16 %v4015
    %v4100 = vunpack.c.h.b16 %v4015
    %v4101 = vunpack.c.l.b16 %v4016
    %v4102 = vunpack.c.h.b16 %v4016
    %v4103 = vunpack.c.l.b16 %v4017
    %v4104 = vunpack.c.h.b16 %v4017
    %v4105 = vunpack.c.l.b16 %v4018
    %v4106 = vunpack.c.h.b16 %v4018
    %v4107 = vunpack.c.l.b16 %v4019
    %v4108 = vunpack.c.h.b16 %v4019
    %v4109 = vunpack.c.l.b16 %v4020
    %v4110 = vunpack.c.h.b16 %v4020
    %v4111 = vunpack.c.l.b16 %v4021
    %v4112 = vunpack.c.h.b16 %v4021
    %v4113 = vunpack.c.l.b16 %v4022
    %v4114 = vunpack.c.h.b16 %v4022
    %v4115 = vunpack.c.l.b16 %v4023
    %v4116 = vunpack.c.h.b16 %v4023
    %v4117 = vunpack.c.l.b16 %v4024
    %v4118 = vunpack.c.h.b16 %v4024
    %v4119 = vunpack.c.l.b16 %v4025
    %v4120 = vunpack.c.h.b16 %v4025
    %v4121 = vunpack.c.l.b16 %v4026
    %v4122 = vunpack.c.h.b16 %v4026
    %v4123 = vunpack.c.l.b16 %v4027
    %v4124 = vunpack.c.h.b16 %v4027
    %v4125 = vunpack.c.l.b16 %v4028
    %v4126 = vunpack.c.h.b16 %v4028
    %v4127 = vunpack.c.l.b16 %v4029
    %v4128 = vunpack.c.h.b16 %v4029
    %v4129 = vunpack.c.l.b16 %v4030
    %v4130 = vunpack.c.h.b16 %v4030
    %v4131 = vunpack.c.l.b16 %v4031
    %v4132 = vunpack.c.h.b16 %v4031
    %v4133 = vunpack.c.l.b16 %v4032
    %v4134 = vunpack.c.h.b16 %v4032
    %v4135 = vunpack.c.l.b16 %v4033
    %v4136 = vunpack.c.h.b16 %v4033
    %v4137 = vunpack.c.l.b16 %v4034
    %v4138 = vunpack.c.h.b16 %v4034
    %v4139 = vunpack.c.l.b16 %v4035
    %v4140 = vunpack.c.h.b16 %v4035
    %v4141 = vunpack.c.l.b16 %v4036
    %v4142 = vunpack.c.h.b16 %v4036
    %v4143 = vunpack.c.l.b16 %v4037
    %v4144 = vunpack.c.h.b16 %v4037
    %v4145 = vunpack.c.l.b16 %v4038
    %v4146 = vunpack.c.h.b16 %v4038
    %v4147 = vunpack.c.l.b16 %v4039
    %v4148 = vunpack.c.h.b16 %v4039
    %v4149 = vunpack.c.l.b16 %v4040
    %v4150 = vunpack.c.h.b16 %v4040
    %v4151 = vunpack.c.l.b16 %v4041
    %v4152 = vunpack.c.h.b16 %v4041
    %v4153 = vunpack.c.l.b16 %v4042
    %v4154 = vunpack.c.h.b16 %v4042
    %v4155 = vpack.c.b16 %v4093, %v4091
    %v4156 = vpack.c.b16 %v4094, %v4092
    %v4157 = vpack.c.b16 %v4097, %v4095
    %v4158 = vpack.c.b16 %v4098, %v4096
    %v4159 = vpack.c.b16 %v4101, %v4099
    %v4160 = vpack.c.b16 %v4102, %v4100
    %v4161 = vpack.c.b16 %v4105, %v4103
    %v4162 = vpack.c.b16 %v4106, %v4104
    %v4163 = vpack.c.b16 %v4109, %v4107
    %v4164 = vpack.c.b16 %v4110, %v4108
    %v4165 = vpack.c.b16 %v4113, %v4111
    %v4166 = vpack.c.b16 %v4114, %v4112
    %v4167 = vpack.c.b16 %v4117, %v4115
    %v4168 = vpack.c.b16 %v4118, %v4116
    %v4169 = vpack.c.b16 %v4121, %v4119
    %v4170 = vpack.c.b16 %v4122, %v4120
    %v4171 = vpack.c.b16 %v4125, %v4123
    %v4172 = vpack.c.b16 %v4126, %v4124
    %v4173 = vpack.c.b16 %v4129, %v4127
    %v4174 = vpack.c.b16 %v4130, %v4128
    %v4175 = vpack.c.b16 %v4133, %v4131
    %v4176 = vpack.c.b16 %v4134, %v4132
    %v4177 = vpack.c.b16 %v4137, %v4135
    %v4178 = vpack.c.b16 %v4138, %v4136
    %v4179 = vpack.c.b16 %v4141, %v4139
    %v4180 = vpack.c.b16 %v4142, %v4140
    %v4181 = vpack.c.b16 %v4145, %v4143
    %v4182 = vpack.c.b16 %v4146, %v4144
    %v4183 = vpack.c.b16 %v4149, %v4147
    %v4184 = vpack.c.b16 %v4150, %v4148
    %v4185 = vpack.c.b16 %v4153, %v4151
    %v4186 = vpack.c.b16 %v4154, %v4152
    %4219 = vmatpush.bf16.msra.mxu0 %v4169
    %4220 = vmatpush.bf16.msra.mxu0 %v4167
    %4221 = vmatpush.bf16.msra.mxu0 %v4165
    %4222 = vmatpush.bf16.msra.mxu0 %v4163
    %4223 = vmatpush.bf16.msra.mxu0 %v4161
    %4224 = vmatpush.bf16.msra.mxu0 %v4159
    %4225 = vmatpush.bf16.msra.mxu0 %v4157
    %4226 = vmatpush.bf16.msra.mxu0 %v4155
    %4227 = vmatmul.bf16.gmra.mxu0 %v4055
    %v4228 = vpop.f32.mrf.mxu0
    %v4229 = vadd.f32 0.0, %v4228
    %v4230 = vpop.f32.mrf.mxu0
    %4231 = vdwg.mxu0
    %4232 = vmatpush.bf16.msra.mxu0 %v4185
    %4233 = vmatpush.bf16.msra.mxu0 %v4183
    %4234 = vmatpush.bf16.msra.mxu0 %v4181
    %4235 = vmatpush.bf16.msra.mxu0 %v4179
    %4236 = vmatpush.bf16.msra.mxu0 %v4177
    %4237 = vmatpush.bf16.msra.mxu0 %v4175
    %4238 = vmatpush.bf16.msra.mxu0 %v4173
    %4239 = vmatpush.bf16.msra.mxu0 %v4171
    %4240 = vmatmul.bf16.gmra.mxu0 %v4056
    %v4241 = vpop.f32.mrf.mxu0
    %v4242 = vadd.f32 %v4229, %v4241
    %v4243 = vpop.f32.mrf.mxu0
    %4244 = vdwg.mxu0
    %4245 = vmatpush.bf16.msra.mxu0 %v4170
    %4246 = vmatpush.bf16.msra.mxu0 %v4168
    %4247 = vmatpush.bf16.msra.mxu0 %v4166
    %4248 = vmatpush.bf16.msra.mxu0 %v4164
    %4249 = vmatpush.bf16.msra.mxu0 %v4162
    %4250 = vmatpush.bf16.msra.mxu0 %v4160
    %4251 = vmatpush.bf16.msra.mxu0 %v4158
    %4252 = vmatpush.bf16.msra.mxu0 %v4156
    %4253 = vmatmul.bf16.gmra.mxu0 %v4055
    %v4254 = vpop.f32.mrf.mxu0
    %v4255 = vadd.f32 0.0, %v4254
    %v4256 = vpop.f32.mrf.mxu0
    %4257 = vdwg.mxu0
    %4258 = vmatpush.bf16.msra.mxu0 %v4186
    %4259 = vmatpush.bf16.msra.mxu0 %v4184
    %4260 = vmatpush.bf16.msra.mxu0 %v4182
    %4261 = vmatpush.bf16.msra.mxu0 %v4180
    %4262 = vmatpush.bf16.msra.mxu0 %v4178
    %4263 = vmatpush.bf16.msra.mxu0 %v4176
    %4264 = vmatpush.bf16.msra.mxu0 %v4174
    %4265 = vmatpush.bf16.msra.mxu0 %v4172
    %4266 = vmatmul.bf16.gmra.mxu0 %v4056
    %v4267 = vpop.f32.mrf.mxu0
    %v4268 = vadd.f32 %v4255, %v4267
    %v4269 = vpop.f32.mrf.mxu0
    %4270 = vdwg.mxu0
    %v4271 = vadd.f32 %v3990, %v4242
    %v4272 = vadd.f32 %v3991, %v4268
    %s4273 = scalar_lea.vmem [#allocation4], 20
    %v4274 = vld [vmem:[%s4273] ss:$8 sm:$0x3]
    %s4275 = scalar_lea.vmem [#allocation4], 52
    %v4276 = vld [vmem:[%s4275] ss:$8 sm:$0x3]
    %v4279 = vperm.slane %v4274, 0
    %v4280 = vperm.slane %v4274, 1
    %v4281 = vperm.slane %v4276, 0
    %v4282 = vperm.slane %v4276, 1
    %v4287 = vpack.c.bf16 %v4279, %v4279
    %v4288 = vpack.c.bf16 %v4280, %v4280
    %v4289 = vpack.c.bf16 %v4281, %v4281
    %v4290 = vpack.c.bf16 %v4282, %v4282
    %s4291 = scalar_lea.vmem [#allocation5], 3072
    %v4292 = vld [vmem:[%s4291] sm:$0xff]
    %v4293 = vld [vmem:[%s4291 + $0x8] sm:$0xff]
    %v4294 = vld [vmem:[%s4291 + $0x10] sm:$0xff]
    %v4295 = vld [vmem:[%s4291 + $0x18] sm:$0xff]
    %v4296 = vld [vmem:[%s4291 + $0x20] sm:$0xff]
    %v4297 = vld [vmem:[%s4291 + $0x28] sm:$0xff]
    %v4298 = vld [vmem:[%s4291 + $0x30] sm:$0xff]
    %v4299 = vld [vmem:[%s4291 + $0x38] sm:$0xff]
    %v4300 = vld [vmem:[%s4291 + $0x40] sm:$0xff]
    %v4301 = vld [vmem:[%s4291 + $0x48] sm:$0xff]
    %v4302 = vld [vmem:[%s4291 + $0x50] sm:$0xff]
    %v4303 = vld [vmem:[%s4291 + $0x58] sm:$0xff]
    %v4304 = vld [vmem:[%s4291 + $0x60] sm:$0xff]
    %v4305 = vld [vmem:[%s4291 + $0x68] sm:$0xff]
    %v4306 = vld [vmem:[%s4291 + $0x70] sm:$0xff]
    %v4307 = vld [vmem:[%s4291 + $0x78] sm:$0xff]
    %v4308 = vld [vmem:[%s4291 + $0x80] sm:$0xff]
    %v4309 = vld [vmem:[%s4291 + $0x88] sm:$0xff]
    %v4310 = vld [vmem:[%s4291 + $0x90] sm:$0xff]
    %v4311 = vld [vmem:[%s4291 + $0x98] sm:$0xff]
    %v4312 = vld [vmem:[%s4291 + $0xa0] sm:$0xff]
    %v4313 = vld [vmem:[%s4291 + $0xa8] sm:$0xff]
    %v4314 = vld [vmem:[%s4291 + $0xb0] sm:$0xff]
    %v4315 = vld [vmem:[%s4291 + $0xb8] sm:$0xff]
    %v4316 = vld [vmem:[%s4291 + $0xc0] sm:$0xff]
    %v4317 = vld [vmem:[%s4291 + $0xc8] sm:$0xff]
    %v4318 = vld [vmem:[%s4291 + $0xd0] sm:$0xff]
    %v4319 = vld [vmem:[%s4291 + $0xd8] sm:$0xff]
    %v4320 = vld [vmem:[%s4291 + $0xe0] sm:$0xff]
    %v4321 = vld [vmem:[%s4291 + $0xe8] sm:$0xff]
    %v4322 = vld [vmem:[%s4291 + $0xf0] sm:$0xff]
    %v4323 = vld [vmem:[%s4291 + $0xf8] sm:$0xff]
    %v4328 = vunpack.c.l.b16 %v4287
    %v4329 = vunpack.c.l.b16 %v4288
    %v4330 = vunpack.c.l.b16 %v4289
    %v4331 = vunpack.c.l.b16 %v4290
    %v4332 = vrot.slane %v4330, 7
    %v4333 = vsel %vm960, %v4332, %v4328
    %v4334 = vrot.slane %v4331, 7
    %v4335 = vsel %vm960, %v4334, %v4329
    %v4336 = vpack.c.b16 %v4333, %v4333
    %v4337 = vpack.c.b16 %v4335, %v4335
    %v4372 = vunpack.c.l.b16 %v4292
    %v4373 = vunpack.c.h.b16 %v4292
    %v4374 = vunpack.c.l.b16 %v4293
    %v4375 = vunpack.c.h.b16 %v4293
    %v4376 = vunpack.c.l.b16 %v4294
    %v4377 = vunpack.c.h.b16 %v4294
    %v4378 = vunpack.c.l.b16 %v4295
    %v4379 = vunpack.c.h.b16 %v4295
    %v4380 = vunpack.c.l.b16 %v4296
    %v4381 = vunpack.c.h.b16 %v4296
    %v4382 = vunpack.c.l.b16 %v4297
    %v4383 = vunpack.c.h.b16 %v4297
    %v4384 = vunpack.c.l.b16 %v4298
    %v4385 = vunpack.c.h.b16 %v4298
    %v4386 = vunpack.c.l.b16 %v4299
    %v4387 = vunpack.c.h.b16 %v4299
    %v4388 = vunpack.c.l.b16 %v4300
    %v4389 = vunpack.c.h.b16 %v4300
    %v4390 = vunpack.c.l.b16 %v4301
    %v4391 = vunpack.c.h.b16 %v4301
    %v4392 = vunpack.c.l.b16 %v4302
    %v4393 = vunpack.c.h.b16 %v4302
    %v4394 = vunpack.c.l.b16 %v4303
    %v4395 = vunpack.c.h.b16 %v4303
    %v4396 = vunpack.c.l.b16 %v4304
    %v4397 = vunpack.c.h.b16 %v4304
    %v4398 = vunpack.c.l.b16 %v4305
    %v4399 = vunpack.c.h.b16 %v4305
    %v4400 = vunpack.c.l.b16 %v4306
    %v4401 = vunpack.c.h.b16 %v4306
    %v4402 = vunpack.c.l.b16 %v4307
    %v4403 = vunpack.c.h.b16 %v4307
    %v4404 = vunpack.c.l.b16 %v4308
    %v4405 = vunpack.c.h.b16 %v4308
    %v4406 = vunpack.c.l.b16 %v4309
    %v4407 = vunpack.c.h.b16 %v4309
    %v4408 = vunpack.c.l.b16 %v4310
    %v4409 = vunpack.c.h.b16 %v4310
    %v4410 = vunpack.c.l.b16 %v4311
    %v4411 = vunpack.c.h.b16 %v4311
    %v4412 = vunpack.c.l.b16 %v4312
    %v4413 = vunpack.c.h.b16 %v4312
    %v4414 = vunpack.c.l.b16 %v4313
    %v4415 = vunpack.c.h.b16 %v4313
    %v4416 = vunpack.c.l.b16 %v4314
    %v4417 = vunpack.c.h.b16 %v4314
    %v4418 = vunpack.c.l.b16 %v4315
    %v4419 = vunpack.c.h.b16 %v4315
    %v4420 = vunpack.c.l.b16 %v4316
    %v4421 = vunpack.c.h.b16 %v4316
    %v4422 = vunpack.c.l.b16 %v4317
    %v4423 = vunpack.c.h.b16 %v4317
    %v4424 = vunpack.c.l.b16 %v4318
    %v4425 = vunpack.c.h.b16 %v4318
    %v4426 = vunpack.c.l.b16 %v4319
    %v4427 = vunpack.c.h.b16 %v4319
    %v4428 = vunpack.c.l.b16 %v4320
    %v4429 = vunpack.c.h.b16 %v4320
    %v4430 = vunpack.c.l.b16 %v4321
    %v4431 = vunpack.c.h.b16 %v4321
    %v4432 = vunpack.c.l.b16 %v4322
    %v4433 = vunpack.c.h.b16 %v4322
    %v4434 = vunpack.c.l.b16 %v4323
    %v4435 = vunpack.c.h.b16 %v4323
    %v4436 = vpack.c.b16 %v4374, %v4372
    %v4437 = vpack.c.b16 %v4375, %v4373
    %v4438 = vpack.c.b16 %v4378, %v4376
    %v4439 = vpack.c.b16 %v4379, %v4377
    %v4440 = vpack.c.b16 %v4382, %v4380
    %v4441 = vpack.c.b16 %v4383, %v4381
    %v4442 = vpack.c.b16 %v4386, %v4384
    %v4443 = vpack.c.b16 %v4387, %v4385
    %v4444 = vpack.c.b16 %v4390, %v4388
    %v4445 = vpack.c.b16 %v4391, %v4389
    %v4446 = vpack.c.b16 %v4394, %v4392
    %v4447 = vpack.c.b16 %v4395, %v4393
    %v4448 = vpack.c.b16 %v4398, %v4396
    %v4449 = vpack.c.b16 %v4399, %v4397
    %v4450 = vpack.c.b16 %v4402, %v4400
    %v4451 = vpack.c.b16 %v4403, %v4401
    %v4452 = vpack.c.b16 %v4406, %v4404
    %v4453 = vpack.c.b16 %v4407, %v4405
    %v4454 = vpack.c.b16 %v4410, %v4408
    %v4455 = vpack.c.b16 %v4411, %v4409
    %v4456 = vpack.c.b16 %v4414, %v4412
    %v4457 = vpack.c.b16 %v4415, %v4413
    %v4458 = vpack.c.b16 %v4418, %v4416
    %v4459 = vpack.c.b16 %v4419, %v4417
    %v4460 = vpack.c.b16 %v4422, %v4420
    %v4461 = vpack.c.b16 %v4423, %v4421
    %v4462 = vpack.c.b16 %v4426, %v4424
    %v4463 = vpack.c.b16 %v4427, %v4425
    %v4464 = vpack.c.b16 %v4430, %v4428
    %v4465 = vpack.c.b16 %v4431, %v4429
    %v4466 = vpack.c.b16 %v4434, %v4432
    %v4467 = vpack.c.b16 %v4435, %v4433
    %4500 = vmatpush.bf16.msra.mxu0 %v4450
    %4501 = vmatpush.bf16.msra.mxu0 %v4448
    %4502 = vmatpush.bf16.msra.mxu0 %v4446
    %4503 = vmatpush.bf16.msra.mxu0 %v4444
    %4504 = vmatpush.bf16.msra.mxu0 %v4442
    %4505 = vmatpush.bf16.msra.mxu0 %v4440
    %4506 = vmatpush.bf16.msra.mxu0 %v4438
    %4507 = vmatpush.bf16.msra.mxu0 %v4436
    %4508 = vmatmul.bf16.gmra.mxu0 %v4336
    %v4509 = vpop.f32.mrf.mxu0
    %v4510 = vadd.f32 0.0, %v4509
    %v4511 = vpop.f32.mrf.mxu0
    %4512 = vdwg.mxu0
    %4513 = vmatpush.bf16.msra.mxu0 %v4466
    %4514 = vmatpush.bf16.msra.mxu0 %v4464
    %4515 = vmatpush.bf16.msra.mxu0 %v4462
    %4516 = vmatpush.bf16.msra.mxu0 %v4460
    %4517 = vmatpush.bf16.msra.mxu0 %v4458
    %4518 = vmatpush.bf16.msra.mxu0 %v4456
    %4519 = vmatpush.bf16.msra.mxu0 %v4454
    %4520 = vmatpush.bf16.msra.mxu0 %v4452
    %4521 = vmatmul.bf16.gmra.mxu0 %v4337
    %v4522 = vpop.f32.mrf.mxu0
    %v4523 = vadd.f32 %v4510, %v4522
    %v4524 = vpop.f32.mrf.mxu0
    %4525 = vdwg.mxu0
    %4526 = vmatpush.bf16.msra.mxu0 %v4451
    %4527 = vmatpush.bf16.msra.mxu0 %v4449
    %4528 = vmatpush.bf16.msra.mxu0 %v4447
    %4529 = vmatpush.bf16.msra.mxu0 %v4445
    %4530 = vmatpush.bf16.msra.mxu0 %v4443
    %4531 = vmatpush.bf16.msra.mxu0 %v4441
    %4532 = vmatpush.bf16.msra.mxu0 %v4439
    %4533 = vmatpush.bf16.msra.mxu0 %v4437
    %4534 = vmatmul.bf16.gmra.mxu0 %v4336
    %v4535 = vpop.f32.mrf.mxu0
    %v4536 = vadd.f32 0.0, %v4535
    %v4537 = vpop.f32.mrf.mxu0
    %4538 = vdwg.mxu0
    %4539 = vmatpush.bf16.msra.mxu0 %v4467
    %4540 = vmatpush.bf16.msra.mxu0 %v4465
    %4541 = vmatpush.bf16.msra.mxu0 %v4463
    %4542 = vmatpush.bf16.msra.mxu0 %v4461
    %4543 = vmatpush.bf16.msra.mxu0 %v4459
    %4544 = vmatpush.bf16.msra.mxu0 %v4457
    %4545 = vmatpush.bf16.msra.mxu0 %v4455
    %4546 = vmatpush.bf16.msra.mxu0 %v4453
    %4547 = vmatmul.bf16.gmra.mxu0 %v4337
    %v4548 = vpop.f32.mrf.mxu0
    %v4549 = vadd.f32 %v4536, %v4548
    %v4550 = vpop.f32.mrf.mxu0
    %4551 = vdwg.mxu0
    %v4552 = vadd.f32 %v4271, %v4523
    %v4553 = vadd.f32 %v4272, %v4549
    %s4554 = scalar_lea.vmem [#allocation4], 21
    %v4555 = vld [vmem:[%s4554] ss:$8 sm:$0x3]
    %s4556 = scalar_lea.vmem [#allocation4], 53
    %v4557 = vld [vmem:[%s4556] ss:$8 sm:$0x3]
    %v4560 = vperm.slane %v4555, 0
    %v4561 = vperm.slane %v4555, 1
    %v4562 = vperm.slane %v4557, 0
    %v4563 = vperm.slane %v4557, 1
    %v4568 = vpack.c.bf16 %v4560, %v4560
    %v4569 = vpack.c.bf16 %v4561, %v4561
    %v4570 = vpack.c.bf16 %v4562, %v4562
    %v4571 = vpack.c.bf16 %v4563, %v4563
    %s4572 = scalar_lea.vmem [#allocation5], 3328
    %v4573 = vld [vmem:[%s4572] sm:$0xff]
    %v4574 = vld [vmem:[%s4572 + $0x8] sm:$0xff]
    %v4575 = vld [vmem:[%s4572 + $0x10] sm:$0xff]
    %v4576 = vld [vmem:[%s4572 + $0x18] sm:$0xff]
    %v4577 = vld [vmem:[%s4572 + $0x20] sm:$0xff]
    %v4578 = vld [vmem:[%s4572 + $0x28] sm:$0xff]
    %v4579 = vld [vmem:[%s4572 + $0x30] sm:$0xff]
    %v4580 = vld [vmem:[%s4572 + $0x38] sm:$0xff]
    %v4581 = vld [vmem:[%s4572 + $0x40] sm:$0xff]
    %v4582 = vld [vmem:[%s4572 + $0x48] sm:$0xff]
    %v4583 = vld [vmem:[%s4572 + $0x50] sm:$0xff]
    %v4584 = vld [vmem:[%s4572 + $0x58] sm:$0xff]
    %v4585 = vld [vmem:[%s4572 + $0x60] sm:$0xff]
    %v4586 = vld [vmem:[%s4572 + $0x68] sm:$0xff]
    %v4587 = vld [vmem:[%s4572 + $0x70] sm:$0xff]
    %v4588 = vld [vmem:[%s4572 + $0x78] sm:$0xff]
    %v4589 = vld [vmem:[%s4572 + $0x80] sm:$0xff]
    %v4590 = vld [vmem:[%s4572 + $0x88] sm:$0xff]
    %v4591 = vld [vmem:[%s4572 + $0x90] sm:$0xff]
    %v4592 = vld [vmem:[%s4572 + $0x98] sm:$0xff]
    %v4593 = vld [vmem:[%s4572 + $0xa0] sm:$0xff]
    %v4594 = vld [vmem:[%s4572 + $0xa8] sm:$0xff]
    %v4595 = vld [vmem:[%s4572 + $0xb0] sm:$0xff]
    %v4596 = vld [vmem:[%s4572 + $0xb8] sm:$0xff]
    %v4597 = vld [vmem:[%s4572 + $0xc0] sm:$0xff]
    %v4598 = vld [vmem:[%s4572 + $0xc8] sm:$0xff]
    %v4599 = vld [vmem:[%s4572 + $0xd0] sm:$0xff]
    %v4600 = vld [vmem:[%s4572 + $0xd8] sm:$0xff]
    %v4601 = vld [vmem:[%s4572 + $0xe0] sm:$0xff]
    %v4602 = vld [vmem:[%s4572 + $0xe8] sm:$0xff]
    %v4603 = vld [vmem:[%s4572 + $0xf0] sm:$0xff]
    %v4604 = vld [vmem:[%s4572 + $0xf8] sm:$0xff]
    %v4609 = vunpack.c.l.b16 %v4568
    %v4610 = vunpack.c.l.b16 %v4569
    %v4611 = vunpack.c.l.b16 %v4570
    %v4612 = vunpack.c.l.b16 %v4571
    %v4613 = vrot.slane %v4611, 7
    %v4614 = vsel %vm960, %v4613, %v4609
    %v4615 = vrot.slane %v4612, 7
    %v4616 = vsel %vm960, %v4615, %v4610
    %v4617 = vpack.c.b16 %v4614, %v4614
    %v4618 = vpack.c.b16 %v4616, %v4616
    %v4653 = vunpack.c.l.b16 %v4573
    %v4654 = vunpack.c.h.b16 %v4573
    %v4655 = vunpack.c.l.b16 %v4574
    %v4656 = vunpack.c.h.b16 %v4574
    %v4657 = vunpack.c.l.b16 %v4575
    %v4658 = vunpack.c.h.b16 %v4575
    %v4659 = vunpack.c.l.b16 %v4576
    %v4660 = vunpack.c.h.b16 %v4576
    %v4661 = vunpack.c.l.b16 %v4577
    %v4662 = vunpack.c.h.b16 %v4577
    %v4663 = vunpack.c.l.b16 %v4578
    %v4664 = vunpack.c.h.b16 %v4578
    %v4665 = vunpack.c.l.b16 %v4579
    %v4666 = vunpack.c.h.b16 %v4579
    %v4667 = vunpack.c.l.b16 %v4580
    %v4668 = vunpack.c.h.b16 %v4580
    %v4669 = vunpack.c.l.b16 %v4581
    %v4670 = vunpack.c.h.b16 %v4581
    %v4671 = vunpack.c.l.b16 %v4582
    %v4672 = vunpack.c.h.b16 %v4582
    %v4673 = vunpack.c.l.b16 %v4583
    %v4674 = vunpack.c.h.b16 %v4583
    %v4675 = vunpack.c.l.b16 %v4584
    %v4676 = vunpack.c.h.b16 %v4584
    %v4677 = vunpack.c.l.b16 %v4585
    %v4678 = vunpack.c.h.b16 %v4585
    %v4679 = vunpack.c.l.b16 %v4586
    %v4680 = vunpack.c.h.b16 %v4586
    %v4681 = vunpack.c.l.b16 %v4587
    %v4682 = vunpack.c.h.b16 %v4587
    %v4683 = vunpack.c.l.b16 %v4588
    %v4684 = vunpack.c.h.b16 %v4588
    %v4685 = vunpack.c.l.b16 %v4589
    %v4686 = vunpack.c.h.b16 %v4589
    %v4687 = vunpack.c.l.b16 %v4590
    %v4688 = vunpack.c.h.b16 %v4590
    %v4689 = vunpack.c.l.b16 %v4591
    %v4690 = vunpack.c.h.b16 %v4591
    %v4691 = vunpack.c.l.b16 %v4592
    %v4692 = vunpack.c.h.b16 %v4592
    %v4693 = vunpack.c.l.b16 %v4593
    %v4694 = vunpack.c.h.b16 %v4593
    %v4695 = vunpack.c.l.b16 %v4594
    %v4696 = vunpack.c.h.b16 %v4594
    %v4697 = vunpack.c.l.b16 %v4595
    %v4698 = vunpack.c.h.b16 %v4595
    %v4699 = vunpack.c.l.b16 %v4596
    %v4700 = vunpack.c.h.b16 %v4596
    %v4701 = vunpack.c.l.b16 %v4597
    %v4702 = vunpack.c.h.b16 %v4597
    %v4703 = vunpack.c.l.b16 %v4598
    %v4704 = vunpack.c.h.b16 %v4598
    %v4705 = vunpack.c.l.b16 %v4599
    %v4706 = vunpack.c.h.b16 %v4599
    %v4707 = vunpack.c.l.b16 %v4600
    %v4708 = vunpack.c.h.b16 %v4600
    %v4709 = vunpack.c.l.b16 %v4601
    %v4710 = vunpack.c.h.b16 %v4601
    %v4711 = vunpack.c.l.b16 %v4602
    %v4712 = vunpack.c.h.b16 %v4602
    %v4713 = vunpack.c.l.b16 %v4603
    %v4714 = vunpack.c.h.b16 %v4603
    %v4715 = vunpack.c.l.b16 %v4604
    %v4716 = vunpack.c.h.b16 %v4604
    %v4717 = vpack.c.b16 %v4655, %v4653
    %v4718 = vpack.c.b16 %v4656, %v4654
    %v4719 = vpack.c.b16 %v4659, %v4657
    %v4720 = vpack.c.b16 %v4660, %v4658
    %v4721 = vpack.c.b16 %v4663, %v4661
    %v4722 = vpack.c.b16 %v4664, %v4662
    %v4723 = vpack.c.b16 %v4667, %v4665
    %v4724 = vpack.c.b16 %v4668, %v4666
    %v4725 = vpack.c.b16 %v4671, %v4669
    %v4726 = vpack.c.b16 %v4672, %v4670
    %v4727 = vpack.c.b16 %v4675, %v4673
    %v4728 = vpack.c.b16 %v4676, %v4674
    %v4729 = vpack.c.b16 %v4679, %v4677
    %v4730 = vpack.c.b16 %v4680, %v4678
    %v4731 = vpack.c.b16 %v4683, %v4681
    %v4732 = vpack.c.b16 %v4684, %v4682
    %v4733 = vpack.c.b16 %v4687, %v4685
    %v4734 = vpack.c.b16 %v4688, %v4686
    %v4735 = vpack.c.b16 %v4691, %v4689
    %v4736 = vpack.c.b16 %v4692, %v4690
    %v4737 = vpack.c.b16 %v4695, %v4693
    %v4738 = vpack.c.b16 %v4696, %v4694
    %v4739 = vpack.c.b16 %v4699, %v4697
    %v4740 = vpack.c.b16 %v4700, %v4698
    %v4741 = vpack.c.b16 %v4703, %v4701
    %v4742 = vpack.c.b16 %v4704, %v4702
    %v4743 = vpack.c.b16 %v4707, %v4705
    %v4744 = vpack.c.b16 %v4708, %v4706
    %v4745 = vpack.c.b16 %v4711, %v4709
    %v4746 = vpack.c.b16 %v4712, %v4710
    %v4747 = vpack.c.b16 %v4715, %v4713
    %v4748 = vpack.c.b16 %v4716, %v4714
    %4781 = vmatpush.bf16.msra.mxu0 %v4731
    %4782 = vmatpush.bf16.msra.mxu0 %v4729
    %4783 = vmatpush.bf16.msra.mxu0 %v4727
    %4784 = vmatpush.bf16.msra.mxu0 %v4725
    %4785 = vmatpush.bf16.msra.mxu0 %v4723
    %4786 = vmatpush.bf16.msra.mxu0 %v4721
    %4787 = vmatpush.bf16.msra.mxu0 %v4719
    %4788 = vmatpush.bf16.msra.mxu0 %v4717
    %4789 = vmatmul.bf16.gmra.mxu0 %v4617
    %v4790 = vpop.f32.mrf.mxu0
    %v4791 = vadd.f32 0.0, %v4790
    %v4792 = vpop.f32.mrf.mxu0
    %4793 = vdwg.mxu0
    %4794 = vmatpush.bf16.msra.mxu0 %v4747
    %4795 = vmatpush.bf16.msra.mxu0 %v4745
    %4796 = vmatpush.bf16.msra.mxu0 %v4743
    %4797 = vmatpush.bf16.msra.mxu0 %v4741
    %4798 = vmatpush.bf16.msra.mxu0 %v4739
    %4799 = vmatpush.bf16.msra.mxu0 %v4737
    %4800 = vmatpush.bf16.msra.mxu0 %v4735
    %4801 = vmatpush.bf16.msra.mxu0 %v4733
    %4802 = vmatmul.bf16.gmra.mxu0 %v4618
    %v4803 = vpop.f32.mrf.mxu0
    %v4804 = vadd.f32 %v4791, %v4803
    %v4805 = vpop.f32.mrf.mxu0
    %4806 = vdwg.mxu0
    %4807 = vmatpush.bf16.msra.mxu0 %v4732
    %4808 = vmatpush.bf16.msra.mxu0 %v4730
    %4809 = vmatpush.bf16.msra.mxu0 %v4728
    %4810 = vmatpush.bf16.msra.mxu0 %v4726
    %4811 = vmatpush.bf16.msra.mxu0 %v4724
    %4812 = vmatpush.bf16.msra.mxu0 %v4722
    %4813 = vmatpush.bf16.msra.mxu0 %v4720
    %4814 = vmatpush.bf16.msra.mxu0 %v4718
    %4815 = vmatmul.bf16.gmra.mxu0 %v4617
    %v4816 = vpop.f32.mrf.mxu0
    %v4817 = vadd.f32 0.0, %v4816
    %v4818 = vpop.f32.mrf.mxu0
    %4819 = vdwg.mxu0
    %4820 = vmatpush.bf16.msra.mxu0 %v4748
    %4821 = vmatpush.bf16.msra.mxu0 %v4746
    %4822 = vmatpush.bf16.msra.mxu0 %v4744
    %4823 = vmatpush.bf16.msra.mxu0 %v4742
    %4824 = vmatpush.bf16.msra.mxu0 %v4740
    %4825 = vmatpush.bf16.msra.mxu0 %v4738
    %4826 = vmatpush.bf16.msra.mxu0 %v4736
    %4827 = vmatpush.bf16.msra.mxu0 %v4734
    %4828 = vmatmul.bf16.gmra.mxu0 %v4618
    %v4829 = vpop.f32.mrf.mxu0
    %v4830 = vadd.f32 %v4817, %v4829
    %v4831 = vpop.f32.mrf.mxu0
    %4832 = vdwg.mxu0
    %v4833 = vadd.f32 %v4552, %v4804
    %v4834 = vadd.f32 %v4553, %v4830
    %s4835 = scalar_lea.vmem [#allocation4], 22
    %v4836 = vld [vmem:[%s4835] ss:$8 sm:$0x3]
    %s4837 = scalar_lea.vmem [#allocation4], 54
    %v4838 = vld [vmem:[%s4837] ss:$8 sm:$0x3]
    %v4841 = vperm.slane %v4836, 0
    %v4842 = vperm.slane %v4836, 1
    %v4843 = vperm.slane %v4838, 0
    %v4844 = vperm.slane %v4838, 1
    %v4849 = vpack.c.bf16 %v4841, %v4841
    %v4850 = vpack.c.bf16 %v4842, %v4842
    %v4851 = vpack.c.bf16 %v4843, %v4843
    %v4852 = vpack.c.bf16 %v4844, %v4844
    %s4853 = scalar_lea.vmem [#allocation5], 3584
    %v4854 = vld [vmem:[%s4853] sm:$0xff]
    %v4855 = vld [vmem:[%s4853 + $0x8] sm:$0xff]
    %v4856 = vld [vmem:[%s4853 + $0x10] sm:$0xff]
    %v4857 = vld [vmem:[%s4853 + $0x18] sm:$0xff]
    %v4858 = vld [vmem:[%s4853 + $0x20] sm:$0xff]
    %v4859 = vld [vmem:[%s4853 + $0x28] sm:$0xff]
    %v4860 = vld [vmem:[%s4853 + $0x30] sm:$0xff]
    %v4861 = vld [vmem:[%s4853 + $0x38] sm:$0xff]
    %v4862 = vld [vmem:[%s4853 + $0x40] sm:$0xff]
    %v4863 = vld [vmem:[%s4853 + $0x48] sm:$0xff]
    %v4864 = vld [vmem:[%s4853 + $0x50] sm:$0xff]
    %v4865 = vld [vmem:[%s4853 + $0x58] sm:$0xff]
    %v4866 = vld [vmem:[%s4853 + $0x60] sm:$0xff]
    %v4867 = vld [vmem:[%s4853 + $0x68] sm:$0xff]
    %v4868 = vld [vmem:[%s4853 + $0x70] sm:$0xff]
    %v4869 = vld [vmem:[%s4853 + $0x78] sm:$0xff]
    %v4870 = vld [vmem:[%s4853 + $0x80] sm:$0xff]
    %v4871 = vld [vmem:[%s4853 + $0x88] sm:$0xff]
    %v4872 = vld [vmem:[%s4853 + $0x90] sm:$0xff]
    %v4873 = vld [vmem:[%s4853 + $0x98] sm:$0xff]
    %v4874 = vld [vmem:[%s4853 + $0xa0] sm:$0xff]
    %v4875 = vld [vmem:[%s4853 + $0xa8] sm:$0xff]
    %v4876 = vld [vmem:[%s4853 + $0xb0] sm:$0xff]
    %v4877 = vld [vmem:[%s4853 + $0xb8] sm:$0xff]
    %v4878 = vld [vmem:[%s4853 + $0xc0] sm:$0xff]
    %v4879 = vld [vmem:[%s4853 + $0xc8] sm:$0xff]
    %v4880 = vld [vmem:[%s4853 + $0xd0] sm:$0xff]
    %v4881 = vld [vmem:[%s4853 + $0xd8] sm:$0xff]
    %v4882 = vld [vmem:[%s4853 + $0xe0] sm:$0xff]
    %v4883 = vld [vmem:[%s4853 + $0xe8] sm:$0xff]
    %v4884 = vld [vmem:[%s4853 + $0xf0] sm:$0xff]
    %v4885 = vld [vmem:[%s4853 + $0xf8] sm:$0xff]
    %v4890 = vunpack.c.l.b16 %v4849
    %v4891 = vunpack.c.l.b16 %v4850
    %v4892 = vunpack.c.l.b16 %v4851
    %v4893 = vunpack.c.l.b16 %v4852
    %v4894 = vrot.slane %v4892, 7
    %v4895 = vsel %vm960, %v4894, %v4890
    %v4896 = vrot.slane %v4893, 7
    %v4897 = vsel %vm960, %v4896, %v4891
    %v4898 = vpack.c.b16 %v4895, %v4895
    %v4899 = vpack.c.b16 %v4897, %v4897
    %v4934 = vunpack.c.l.b16 %v4854
    %v4935 = vunpack.c.h.b16 %v4854
    %v4936 = vunpack.c.l.b16 %v4855
    %v4937 = vunpack.c.h.b16 %v4855
    %v4938 = vunpack.c.l.b16 %v4856
    %v4939 = vunpack.c.h.b16 %v4856
    %v4940 = vunpack.c.l.b16 %v4857
    %v4941 = vunpack.c.h.b16 %v4857
    %v4942 = vunpack.c.l.b16 %v4858
    %v4943 = vunpack.c.h.b16 %v4858
    %v4944 = vunpack.c.l.b16 %v4859
    %v4945 = vunpack.c.h.b16 %v4859
    %v4946 = vunpack.c.l.b16 %v4860
    %v4947 = vunpack.c.h.b16 %v4860
    %v4948 = vunpack.c.l.b16 %v4861
    %v4949 = vunpack.c.h.b16 %v4861
    %v4950 = vunpack.c.l.b16 %v4862
    %v4951 = vunpack.c.h.b16 %v4862
    %v4952 = vunpack.c.l.b16 %v4863
    %v4953 = vunpack.c.h.b16 %v4863
    %v4954 = vunpack.c.l.b16 %v4864
    %v4955 = vunpack.c.h.b16 %v4864
    %v4956 = vunpack.c.l.b16 %v4865
    %v4957 = vunpack.c.h.b16 %v4865
    %v4958 = vunpack.c.l.b16 %v4866
    %v4959 = vunpack.c.h.b16 %v4866
    %v4960 = vunpack.c.l.b16 %v4867
    %v4961 = vunpack.c.h.b16 %v4867
    %v4962 = vunpack.c.l.b16 %v4868
    %v4963 = vunpack.c.h.b16 %v4868
    %v4964 = vunpack.c.l.b16 %v4869
    %v4965 = vunpack.c.h.b16 %v4869
    %v4966 = vunpack.c.l.b16 %v4870
    %v4967 = vunpack.c.h.b16 %v4870
    %v4968 = vunpack.c.l.b16 %v4871
    %v4969 = vunpack.c.h.b16 %v4871
    %v4970 = vunpack.c.l.b16 %v4872
    %v4971 = vunpack.c.h.b16 %v4872
    %v4972 = vunpack.c.l.b16 %v4873
    %v4973 = vunpack.c.h.b16 %v4873
    %v4974 = vunpack.c.l.b16 %v4874
    %v4975 = vunpack.c.h.b16 %v4874
    %v4976 = vunpack.c.l.b16 %v4875
    %v4977 = vunpack.c.h.b16 %v4875
    %v4978 = vunpack.c.l.b16 %v4876
    %v4979 = vunpack.c.h.b16 %v4876
    %v4980 = vunpack.c.l.b16 %v4877
    %v4981 = vunpack.c.h.b16 %v4877
    %v4982 = vunpack.c.l.b16 %v4878
    %v4983 = vunpack.c.h.b16 %v4878
    %v4984 = vunpack.c.l.b16 %v4879
    %v4985 = vunpack.c.h.b16 %v4879
    %v4986 = vunpack.c.l.b16 %v4880
    %v4987 = vunpack.c.h.b16 %v4880
    %v4988 = vunpack.c.l.b16 %v4881
    %v4989 = vunpack.c.h.b16 %v4881
    %v4990 = vunpack.c.l.b16 %v4882
    %v4991 = vunpack.c.h.b16 %v4882
    %v4992 = vunpack.c.l.b16 %v4883
    %v4993 = vunpack.c.h.b16 %v4883
    %v4994 = vunpack.c.l.b16 %v4884
    %v4995 = vunpack.c.h.b16 %v4884
    %v4996 = vunpack.c.l.b16 %v4885
    %v4997 = vunpack.c.h.b16 %v4885
    %v4998 = vpack.c.b16 %v4936, %v4934
    %v4999 = vpack.c.b16 %v4937, %v4935
    %v5000 = vpack.c.b16 %v4940, %v4938
    %v5001 = vpack.c.b16 %v4941, %v4939
    %v5002 = vpack.c.b16 %v4944, %v4942
    %v5003 = vpack.c.b16 %v4945, %v4943
    %v5004 = vpack.c.b16 %v4948, %v4946
    %v5005 = vpack.c.b16 %v4949, %v4947
    %v5006 = vpack.c.b16 %v4952, %v4950
    %v5007 = vpack.c.b16 %v4953, %v4951
    %v5008 = vpack.c.b16 %v4956, %v4954
    %v5009 = vpack.c.b16 %v4957, %v4955
    %v5010 = vpack.c.b16 %v4960, %v4958
    %v5011 = vpack.c.b16 %v4961, %v4959
    %v5012 = vpack.c.b16 %v4964, %v4962
    %v5013 = vpack.c.b16 %v4965, %v4963
    %v5014 = vpack.c.b16 %v4968, %v4966
    %v5015 = vpack.c.b16 %v4969, %v4967
    %v5016 = vpack.c.b16 %v4972, %v4970
    %v5017 = vpack.c.b16 %v4973, %v4971
    %v5018 = vpack.c.b16 %v4976, %v4974
    %v5019 = vpack.c.b16 %v4977, %v4975
    %v5020 = vpack.c.b16 %v4980, %v4978
    %v5021 = vpack.c.b16 %v4981, %v4979
    %v5022 = vpack.c.b16 %v4984, %v4982
    %v5023 = vpack.c.b16 %v4985, %v4983
    %v5024 = vpack.c.b16 %v4988, %v4986
    %v5025 = vpack.c.b16 %v4989, %v4987
    %v5026 = vpack.c.b16 %v4992, %v4990
    %v5027 = vpack.c.b16 %v4993, %v4991
    %v5028 = vpack.c.b16 %v4996, %v4994
    %v5029 = vpack.c.b16 %v4997, %v4995
    %5062 = vmatpush.bf16.msra.mxu0 %v5012
    %5063 = vmatpush.bf16.msra.mxu0 %v5010
    %5064 = vmatpush.bf16.msra.mxu0 %v5008
    %5065 = vmatpush.bf16.msra.mxu0 %v5006
    %5066 = vmatpush.bf16.msra.mxu0 %v5004
    %5067 = vmatpush.bf16.msra.mxu0 %v5002
    %5068 = vmatpush.bf16.msra.mxu0 %v5000
    %5069 = vmatpush.bf16.msra.mxu0 %v4998
    %5070 = vmatmul.bf16.gmra.mxu0 %v4898
    %v5071 = vpop.f32.mrf.mxu0
    %v5072 = vadd.f32 0.0, %v5071
    %v5073 = vpop.f32.mrf.mxu0
    %5074 = vdwg.mxu0
    %5075 = vmatpush.bf16.msra.mxu0 %v5028
    %5076 = vmatpush.bf16.msra.mxu0 %v5026
    %5077 = vmatpush.bf16.msra.mxu0 %v5024
    %5078 = vmatpush.bf16.msra.mxu0 %v5022
    %5079 = vmatpush.bf16.msra.mxu0 %v5020
    %5080 = vmatpush.bf16.msra.mxu0 %v5018
    %5081 = vmatpush.bf16.msra.mxu0 %v5016
    %5082 = vmatpush.bf16.msra.mxu0 %v5014
    %5083 = vmatmul.bf16.gmra.mxu0 %v4899
    %v5084 = vpop.f32.mrf.mxu0
    %v5085 = vadd.f32 %v5072, %v5084
    %v5086 = vpop.f32.mrf.mxu0
    %5087 = vdwg.mxu0
    %5088 = vmatpush.bf16.msra.mxu0 %v5013
    %5089 = vmatpush.bf16.msra.mxu0 %v5011
    %5090 = vmatpush.bf16.msra.mxu0 %v5009
    %5091 = vmatpush.bf16.msra.mxu0 %v5007
    %5092 = vmatpush.bf16.msra.mxu0 %v5005
    %5093 = vmatpush.bf16.msra.mxu0 %v5003
    %5094 = vmatpush.bf16.msra.mxu0 %v5001
    %5095 = vmatpush.bf16.msra.mxu0 %v4999
    %5096 = vmatmul.bf16.gmra.mxu0 %v4898
    %v5097 = vpop.f32.mrf.mxu0
    %v5098 = vadd.f32 0.0, %v5097
    %v5099 = vpop.f32.mrf.mxu0
    %5100 = vdwg.mxu0
    %5101 = vmatpush.bf16.msra.mxu0 %v5029
    %5102 = vmatpush.bf16.msra.mxu0 %v5027
    %5103 = vmatpush.bf16.msra.mxu0 %v5025
    %5104 = vmatpush.bf16.msra.mxu0 %v5023
    %5105 = vmatpush.bf16.msra.mxu0 %v5021
    %5106 = vmatpush.bf16.msra.mxu0 %v5019
    %5107 = vmatpush.bf16.msra.mxu0 %v5017
    %5108 = vmatpush.bf16.msra.mxu0 %v5015
    %5109 = vmatmul.bf16.gmra.mxu0 %v4899
    %v5110 = vpop.f32.mrf.mxu0
    %v5111 = vadd.f32 %v5098, %v5110
    %v5112 = vpop.f32.mrf.mxu0
    %5113 = vdwg.mxu0
    %v5114 = vadd.f32 %v4833, %v5085
    %v5115 = vadd.f32 %v4834, %v5111
    %s5116 = scalar_lea.vmem [#allocation4], 23
    %v5117 = vld [vmem:[%s5116] ss:$8 sm:$0x3]
    %s5118 = scalar_lea.vmem [#allocation4], 55
    %v5119 = vld [vmem:[%s5118] ss:$8 sm:$0x3]
    %v5122 = vperm.slane %v5117, 0
    %v5123 = vperm.slane %v5117, 1
    %v5124 = vperm.slane %v5119, 0
    %v5125 = vperm.slane %v5119, 1
    %v5130 = vpack.c.bf16 %v5122, %v5122
    %v5131 = vpack.c.bf16 %v5123, %v5123
    %v5132 = vpack.c.bf16 %v5124, %v5124
    %v5133 = vpack.c.bf16 %v5125, %v5125
    %s5134 = scalar_lea.vmem [#allocation5], 3840
    %v5135 = vld [vmem:[%s5134] sm:$0xff]
    %v5136 = vld [vmem:[%s5134 + $0x8] sm:$0xff]
    %v5137 = vld [vmem:[%s5134 + $0x10] sm:$0xff]
    %v5138 = vld [vmem:[%s5134 + $0x18] sm:$0xff]
    %v5139 = vld [vmem:[%s5134 + $0x20] sm:$0xff]
    %v5140 = vld [vmem:[%s5134 + $0x28] sm:$0xff]
    %v5141 = vld [vmem:[%s5134 + $0x30] sm:$0xff]
    %v5142 = vld [vmem:[%s5134 + $0x38] sm:$0xff]
    %v5143 = vld [vmem:[%s5134 + $0x40] sm:$0xff]
    %v5144 = vld [vmem:[%s5134 + $0x48] sm:$0xff]
    %v5145 = vld [vmem:[%s5134 + $0x50] sm:$0xff]
    %v5146 = vld [vmem:[%s5134 + $0x58] sm:$0xff]
    %v5147 = vld [vmem:[%s5134 + $0x60] sm:$0xff]
    %v5148 = vld [vmem:[%s5134 + $0x68] sm:$0xff]
    %v5149 = vld [vmem:[%s5134 + $0x70] sm:$0xff]
    %v5150 = vld [vmem:[%s5134 + $0x78] sm:$0xff]
    %v5151 = vld [vmem:[%s5134 + $0x80] sm:$0xff]
    %v5152 = vld [vmem:[%s5134 + $0x88] sm:$0xff]
    %v5153 = vld [vmem:[%s5134 + $0x90] sm:$0xff]
    %v5154 = vld [vmem:[%s5134 + $0x98] sm:$0xff]
    %v5155 = vld [vmem:[%s5134 + $0xa0] sm:$0xff]
    %v5156 = vld [vmem:[%s5134 + $0xa8] sm:$0xff]
    %v5157 = vld [vmem:[%s5134 + $0xb0] sm:$0xff]
    %v5158 = vld [vmem:[%s5134 + $0xb8] sm:$0xff]
    %v5159 = vld [vmem:[%s5134 + $0xc0] sm:$0xff]
    %v5160 = vld [vmem:[%s5134 + $0xc8] sm:$0xff]
    %v5161 = vld [vmem:[%s5134 + $0xd0] sm:$0xff]
    %v5162 = vld [vmem:[%s5134 + $0xd8] sm:$0xff]
    %v5163 = vld [vmem:[%s5134 + $0xe0] sm:$0xff]
    %v5164 = vld [vmem:[%s5134 + $0xe8] sm:$0xff]
    %v5165 = vld [vmem:[%s5134 + $0xf0] sm:$0xff]
    %v5166 = vld [vmem:[%s5134 + $0xf8] sm:$0xff]
    %v5171 = vunpack.c.l.b16 %v5130
    %v5172 = vunpack.c.l.b16 %v5131
    %v5173 = vunpack.c.l.b16 %v5132
    %v5174 = vunpack.c.l.b16 %v5133
    %v5175 = vrot.slane %v5173, 7
    %v5176 = vsel %vm960, %v5175, %v5171
    %v5177 = vrot.slane %v5174, 7
    %v5178 = vsel %vm960, %v5177, %v5172
    %v5179 = vpack.c.b16 %v5176, %v5176
    %v5180 = vpack.c.b16 %v5178, %v5178
    %v5215 = vunpack.c.l.b16 %v5135
    %v5216 = vunpack.c.h.b16 %v5135
    %v5217 = vunpack.c.l.b16 %v5136
    %v5218 = vunpack.c.h.b16 %v5136
    %v5219 = vunpack.c.l.b16 %v5137
    %v5220 = vunpack.c.h.b16 %v5137
    %v5221 = vunpack.c.l.b16 %v5138
    %v5222 = vunpack.c.h.b16 %v5138
    %v5223 = vunpack.c.l.b16 %v5139
    %v5224 = vunpack.c.h.b16 %v5139
    %v5225 = vunpack.c.l.b16 %v5140
    %v5226 = vunpack.c.h.b16 %v5140
    %v5227 = vunpack.c.l.b16 %v5141
    %v5228 = vunpack.c.h.b16 %v5141
    %v5229 = vunpack.c.l.b16 %v5142
    %v5230 = vunpack.c.h.b16 %v5142
    %v5231 = vunpack.c.l.b16 %v5143
    %v5232 = vunpack.c.h.b16 %v5143
    %v5233 = vunpack.c.l.b16 %v5144
    %v5234 = vunpack.c.h.b16 %v5144
    %v5235 = vunpack.c.l.b16 %v5145
    %v5236 = vunpack.c.h.b16 %v5145
    %v5237 = vunpack.c.l.b16 %v5146
    %v5238 = vunpack.c.h.b16 %v5146
    %v5239 = vunpack.c.l.b16 %v5147
    %v5240 = vunpack.c.h.b16 %v5147
    %v5241 = vunpack.c.l.b16 %v5148
    %v5242 = vunpack.c.h.b16 %v5148
    %v5243 = vunpack.c.l.b16 %v5149
    %v5244 = vunpack.c.h.b16 %v5149
    %v5245 = vunpack.c.l.b16 %v5150
    %v5246 = vunpack.c.h.b16 %v5150
    %v5247 = vunpack.c.l.b16 %v5151
    %v5248 = vunpack.c.h.b16 %v5151
    %v5249 = vunpack.c.l.b16 %v5152
    %v5250 = vunpack.c.h.b16 %v5152
    %v5251 = vunpack.c.l.b16 %v5153
    %v5252 = vunpack.c.h.b16 %v5153
    %v5253 = vunpack.c.l.b16 %v5154
    %v5254 = vunpack.c.h.b16 %v5154
    %v5255 = vunpack.c.l.b16 %v5155
    %v5256 = vunpack.c.h.b16 %v5155
    %v5257 = vunpack.c.l.b16 %v5156
    %v5258 = vunpack.c.h.b16 %v5156
    %v5259 = vunpack.c.l.b16 %v5157
    %v5260 = vunpack.c.h.b16 %v5157
    %v5261 = vunpack.c.l.b16 %v5158
    %v5262 = vunpack.c.h.b16 %v5158
    %v5263 = vunpack.c.l.b16 %v5159
    %v5264 = vunpack.c.h.b16 %v5159
    %v5265 = vunpack.c.l.b16 %v5160
    %v5266 = vunpack.c.h.b16 %v5160
    %v5267 = vunpack.c.l.b16 %v5161
    %v5268 = vunpack.c.h.b16 %v5161
    %v5269 = vunpack.c.l.b16 %v5162
    %v5270 = vunpack.c.h.b16 %v5162
    %v5271 = vunpack.c.l.b16 %v5163
    %v5272 = vunpack.c.h.b16 %v5163
    %v5273 = vunpack.c.l.b16 %v5164
    %v5274 = vunpack.c.h.b16 %v5164
    %v5275 = vunpack.c.l.b16 %v5165
    %v5276 = vunpack.c.h.b16 %v5165
    %v5277 = vunpack.c.l.b16 %v5166
    %v5278 = vunpack.c.h.b16 %v5166
    %v5279 = vpack.c.b16 %v5217, %v5215
    %v5280 = vpack.c.b16 %v5218, %v5216
    %v5281 = vpack.c.b16 %v5221, %v5219
    %v5282 = vpack.c.b16 %v5222, %v5220
    %v5283 = vpack.c.b16 %v5225, %v5223
    %v5284 = vpack.c.b16 %v5226, %v5224
    %v5285 = vpack.c.b16 %v5229, %v5227
    %v5286 = vpack.c.b16 %v5230, %v5228
    %v5287 = vpack.c.b16 %v5233, %v5231
    %v5288 = vpack.c.b16 %v5234, %v5232
    %v5289 = vpack.c.b16 %v5237, %v5235
    %v5290 = vpack.c.b16 %v5238, %v5236
    %v5291 = vpack.c.b16 %v5241, %v5239
    %v5292 = vpack.c.b16 %v5242, %v5240
    %v5293 = vpack.c.b16 %v5245, %v5243
    %v5294 = vpack.c.b16 %v5246, %v5244
    %v5295 = vpack.c.b16 %v5249, %v5247
    %v5296 = vpack.c.b16 %v5250, %v5248
    %v5297 = vpack.c.b16 %v5253, %v5251
    %v5298 = vpack.c.b16 %v5254, %v5252
    %v5299 = vpack.c.b16 %v5257, %v5255
    %v5300 = vpack.c.b16 %v5258, %v5256
    %v5301 = vpack.c.b16 %v5261, %v5259
    %v5302 = vpack.c.b16 %v5262, %v5260
    %v5303 = vpack.c.b16 %v5265, %v5263
    %v5304 = vpack.c.b16 %v5266, %v5264
    %v5305 = vpack.c.b16 %v5269, %v5267
    %v5306 = vpack.c.b16 %v5270, %v5268
    %v5307 = vpack.c.b16 %v5273, %v5271
    %v5308 = vpack.c.b16 %v5274, %v5272
    %v5309 = vpack.c.b16 %v5277, %v5275
    %v5310 = vpack.c.b16 %v5278, %v5276
    %5343 = vmatpush.bf16.msra.mxu0 %v5293
    %5344 = vmatpush.bf16.msra.mxu0 %v5291
    %5345 = vmatpush.bf16.msra.mxu0 %v5289
    %5346 = vmatpush.bf16.msra.mxu0 %v5287
    %5347 = vmatpush.bf16.msra.mxu0 %v5285
    %5348 = vmatpush.bf16.msra.mxu0 %v5283
    %5349 = vmatpush.bf16.msra.mxu0 %v5281
    %5350 = vmatpush.bf16.msra.mxu0 %v5279
    %5351 = vmatmul.bf16.gmra.mxu0 %v5179
    %v5352 = vpop.f32.mrf.mxu0
    %v5353 = vadd.f32 0.0, %v5352
    %v5354 = vpop.f32.mrf.mxu0
    %5355 = vdwg.mxu0
    %5356 = vmatpush.bf16.msra.mxu0 %v5309
    %5357 = vmatpush.bf16.msra.mxu0 %v5307
    %5358 = vmatpush.bf16.msra.mxu0 %v5305
    %5359 = vmatpush.bf16.msra.mxu0 %v5303
    %5360 = vmatpush.bf16.msra.mxu0 %v5301
    %5361 = vmatpush.bf16.msra.mxu0 %v5299
    %5362 = vmatpush.bf16.msra.mxu0 %v5297
    %5363 = vmatpush.bf16.msra.mxu0 %v5295
    %5364 = vmatmul.bf16.gmra.mxu0 %v5180
    %v5365 = vpop.f32.mrf.mxu0
    %v5366 = vadd.f32 %v5353, %v5365
    %v5367 = vpop.f32.mrf.mxu0
    %5368 = vdwg.mxu0
    %5369 = vmatpush.bf16.msra.mxu0 %v5294
    %5370 = vmatpush.bf16.msra.mxu0 %v5292
    %5371 = vmatpush.bf16.msra.mxu0 %v5290
    %5372 = vmatpush.bf16.msra.mxu0 %v5288
    %5373 = vmatpush.bf16.msra.mxu0 %v5286
    %5374 = vmatpush.bf16.msra.mxu0 %v5284
    %5375 = vmatpush.bf16.msra.mxu0 %v5282
    %5376 = vmatpush.bf16.msra.mxu0 %v5280
    %5377 = vmatmul.bf16.gmra.mxu0 %v5179
    %v5378 = vpop.f32.mrf.mxu0
    %v5379 = vadd.f32 0.0, %v5378
    %v5380 = vpop.f32.mrf.mxu0
    %5381 = vdwg.mxu0
    %5382 = vmatpush.bf16.msra.mxu0 %v5310
    %5383 = vmatpush.bf16.msra.mxu0 %v5308
    %5384 = vmatpush.bf16.msra.mxu0 %v5306
    %5385 = vmatpush.bf16.msra.mxu0 %v5304
    %5386 = vmatpush.bf16.msra.mxu0 %v5302
    %5387 = vmatpush.bf16.msra.mxu0 %v5300
    %5388 = vmatpush.bf16.msra.mxu0 %v5298
    %5389 = vmatpush.bf16.msra.mxu0 %v5296
    %5390 = vmatmul.bf16.gmra.mxu0 %v5180
    %v5391 = vpop.f32.mrf.mxu0
    %v5392 = vadd.f32 %v5379, %v5391
    %v5393 = vpop.f32.mrf.mxu0
    %5394 = vdwg.mxu0
    %v5395 = vadd.f32 %v5114, %v5366
    %v5396 = vadd.f32 %v5115, %v5392
    %v5397 = vmax.f32 %v5395, 0.0
    %v5398 = vmax.f32 %v5396, 0.0
    %v5399 = vpack.c.bf16 %v5397, %v5397
    %v5400 = vpack.c.bf16 %v5398, %v5398
    %v5401 = vld [vmem:[#allocation18] sm:$0xf]
    %v5402 = vld [vmem:[#allocation18 + $0x4] sm:$0xf]
    %v5403 = vld [vmem:[#allocation18 + $0x8] sm:$0xf]
    %v5404 = vld [vmem:[#allocation18 + $0xc] sm:$0xf]
    %v5405 = vld [vmem:[#allocation18 + $0x10] sm:$0xf]
    %v5406 = vld [vmem:[#allocation18 + $0x14] sm:$0xf]
    %v5407 = vld [vmem:[#allocation18 + $0x18] sm:$0xf]
    %v5408 = vld [vmem:[#allocation18 + $0x1c] sm:$0xf]
    %v5409 = vld [vmem:[#allocation18 + $0x20] sm:$0xf]
    %v5410 = vld [vmem:[#allocation18 + $0x24] sm:$0xf]
    %v5411 = vld [vmem:[#allocation18 + $0x28] sm:$0xf]
    %v5412 = vld [vmem:[#allocation18 + $0x2c] sm:$0xf]
    %v5413 = vld [vmem:[#allocation18 + $0x30] sm:$0xf]
    %v5414 = vld [vmem:[#allocation18 + $0x34] sm:$0xf]
    %v5415 = vld [vmem:[#allocation18 + $0x38] sm:$0xf]
    %v5416 = vld [vmem:[#allocation18 + $0x3c] sm:$0xf]
    %v5417 = vld [vmem:[#allocation18 + $0x40] sm:$0xf]
    %v5418 = vld [vmem:[#allocation18 + $0x44] sm:$0xf]
    %v5419 = vld [vmem:[#allocation18 + $0x48] sm:$0xf]
    %v5420 = vld [vmem:[#allocation18 + $0x4c] sm:$0xf]
    %v5421 = vld [vmem:[#allocation18 + $0x50] sm:$0xf]
    %v5422 = vld [vmem:[#allocation18 + $0x54] sm:$0xf]
    %v5423 = vld [vmem:[#allocation18 + $0x58] sm:$0xf]
    %v5424 = vld [vmem:[#allocation18 + $0x5c] sm:$0xf]
    %v5425 = vld [vmem:[#allocation18 + $0x60] sm:$0xf]
    %v5426 = vld [vmem:[#allocation18 + $0x64] sm:$0xf]
    %v5427 = vld [vmem:[#allocation18 + $0x68] sm:$0xf]
    %v5428 = vld [vmem:[#allocation18 + $0x6c] sm:$0xf]
    %v5429 = vld [vmem:[#allocation18 + $0x70] sm:$0xf]
    %v5430 = vld [vmem:[#allocation18 + $0x74] sm:$0xf]
    %v5431 = vld [vmem:[#allocation18 + $0x78] sm:$0xf]
    %v5432 = vld [vmem:[#allocation18 + $0x7c] sm:$0xf]
    %v5433 = vld [vmem:[#allocation19] sm:$0x1]
    %v5435 = vperm.slane %v5433, 0
    %v5469 = vunpack.c.l.b16 %v5401
    %v5470 = vunpack.c.l.b16 %v5402
    %v5471 = vunpack.c.l.b16 %v5403
    %v5472 = vunpack.c.l.b16 %v5404
    %v5473 = vunpack.c.l.b16 %v5405
    %v5474 = vunpack.c.l.b16 %v5406
    %v5475 = vunpack.c.l.b16 %v5407
    %v5476 = vunpack.c.l.b16 %v5408
    %v5477 = vunpack.c.l.b16 %v5409
    %v5478 = vunpack.c.l.b16 %v5410
    %v5479 = vunpack.c.l.b16 %v5411
    %v5480 = vunpack.c.l.b16 %v5412
    %v5481 = vunpack.c.l.b16 %v5413
    %v5482 = vunpack.c.l.b16 %v5414
    %v5483 = vunpack.c.l.b16 %v5415
    %v5484 = vunpack.c.l.b16 %v5416
    %v5485 = vunpack.c.l.b16 %v5417
    %v5486 = vunpack.c.l.b16 %v5418
    %v5487 = vunpack.c.l.b16 %v5419
    %v5488 = vunpack.c.l.b16 %v5420
    %v5489 = vunpack.c.l.b16 %v5421
    %v5490 = vunpack.c.l.b16 %v5422
    %v5491 = vunpack.c.l.b16 %v5423
    %v5492 = vunpack.c.l.b16 %v5424
    %v5493 = vunpack.c.l.b16 %v5425
    %v5494 = vunpack.c.l.b16 %v5426
    %v5495 = vunpack.c.l.b16 %v5427
    %v5496 = vunpack.c.l.b16 %v5428
    %v5497 = vunpack.c.l.b16 %v5429
    %v5498 = vunpack.c.l.b16 %v5430
    %v5499 = vunpack.c.l.b16 %v5431
    %v5500 = vunpack.c.l.b16 %v5432
    %v5501 = vpack.c.b16 %v5470, %v5469
    %v5502 = vpack.c.b16 %v5472, %v5471
    %v5503 = vpack.c.b16 %v5474, %v5473
    %v5504 = vpack.c.b16 %v5476, %v5475
    %v5505 = vpack.c.b16 %v5478, %v5477
    %v5506 = vpack.c.b16 %v5480, %v5479
    %v5507 = vpack.c.b16 %v5482, %v5481
    %v5508 = vpack.c.b16 %v5484, %v5483
    %v5509 = vpack.c.b16 %v5486, %v5485
    %v5510 = vpack.c.b16 %v5488, %v5487
    %v5511 = vpack.c.b16 %v5490, %v5489
    %v5512 = vpack.c.b16 %v5492, %v5491
    %v5513 = vpack.c.b16 %v5494, %v5493
    %v5514 = vpack.c.b16 %v5496, %v5495
    %v5515 = vpack.c.b16 %v5498, %v5497
    %v5516 = vpack.c.b16 %v5500, %v5499
    %5533 = vmatpush.bf16.msra.mxu0 %v5508
    %5534 = vmatpush.bf16.msra.mxu0 %v5507
    %5535 = vmatpush.bf16.msra.mxu0 %v5506
    %5536 = vmatpush.bf16.msra.mxu0 %v5505
    %5537 = vmatpush.bf16.msra.mxu0 %v5504
    %5538 = vmatpush.bf16.msra.mxu0 %v5503
    %5539 = vmatpush.bf16.msra.mxu0 %v5502
    %5540 = vmatpush.bf16.msra.mxu0 %v5501
    %5541 = vmatmul.bf16.gmra.mxu0 %v5399
    %v5542 = vpop.f32.mrf.mxu0
    %v5543 = vadd.f32 %v5435, %v5542
    %v5544 = vpop.f32.mrf.mxu0
    %5545 = vdwg.mxu0
    %5546 = vmatpush.bf16.msra.mxu0 %v5516
    %5547 = vmatpush.bf16.msra.mxu0 %v5515
    %5548 = vmatpush.bf16.msra.mxu0 %v5514
    %5549 = vmatpush.bf16.msra.mxu0 %v5513
    %5550 = vmatpush.bf16.msra.mxu0 %v5512
    %5551 = vmatpush.bf16.msra.mxu0 %v5511
    %5552 = vmatpush.bf16.msra.mxu0 %v5510
    %5553 = vmatpush.bf16.msra.mxu0 %v5509
    %5554 = vmatmul.bf16.gmra.mxu0 %v5400
    %v5555 = vpop.f32.mrf.mxu0
    %v5556 = vadd.f32 %v5543, %v5555
    %v5557 = vpop.f32.mrf.mxu0
    %5558 = vdwg.mxu0
    %v5559 = vmax.f32 %v5556, 0.0
    %v5560 = vld [vmem:[#allocation21] sm:$0x1]
    %v5562 = vperm.slane %v5560, 0
    %v5564 = vmul.f32 %v5559, %v5562
    %vm5565 = vcmask 1041408
    %v5566 = vsel %vm5565, %v5564, 0.0
    %5567 = vadd.xlane.f32.xlu0 %v5566
    %v5568 = vpop.xlane.xlu0 %5567
    %v5569 = vld [vmem:[#allocation7] sm:$0x1]
    %v5571 = vperm.slane %v5569, 0
    %v5573 = vadd.f32 %v5568, %v5571
    %vm5574 = vcmask 1024
    %5575 = vst.msk [vmem:[%s13] sm:$0x3] %vm5574, %v5573
    // Predicated region
    $region90: #{cnn2d_forward.1} parent=1 // pred_check
      _
    $region91: #{cnn2d_forward.1} parent=1 // pred_check_branch
      %5577 = sbr.rel (0) target = $region93
    $region92: #{cnn2d_forward.1} parent=1 // pred_region
      _
    $region93: #{cnn2d_forward.1} parent=1 // pred_fallthru
      _
    // Predicated region
    $region94: #{cnn2d_forward.1} parent=1 // pred_check
      _
    $region95: #{cnn2d_forward.1} parent=1 // pred_check_branch
      %5579 = sbr.rel (0) target = $region97
    $region96: #{cnn2d_forward.1} parent=1 // pred_region
      _
    $region97: #{cnn2d_forward.1} parent=1 // pred_fallthru
      _
    %5580 = vsyncpa [#allocation9], 1
    %5581 = vsyncpa [#allocation11], 1
    %5582 = vsyncpa [#allocation14], 1
    %5583 = vsyncpa [#allocation17], 1
    %5584 = vsyncpa [#allocation20], 1
  %5585 = vsyncmov [#allocation6]
  %s5586 = vpop.sfrf %5585
  %p5587 = scmp.eq.s32.totalorder %s5586, 0
  %p5588 = pneg %p5587
  %5590 = shalt.err (%p5588)

</llo_original>
